<compile_context>
chip_gen: v6e
topology: v6e:2x2x1
jax: 0.10.0
libtpu: 0.0.40
codegen_flags: <defaults>
</compile_context>

<pallas_src>
import functools

import jax
import jax.numpy as jnp
from jax import lax
from jax.experimental import pallas as pl
from jax.experimental.pallas import tpu as pltpu


def _round_up(x, m):
    return (x + m - 1) // m * m


def _build_kernel(T, B):
    """Kernel closure over static T (seq len) and B (padded batch)."""

    def kernel(
        emb_ref,     # [T*B, E]   f32 embedded tokens (time-major, flattened)
        wih_f_ref,   # [E, 4Hp]   forward input->gates weight (transposed, padded)
        whh_f_ref,   # [Hp, 4Hp]  forward hidden->gates weight
        b_f_ref,     # [1, 4Hp]   forward combined bias (b_ih + b_hh)
        wih_b_ref,   # [E, 4Hp]   backward weights
        whh_b_ref,   # [Hp, 4Hp]
        b_b_ref,     # [1, 4Hp]
        wfc_f_ref,   # [Hp, Kp]   fc weight, forward half
        wfc_b_ref,   # [Hp, Kp]   fc weight, backward half
        bfc_ref,     # [1, Kp]    fc bias
        out_ref,     # [T*B, Kp]  output logits
        gxf_scr,     # [T*B, 4Hp] scratch: precomputed forward gate inputs
        gxb_scr,     # [T*B, 4Hp] scratch: precomputed backward gate inputs
        hf_scr,      # [T*B, Hp]  scratch: forward hidden states
        hb_scr,      # [T*B, Hp]  scratch: backward hidden states
    ):
        Hp = whh_f_ref.shape[0]

        # ---- Phase 1: hoisted input transform (one big MXU matmul / dir) ----
        x2d = emb_ref[...]                                   # [T*B, E]
        gxf_scr[...] = (
            jnp.dot(x2d, wih_f_ref[...], preferred_element_type=jnp.float32)
            + b_f_ref[...]
        )
        gxb_scr[...] = (
            jnp.dot(x2d, wih_b_ref[...], preferred_element_type=jnp.float32)
            + b_b_ref[...]
        )

        # Loop-invariant weights loaded once (not per iteration).
        whh_f = whh_f_ref[...]
        whh_b = whh_b_ref[...]

        def cell(gates, c):
            # Gate slices land on 128-lane boundaries -> free static views.
            i = jax.nn.sigmoid(gates[:, 0 * Hp:1 * Hp])
            f = jax.nn.sigmoid(gates[:, 1 * Hp:2 * Hp])
            g = jnp.tanh(gates[:, 2 * Hp:3 * Hp])
            o = jax.nn.sigmoid(gates[:, 3 * Hp:4 * Hp])
            c_new = f * c + i * g
            h_new = o * jnp.tanh(c_new)
            return h_new, c_new

        zeros = jnp.zeros((B, Hp), jnp.float32)

        # ---- Phase 2: interleaved forward/backward recurrence ----
        def step(t, carry):
            hf, cf, hb, cb = carry
            rf = pl.multiple_of(t * B, B)
            rb = pl.multiple_of((T - 1 - t) * B, B)

            # forward direction, step t
            g_f = gxf_scr[pl.ds(rf, B), :] + jnp.dot(
                hf, whh_f, preferred_element_type=jnp.float32)
            hf, cf = cell(g_f, cf)
            hf_scr[pl.ds(rf, B), :] = hf

            # backward direction, step T-1-t
            g_b = gxb_scr[pl.ds(rb, B), :] + jnp.dot(
                hb, whh_b, preferred_element_type=jnp.float32)
            hb, cb = cell(g_b, cb)
            hb_scr[pl.ds(rb, B), :] = hb

            return (hf, cf, hb, cb)

        lax.fori_loop(0, T, step, (zeros, zeros, zeros, zeros), unroll=True)

        # ---- Phase 3: one batched output projection ----
        out_ref[...] = (
            jnp.dot(hf_scr[...], wfc_f_ref[...], preferred_element_type=jnp.float32)
            + jnp.dot(hb_scr[...], wfc_b_ref[...], preferred_element_type=jnp.float32)
            + bfc_ref[...]
        )

    return kernel


# -------- wrapper-side weight packing (zero-padded, lane-aligned gates) -------
def _pack_gate_weight(w, in_dim_pad, Hp):
    """w: [4H, in_dim] (PyTorch layout) -> [in_dim_pad, 4*Hp], gate k occupies
    lanes [k*Hp, k*Hp+H); all padding is zero-filled."""
    fourH, in_dim = w.shape
    H = fourH // 4
    out = jnp.zeros((in_dim_pad, 4 * Hp), jnp.float32)
    for k in range(4):
        out = out.at[:in_dim, k * Hp:k * Hp + H].set(w[k * H:(k + 1) * H, :].T)
    return out


def _pack_gate_bias(b, Hp):
    fourH = b.shape[0]
    H = fourH // 4
    out = jnp.zeros((1, 4 * Hp), jnp.float32)
    for k in range(4):
        out = out.at[0, k * Hp:k * Hp + H].set(b[k * H:(k + 1) * H])
    return out


def init_params(key, vocab_size, tagset_size, embedding_dim, hidden_dim):
    """Deterministic synthetic parameters, PyTorch shape conventions."""
    H = hidden_dim // 2
    ks = jax.random.split(key, 12)
    s = 0.1
    p = {
        "embedding": s * jax.random.normal(ks[0], (vocab_size, embedding_dim), jnp.float32),
        # forward direction
        "w_ih_f": s * jax.random.normal(ks[1], (4 * H, embedding_dim), jnp.float32),
        "w_hh_f": s * jax.random.normal(ks[2], (4 * H, H), jnp.float32),
        "b_ih_f": s * jax.random.normal(ks[3], (4 * H,), jnp.float32),
        "b_hh_f": s * jax.random.normal(ks[4], (4 * H,), jnp.float32),
        # backward direction
        "w_ih_b": s * jax.random.normal(ks[5], (4 * H, embedding_dim), jnp.float32),
        "w_hh_b": s * jax.random.normal(ks[6], (4 * H, H), jnp.float32),
        "b_ih_b": s * jax.random.normal(ks[7], (4 * H,), jnp.float32),
        "b_hh_b": s * jax.random.normal(ks[8], (4 * H,), jnp.float32),
        # final linear
        "w_fc": s * jax.random.normal(ks[9], (tagset_size, hidden_dim), jnp.float32),
        "b_fc": s * jax.random.normal(ks[10], (tagset_size,), jnp.float32),
    }
    return p


def bilstm_tagger_forward(tokens, params):
    """tokens: int32 [B, T] -> logits f32 [B, T, tagset_size]."""
    emb_table = params["embedding"]                       # [V, E]
    K, twoH = params["w_fc"].shape
    H = twoH // 2
    E = emb_table.shape[1]
    B, T = tokens.shape

    # Padded dims: lane-aligned gates / tagset, sublane-aligned batch.
    Hp = _round_up(H, 128)
    Kp = _round_up(K, 128)
    Bp = _round_up(max(B, 8), 8)
    G = 4 * Hp

    # glue: embedding gather in plain JAX (data-dependent gather).
    emb = jnp.take(emb_table, tokens, axis=0).astype(jnp.float32)   # [B, T, E]
    emb_tm = jnp.transpose(emb, (1, 0, 2))                          # [T, B, E]
    emb_tm = jnp.pad(emb_tm, ((0, 0), (0, Bp - B), (0, 0)))         # [T, Bp, E]
    emb2d = emb_tm.reshape(T * Bp, E)

    # Pre-transpose / pad weights; fold the two biases together.
    wih_f = _pack_gate_weight(params["w_ih_f"], E, Hp)              # [E, 4Hp]
    whh_f = _pack_gate_weight(params["w_hh_f"], Hp, Hp)             # [Hp, 4Hp]
    b_f = _pack_gate_bias(params["b_ih_f"] + params["b_hh_f"], Hp)  # [1, 4Hp]
    wih_b = _pack_gate_weight(params["w_ih_b"], E, Hp)
    whh_b = _pack_gate_weight(params["w_hh_b"], Hp, Hp)
    b_b = _pack_gate_bias(params["b_ih_b"] + params["b_hh_b"], Hp)

    wfc_f = jnp.zeros((Hp, Kp), jnp.float32).at[:H, :K].set(params["w_fc"][:, :H].T)
    wfc_b = jnp.zeros((Hp, Kp), jnp.float32).at[:H, :K].set(params["w_fc"][:, H:].T)
    bfc = jnp.zeros((1, Kp), jnp.float32).at[0, :K].set(params["b_fc"])

    vmem = pl.BlockSpec(memory_space=pltpu.MemorySpace.VMEM)
    out2d = pl.pallas_call(
        _build_kernel(T, Bp),
        out_shape=jax.ShapeDtypeStruct((T * Bp, Kp), jnp.float32),
        in_specs=[vmem] * 10,
        out_specs=vmem,
        scratch_shapes=[
            pltpu.VMEM((T * Bp, G), jnp.float32),   # precomputed fwd gate inputs
            pltpu.VMEM((T * Bp, G), jnp.float32),   # precomputed bwd gate inputs
            pltpu.VMEM((T * Bp, Hp), jnp.float32),  # fwd hidden states
            pltpu.VMEM((T * Bp, Hp), jnp.float32),  # bwd hidden states
        ],
        compiler_params=pltpu.CompilerParams(vmem_limit_bytes=64 << 20),
    )(emb2d, wih_f, whh_f, b_f, wih_b, whh_b, b_b, wfc_f, wfc_b, bfc)

    out = out2d.reshape(T, Bp, Kp)[:, :B, :K]             # [T, B, K]
    return jnp.transpose(out, (1, 0, 2))                  # [B, T, K]


# -------- pure-JAX reference (for correctness check) --------
def _ref_forward(tokens, params):
    emb = jnp.take(params["embedding"], tokens, axis=0)   # [B, T, E]
    H = params["w_hh_f"].shape[1]

    def run_dir(x_bte, w_ih, w_hh, b_ih, b_hh, reverse):
        x_tbe = jnp.transpose(x_bte, (1, 0, 2))
        if reverse:
            x_tbe = x_tbe[::-1]
        B = x_tbe.shape[1]

        def cell(carry, x_t):
            h, c = carry
            g = x_t @ w_ih.T + h @ w_hh.T + b_ih + b_hh
            i = jax.nn.sigmoid(g[:, 0 * H:1 * H])
            f = jax.nn.sigmoid(g[:, 1 * H:2 * H])
            gg = jnp.tanh(g[:, 2 * H:3 * H])
            o = jax.nn.sigmoid(g[:, 3 * H:4 * H])
            c = f * c + i * gg
            h = o * jnp.tanh(c)
            return (h, c), h

        init = (jnp.zeros((B, H)), jnp.zeros((B, H)))
        _, hs = lax.scan(cell, init, x_tbe)
        if reverse:
            hs = hs[::-1]
        return jnp.transpose(hs, (1, 0, 2))               # [B, T, H]

    hf = run_dir(emb, params["w_ih_f"], params["w_hh_f"],
                 params["b_ih_f"], params["b_hh_f"], reverse=False)
    hb = run_dir(emb, params["w_ih_b"], params["w_hh_b"],
                 params["b_ih_b"], params["b_hh_b"], reverse=True)
    h = jnp.concatenate([hf, hb], axis=-1)                # [B, T, 2H]
    return h @ params["w_fc"].T + params["b_fc"]


if __name__ == "__main__":
    vocab_size, tagset_size = 50, 10
    embedding_dim, hidden_dim = 32, 32     # per-direction hidden = 16
    B, T = 2, 8

    key = jax.random.PRNGKey(0)
    k_tok, k_par = jax.random.split(key)
    tokens = jax.random.randint(k_tok, (B, T), 0, vocab_size, dtype=jnp.int32)
    params = init_params(k_par, vocab_size, tagset_size, embedding_dim, hidden_dim)

    out = bilstm_tagger_forward(tokens, params)
    out = jax.block_until_ready(out)

    ref = jax.block_until_ready(_ref_forward(tokens, params))
    assert out.shape == (B, T, tagset_size)
    assert jnp.allclose(out, ref, rtol=1e-4, atol=1e-4), "mismatch vs reference"
    print("KERNEL_OK")
</pallas_src>

<mosaic_0001>
module attributes {stable_mosaic.version = 11 : i64} {
  func.func @kernel(%arg0: memref<64x32xf32, #tpu.memory_space<vmem>>, %arg1: memref<32x512xf32, #tpu.memory_space<vmem>>, %arg2: memref<128x512xf32, #tpu.memory_space<vmem>>, %arg3: memref<1x512xf32, #tpu.memory_space<vmem>>, %arg4: memref<32x512xf32, #tpu.memory_space<vmem>>, %arg5: memref<128x512xf32, #tpu.memory_space<vmem>>, %arg6: memref<1x512xf32, #tpu.memory_space<vmem>>, %arg7: memref<128x128xf32, #tpu.memory_space<vmem>>, %arg8: memref<128x128xf32, #tpu.memory_space<vmem>>, %arg9: memref<1x128xf32, #tpu.memory_space<vmem>>, %arg10: memref<64x128xf32, #tpu.memory_space<vmem>>, %arg11: memref<64x512xf32, #tpu.memory_space<vmem>>, %arg12: memref<64x512xf32, #tpu.memory_space<vmem>>, %arg13: memref<64x128xf32, #tpu.memory_space<vmem>>, %arg14: memref<64x128xf32, #tpu.memory_space<vmem>>) attributes {dimension_semantics = [], scalar_prefetch = 0 : i64, scratch_operands = 4 : i64, tpu.core_type = #tpu.core_type<tc>} {
    %c0 = arith.constant 0 : index
    %c0_0 = arith.constant 0 : index
    %0 = vector.load %arg0[%c0, %c0_0] : memref<64x32xf32, #tpu.memory_space<vmem>>, vector<64x32xf32>
    %c0_1 = arith.constant 0 : index
    %c0_2 = arith.constant 0 : index
    %1 = vector.load %arg1[%c0_1, %c0_2] : memref<32x512xf32, #tpu.memory_space<vmem>>, vector<32x512xf32>
    %cst = arith.constant dense<0.000000e+00> : vector<64x512xf32>
    %2 = tpu.matmul %0, %1, %cst {dimension_numbers = #tpu.dot_dimension_numbers<[1], [0], [0], [1], [0, 0, 1, 1], [], []>} : vector<64x32xf32>, vector<32x512xf32>, vector<64x512xf32> -> vector<64x512xf32>
    %c0_3 = arith.constant 0 : index
    %c0_4 = arith.constant 0 : index
    %3 = vector.load %arg3[%c0_3, %c0_4] : memref<1x512xf32, #tpu.memory_space<vmem>>, vector<1x512xf32>
    %4 = vector.broadcast %3 : vector<1x512xf32> to vector<64x512xf32>
    %5 = arith.addf %2, %4 : vector<64x512xf32>
    %c0_5 = arith.constant 0 : index
    %c0_6 = arith.constant 0 : index
    %6 = vector.load %arg11[%c0_5, %c0_6] : memref<64x512xf32, #tpu.memory_space<vmem>>, vector<64x512xf32>
    tpu.vector_store %arg11[%c0_5, %c0_6], %5 {strides = array<i32>} : memref<64x512xf32, #tpu.memory_space<vmem>>, vector<64x512xf32>,
    %c0_7 = arith.constant 0 : index
    %c0_8 = arith.constant 0 : index
    %7 = vector.load %arg4[%c0_7, %c0_8] : memref<32x512xf32, #tpu.memory_space<vmem>>, vector<32x512xf32>
    %cst_9 = arith.constant dense<0.000000e+00> : vector<64x512xf32>
    %8 = tpu.matmul %0, %7, %cst_9 {dimension_numbers = #tpu.dot_dimension_numbers<[1], [0], [0], [1], [0, 0, 1, 1], [], []>} : vector<64x32xf32>, vector<32x512xf32>, vector<64x512xf32> -> vector<64x512xf32>
    %c0_10 = arith.constant 0 : index
    %c0_11 = arith.constant 0 : index
    %9 = vector.load %arg6[%c0_10, %c0_11] : memref<1x512xf32, #tpu.memory_space<vmem>>, vector<1x512xf32>
    %10 = vector.broadcast %9 : vector<1x512xf32> to vector<64x512xf32>
    %11 = arith.addf %8, %10 : vector<64x512xf32>
    %c0_12 = arith.constant 0 : index
    %c0_13 = arith.constant 0 : index
    %12 = vector.load %arg12[%c0_12, %c0_13] : memref<64x512xf32, #tpu.memory_space<vmem>>, vector<64x512xf32>
    tpu.vector_store %arg12[%c0_12, %c0_13], %11 {strides = array<i32>} : memref<64x512xf32, #tpu.memory_space<vmem>>, vector<64x512xf32>,
    %c0_14 = arith.constant 0 : index
    %c0_15 = arith.constant 0 : index
    %13 = vector.load %arg2[%c0_14, %c0_15] : memref<128x512xf32, #tpu.memory_space<vmem>>, vector<128x512xf32>
    %c0_16 = arith.constant 0 : index
    %c0_17 = arith.constant 0 : index
    %14 = vector.load %arg5[%c0_16, %c0_17] : memref<128x512xf32, #tpu.memory_space<vmem>>, vector<128x512xf32>
    %cst_18 = arith.constant 0.000000e+00 : f32
    %15 = vector.broadcast %cst_18 : f32 to vector<8x128xf32>
    %c0_i32 = arith.constant 0 : i32
    %c8_i32 = arith.constant 8 : i32
    %16 = arith.muli %c0_i32, %c8_i32 : i32
    %17 = tpu.assume_multiple %16, 8 : i32
    %c7_i32 = arith.constant 7 : i32
    %18 = arith.subi %c7_i32, %c0_i32 : i32
    %c8_i32_19 = arith.constant 8 : i32
    %19 = arith.muli %18, %c8_i32_19 : i32
    %20 = tpu.assume_multiple %19, 8 : i32
    %21 = arith.index_cast %17 : i32 to index
    %c0_20 = arith.constant 0 : index
    %22 = vector.load %arg11[%21, %c0_20] : memref<64x512xf32, #tpu.memory_space<vmem>>, vector<8x512xf32>
    %cst_21 = arith.constant dense<0.000000e+00> : vector<8x512xf32>
    %23 = tpu.matmul %15, %13, %cst_21 {dimension_numbers = #tpu.dot_dimension_numbers<[1], [0], [0], [1], [0, 0, 1, 1], [], []>} : vector<8x128xf32>, vector<128x512xf32>, vector<8x512xf32> -> vector<8x512xf32>
    %24 = arith.addf %22, %23 : vector<8x512xf32>
    %25 = vector.extract_strided_slice %24 {offsets = [0, 0], sizes = [8, 128], strides = [1, 1]} : vector<8x512xf32> to vector<8x128xf32>
    %26 = arith.negf %25 : vector<8x128xf32>
    %27 = math.exp %26 : vector<8x128xf32>
    %cst_22 = arith.constant 1.000000e+00 : f32
    %28 = vector.broadcast %cst_22 : f32 to vector<8x128xf32>
    %29 = arith.addf %28, %27 : vector<8x128xf32>
    %30 = arith.divf %28, %29 : vector<8x128xf32>
    %31 = vector.extract_strided_slice %24 {offsets = [0, 128], sizes = [8, 128], strides = [1, 1]} : vector<8x512xf32> to vector<8x128xf32>
    %32 = arith.negf %31 : vector<8x128xf32>
    %33 = math.exp %32 : vector<8x128xf32>
    %cst_23 = arith.constant 1.000000e+00 : f32
    %34 = vector.broadcast %cst_23 : f32 to vector<8x128xf32>
    %35 = arith.addf %34, %33 : vector<8x128xf32>
    %36 = arith.divf %34, %35 : vector<8x128xf32>
    %37 = vector.extract_strided_slice %24 {offsets = [0, 256], sizes = [8, 128], strides = [1, 1]} : vector<8x512xf32> to vector<8x128xf32>
    %38 = math.tanh %37 : vector<8x128xf32>
    %39 = vector.extract_strided_slice %24 {offsets = [0, 384], sizes = [8, 128], strides = [1, 1]} : vector<8x512xf32> to vector<8x128xf32>
    %40 = arith.negf %39 : vector<8x128xf32>
    %41 = math.exp %40 : vector<8x128xf32>
    %cst_24 = arith.constant 1.000000e+00 : f32
    %42 = vector.broadcast %cst_24 : f32 to vector<8x128xf32>
    %43 = arith.addf %42, %41 : vector<8x128xf32>
    %44 = arith.divf %42, %43 : vector<8x128xf32>
    %45 = arith.mulf %36, %15 : vector<8x128xf32>
    %46 = arith.mulf %30, %38 : vector<8x128xf32>
    %47 = arith.addf %45, %46 : vector<8x128xf32>
    %48 = math.tanh %47 : vector<8x128xf32>
    %49 = arith.mulf %44, %48 : vector<8x128xf32>
    %50 = arith.index_cast %17 : i32 to index
    %c0_25 = arith.constant 0 : index
    %51 = vector.load %arg13[%50, %c0_25] : memref<64x128xf32, #tpu.memory_space<vmem>>, vector<8x128xf32>
    tpu.vector_store %arg13[%50, %c0_25], %49 {strides = array<i32>} : memref<64x128xf32, #tpu.memory_space<vmem>>, vector<8x128xf32>,
    %52 = arith.index_cast %20 : i32 to index
    %c0_26 = arith.constant 0 : index
    %53 = vector.load %arg12[%52, %c0_26] : memref<64x512xf32, #tpu.memory_space<vmem>>, vector<8x512xf32>
    %cst_27 = arith.constant dense<0.000000e+00> : vector<8x512xf32>
    %54 = tpu.matmul %15, %14, %cst_27 {dimension_numbers = #tpu.dot_dimension_numbers<[1], [0], [0], [1], [0, 0, 1, 1], [], []>} : vector<8x128xf32>, vector<128x512xf32>, vector<8x512xf32> -> vector<8x512xf32>
    %55 = arith.addf %53, %54 : vector<8x512xf32>
    %56 = vector.extract_strided_slice %55 {offsets = [0, 0], sizes = [8, 128], strides = [1, 1]} : vector<8x512xf32> to vector<8x128xf32>
    %57 = arith.negf %56 : vector<8x128xf32>
    %58 = math.exp %57 : vector<8x128xf32>
    %cst_28 = arith.constant 1.000000e+00 : f32
    %59 = vector.broadcast %cst_28 : f32 to vector<8x128xf32>
    %60 = arith.addf %59, %58 : vector<8x128xf32>
    %61 = arith.divf %59, %60 : vector<8x128xf32>
    %62 = vector.extract_strided_slice %55 {offsets = [0, 128], sizes = [8, 128], strides = [1, 1]} : vector<8x512xf32> to vector<8x128xf32>
    %63 = arith.negf %62 : vector<8x128xf32>
    %64 = math.exp %63 : vector<8x128xf32>
    %cst_29 = arith.constant 1.000000e+00 : f32
    %65 = vector.broadcast %cst_29 : f32 to vector<8x128xf32>
    %66 = arith.addf %65, %64 : vector<8x128xf32>
    %67 = arith.divf %65, %66 : vector<8x128xf32>
    %68 = vector.extract_strided_slice %55 {offsets = [0, 256], sizes = [8, 128], strides = [1, 1]} : vector<8x512xf32> to vector<8x128xf32>
    %69 = math.tanh %68 : vector<8x128xf32>
    %70 = vector.extract_strided_slice %55 {offsets = [0, 384], sizes = [8, 128], strides = [1, 1]} : vector<8x512xf32> to vector<8x128xf32>
    %71 = arith.negf %70 : vector<8x128xf32>
    %72 = math.exp %71 : vector<8x128xf32>
    %cst_30 = arith.constant 1.000000e+00 : f32
    %73 = vector.broadcast %cst_30 : f32 to vector<8x128xf32>
    %74 = arith.addf %73, %72 : vector<8x128xf32>
    %75 = arith.divf %73, %74 : vector<8x128xf32>
    %76 = arith.mulf %67, %15 : vector<8x128xf32>
    %77 = arith.mulf %61, %69 : vector<8x128xf32>
    %78 = arith.addf %76, %77 : vector<8x128xf32>
    %79 = math.tanh %78 : vector<8x128xf32>
    %80 = arith.mulf %75, %79 : vector<8x128xf32>
    %81 = arith.index_cast %20 : i32 to index
    %c0_31 = arith.constant 0 : index
    %82 = vector.load %arg14[%81, %c0_31] : memref<64x128xf32, #tpu.memory_space<vmem>>, vector<8x128xf32>
    tpu.vector_store %arg14[%81, %c0_31], %80 {strides = array<i32>} : memref<64x128xf32, #tpu.memory_space<vmem>>, vector<8x128xf32>,
    %c1_i32 = arith.constant 1 : i32
    %c8_i32_32 = arith.constant 8 : i32
    %83 = arith.muli %c1_i32, %c8_i32_32 : i32
    %84 = tpu.assume_multiple %83, 8 : i32
    %c7_i32_33 = arith.constant 7 : i32
    %85 = arith.subi %c7_i32_33, %c1_i32 : i32
    %c8_i32_34 = arith.constant 8 : i32
    %86 = arith.muli %85, %c8_i32_34 : i32
    %87 = tpu.assume_multiple %86, 8 : i32
    %88 = arith.index_cast %84 : i32 to index
    %c0_35 = arith.constant 0 : index
    %89 = vector.load %arg11[%88, %c0_35] : memref<64x512xf32, #tpu.memory_space<vmem>>, vector<8x512xf32>
    %cst_36 = arith.constant dense<0.000000e+00> : vector<8x512xf32>
    %90 = tpu.matmul %49, %13, %cst_36 {dimension_numbers = #tpu.dot_dimension_numbers<[1], [0], [0], [1], [0, 0, 1, 1], [], []>} : vector<8x128xf32>, vector<128x512xf32>, vector<8x512xf32> -> vector<8x512xf32>
    %91 = arith.addf %89, %90 : vector<8x512xf32>
    %92 = vector.extract_strided_slice %91 {offsets = [0, 0], sizes = [8, 128], strides = [1, 1]} : vector<8x512xf32> to vector<8x128xf32>
    %93 = arith.negf %92 : vector<8x128xf32>
    %94 = math.exp %93 : vector<8x128xf32>
    %cst_37 = arith.constant 1.000000e+00 : f32
    %95 = vector.broadcast %cst_37 : f32 to vector<8x128xf32>
    %96 = arith.addf %95, %94 : vector<8x128xf32>
    %97 = arith.divf %95, %96 : vector<8x128xf32>
    %98 = vector.extract_strided_slice %91 {offsets = [0, 128], sizes = [8, 128], strides = [1, 1]} : vector<8x512xf32> to vector<8x128xf32>
    %99 = arith.negf %98 : vector<8x128xf32>
    %100 = math.exp %99 : vector<8x128xf32>
    %cst_38 = arith.constant 1.000000e+00 : f32
    %101 = vector.broadcast %cst_38 : f32 to vector<8x128xf32>
    %102 = arith.addf %101, %100 : vector<8x128xf32>
    %103 = arith.divf %101, %102 : vector<8x128xf32>
    %104 = vector.extract_strided_slice %91 {offsets = [0, 256], sizes = [8, 128], strides = [1, 1]} : vector<8x512xf32> to vector<8x128xf32>
    %105 = math.tanh %104 : vector<8x128xf32>
    %106 = vector.extract_strided_slice %91 {offsets = [0, 384], sizes = [8, 128], strides = [1, 1]} : vector<8x512xf32> to vector<8x128xf32>
    %107 = arith.negf %106 : vector<8x128xf32>
    %108 = math.exp %107 : vector<8x128xf32>
    %cst_39 = arith.constant 1.000000e+00 : f32
    %109 = vector.broadcast %cst_39 : f32 to vector<8x128xf32>
    %110 = arith.addf %109, %108 : vector<8x128xf32>
    %111 = arith.divf %109, %110 : vector<8x128xf32>
    %112 = arith.mulf %103, %47 : vector<8x128xf32>
    %113 = arith.mulf %97, %105 : vector<8x128xf32>
    %114 = arith.addf %112, %113 : vector<8x128xf32>
    %115 = math.tanh %114 : vector<8x128xf32>
    %116 = arith.mulf %111, %115 : vector<8x128xf32>
    %117 = arith.index_cast %84 : i32 to index
    %c0_40 = arith.constant 0 : index
    %118 = vector.load %arg13[%117, %c0_40] : memref<64x128xf32, #tpu.memory_space<vmem>>, vector<8x128xf32>
    tpu.vector_store %arg13[%117, %c0_40], %116 {strides = array<i32>} : memref<64x128xf32, #tpu.memory_space<vmem>>, vector<8x128xf32>,
    %119 = arith.index_cast %87 : i32 to index
    %c0_41 = arith.constant 0 : index
    %120 = vector.load %arg12[%119, %c0_41] : memref<64x512xf32, #tpu.memory_space<vmem>>, vector<8x512xf32>
    %cst_42 = arith.constant dense<0.000000e+00> : vector<8x512xf32>
    %121 = tpu.matmul %80, %14, %cst_42 {dimension_numbers = #tpu.dot_dimension_numbers<[1], [0], [0], [1], [0, 0, 1, 1], [], []>} : vector<8x128xf32>, vector<128x512xf32>, vector<8x512xf32> -> vector<8x512xf32>
    %122 = arith.addf %120, %121 : vector<8x512xf32>
    %123 = vector.extract_strided_slice %122 {offsets = [0, 0], sizes = [8, 128], strides = [1, 1]} : vector<8x512xf32> to vector<8x128xf32>
    %124 = arith.negf %123 : vector<8x128xf32>
    %125 = math.exp %124 : vector<8x128xf32>
    %cst_43 = arith.constant 1.000000e+00 : f32
    %126 = vector.broadcast %cst_43 : f32 to vector<8x128xf32>
    %127 = arith.addf %126, %125 : vector<8x128xf32>
    %128 = arith.divf %126, %127 : vector<8x128xf32>
    %129 = vector.extract_strided_slice %122 {offsets = [0, 128], sizes = [8, 128], strides = [1, 1]} : vector<8x512xf32> to vector<8x128xf32>
    %130 = arith.negf %129 : vector<8x128xf32>
    %131 = math.exp %130 : vector<8x128xf32>
    %cst_44 = arith.constant 1.000000e+00 : f32
    %132 = vector.broadcast %cst_44 : f32 to vector<8x128xf32>
    %133 = arith.addf %132, %131 : vector<8x128xf32>
    %134 = arith.divf %132, %133 : vector<8x128xf32>
    %135 = vector.extract_strided_slice %122 {offsets = [0, 256], sizes = [8, 128], strides = [1, 1]} : vector<8x512xf32> to vector<8x128xf32>
    %136 = math.tanh %135 : vector<8x128xf32>
    %137 = vector.extract_strided_slice %122 {offsets = [0, 384], sizes = [8, 128], strides = [1, 1]} : vector<8x512xf32> to vector<8x128xf32>
    %138 = arith.negf %137 : vector<8x128xf32>
    %139 = math.exp %138 : vector<8x128xf32>
    %cst_45 = arith.constant 1.000000e+00 : f32
    %140 = vector.broadcast %cst_45 : f32 to vector<8x128xf32>
    %141 = arith.addf %140, %139 : vector<8x128xf32>
    %142 = arith.divf %140, %141 : vector<8x128xf32>
    %143 = arith.mulf %134, %78 : vector<8x128xf32>
    %144 = arith.mulf %128, %136 : vector<8x128xf32>
    %145 = arith.addf %143, %144 : vector<8x128xf32>
    %146 = math.tanh %145 : vector<8x128xf32>
    %147 = arith.mulf %142, %146 : vector<8x128xf32>
    %148 = arith.index_cast %87 : i32 to index
    %c0_46 = arith.constant 0 : index
    %149 = vector.load %arg14[%148, %c0_46] : memref<64x128xf32, #tpu.memory_space<vmem>>, vector<8x128xf32>
    tpu.vector_store %arg14[%148, %c0_46], %147 {strides = array<i32>} : memref<64x128xf32, #tpu.memory_space<vmem>>, vector<8x128xf32>,
    %c2_i32 = arith.constant 2 : i32
    %c8_i32_47 = arith.constant 8 : i32
    %150 = arith.muli %c2_i32, %c8_i32_47 : i32
    %151 = tpu.assume_multiple %150, 8 : i32
    %c7_i32_48 = arith.constant 7 : i32
    %152 = arith.subi %c7_i32_48, %c2_i32 : i32
    %c8_i32_49 = arith.constant 8 : i32
    %153 = arith.muli %152, %c8_i32_49 : i32
    %154 = tpu.assume_multiple %153, 8 : i32
    %155 = arith.index_cast %151 : i32 to index
    %c0_50 = arith.constant 0 : index
    %156 = vector.load %arg11[%155, %c0_50] : memref<64x512xf32, #tpu.memory_space<vmem>>, vector<8x512xf32>
    %cst_51 = arith.constant dense<0.000000e+00> : vector<8x512xf32>
    %157 = tpu.matmul %116, %13, %cst_51 {dimension_numbers = #tpu.dot_dimension_numbers<[1], [0], [0], [1], [0, 0, 1, 1], [], []>} : vector<8x128xf32>, vector<128x512xf32>, vector<8x512xf32> -> vector<8x512xf32>
    %158 = arith.addf %156, %157 : vector<8x512xf32>
    %159 = vector.extract_strided_slice %158 {offsets = [0, 0], sizes = [8, 128], strides = [1, 1]} : vector<8x512xf32> to vector<8x128xf32>
    %160 = arith.negf %159 : vector<8x128xf32>
    %161 = math.exp %160 : vector<8x128xf32>
    %cst_52 = arith.constant 1.000000e+00 : f32
    %162 = vector.broadcast %cst_52 : f32 to vector<8x128xf32>
    %163 = arith.addf %162, %161 : vector<8x128xf32>
    %164 = arith.divf %162, %163 : vector<8x128xf32>
    %165 = vector.extract_strided_slice %158 {offsets = [0, 128], sizes = [8, 128], strides = [1, 1]} : vector<8x512xf32> to vector<8x128xf32>
    %166 = arith.negf %165 : vector<8x128xf32>
    %167 = math.exp %166 : vector<8x128xf32>
    %cst_53 = arith.constant 1.000000e+00 : f32
    %168 = vector.broadcast %cst_53 : f32 to vector<8x128xf32>
    %169 = arith.addf %168, %167 : vector<8x128xf32>
    %170 = arith.divf %168, %169 : vector<8x128xf32>
    %171 = vector.extract_strided_slice %158 {offsets = [0, 256], sizes = [8, 128], strides = [1, 1]} : vector<8x512xf32> to vector<8x128xf32>
    %172 = math.tanh %171 : vector<8x128xf32>
    %173 = vector.extract_strided_slice %158 {offsets = [0, 384], sizes = [8, 128], strides = [1, 1]} : vector<8x512xf32> to vector<8x128xf32>
    %174 = arith.negf %173 : vector<8x128xf32>
    %175 = math.exp %174 : vector<8x128xf32>
    %cst_54 = arith.constant 1.000000e+00 : f32
    %176 = vector.broadcast %cst_54 : f32 to vector<8x128xf32>
    %177 = arith.addf %176, %175 : vector<8x128xf32>
    %178 = arith.divf %176, %177 : vector<8x128xf32>
    %179 = arith.mulf %170, %114 : vector<8x128xf32>
    %180 = arith.mulf %164, %172 : vector<8x128xf32>
    %181 = arith.addf %179, %180 : vector<8x128xf32>
    %182 = math.tanh %181 : vector<8x128xf32>
    %183 = arith.mulf %178, %182 : vector<8x128xf32>
    %184 = arith.index_cast %151 : i32 to index
    %c0_55 = arith.constant 0 : index
    %185 = vector.load %arg13[%184, %c0_55] : memref<64x128xf32, #tpu.memory_space<vmem>>, vector<8x128xf32>
    tpu.vector_store %arg13[%184, %c0_55], %183 {strides = array<i32>} : memref<64x128xf32, #tpu.memory_space<vmem>>, vector<8x128xf32>,
    %186 = arith.index_cast %154 : i32 to index
    %c0_56 = arith.constant 0 : index
    %187 = vector.load %arg12[%186, %c0_56] : memref<64x512xf32, #tpu.memory_space<vmem>>, vector<8x512xf32>
    %cst_57 = arith.constant dense<0.000000e+00> : vector<8x512xf32>
    %188 = tpu.matmul %147, %14, %cst_57 {dimension_numbers = #tpu.dot_dimension_numbers<[1], [0], [0], [1], [0, 0, 1, 1], [], []>} : vector<8x128xf32>, vector<128x512xf32>, vector<8x512xf32> -> vector<8x512xf32>
    %189 = arith.addf %187, %188 : vector<8x512xf32>
    %190 = vector.extract_strided_slice %189 {offsets = [0, 0], sizes = [8, 128], strides = [1, 1]} : vector<8x512xf32> to vector<8x128xf32>
    %191 = arith.negf %190 : vector<8x128xf32>
    %192 = math.exp %191 : vector<8x128xf32>
    %cst_58 = arith.constant 1.000000e+00 : f32
    %193 = vector.broadcast %cst_58 : f32 to vector<8x128xf32>
    %194 = arith.addf %193, %192 : vector<8x128xf32>
    %195 = arith.divf %193, %194 : vector<8x128xf32>
    %196 = vector.extract_strided_slice %189 {offsets = [0, 128], sizes = [8, 128], strides = [1, 1]} : vector<8x512xf32> to vector<8x128xf32>
    %197 = arith.negf %196 : vector<8x128xf32>
    %198 = math.exp %197 : vector<8x128xf32>
    %cst_59 = arith.constant 1.000000e+00 : f32
    %199 = vector.broadcast %cst_59 : f32 to vector<8x128xf32>
    %200 = arith.addf %199, %198 : vector<8x128xf32>
    %201 = arith.divf %199, %200 : vector<8x128xf32>
    %202 = vector.extract_strided_slice %189 {offsets = [0, 256], sizes = [8, 128], strides = [1, 1]} : vector<8x512xf32> to vector<8x128xf32>
    %203 = math.tanh %202 : vector<8x128xf32>
    %204 = vector.extract_strided_slice %189 {offsets = [0, 384], sizes = [8, 128], strides = [1, 1]} : vector<8x512xf32> to vector<8x128xf32>
    %205 = arith.negf %204 : vector<8x128xf32>
    %206 = math.exp %205 : vector<8x128xf32>
    %cst_60 = arith.constant 1.000000e+00 : f32
    %207 = vector.broadcast %cst_60 : f32 to vector<8x128xf32>
    %208 = arith.addf %207, %206 : vector<8x128xf32>
    %209 = arith.divf %207, %208 : vector<8x128xf32>
    %210 = arith.mulf %201, %145 : vector<8x128xf32>
    %211 = arith.mulf %195, %203 : vector<8x128xf32>
    %212 = arith.addf %210, %211 : vector<8x128xf32>
    %213 = math.tanh %212 : vector<8x128xf32>
    %214 = arith.mulf %209, %213 : vector<8x128xf32>
    %215 = arith.index_cast %154 : i32 to index
    %c0_61 = arith.constant 0 : index
    %216 = vector.load %arg14[%215, %c0_61] : memref<64x128xf32, #tpu.memory_space<vmem>>, vector<8x128xf32>
    tpu.vector_store %arg14[%215, %c0_61], %214 {strides = array<i32>} : memref<64x128xf32, #tpu.memory_space<vmem>>, vector<8x128xf32>,
    %c3_i32 = arith.constant 3 : i32
    %c8_i32_62 = arith.constant 8 : i32
    %217 = arith.muli %c3_i32, %c8_i32_62 : i32
    %218 = tpu.assume_multiple %217, 8 : i32
    %c7_i32_63 = arith.constant 7 : i32
    %219 = arith.subi %c7_i32_63, %c3_i32 : i32
    %c8_i32_64 = arith.constant 8 : i32
    %220 = arith.muli %219, %c8_i32_64 : i32
    %221 = tpu.assume_multiple %220, 8 : i32
    %222 = arith.index_cast %218 : i32 to index
    %c0_65 = arith.constant 0 : index
    %223 = vector.load %arg11[%222, %c0_65] : memref<64x512xf32, #tpu.memory_space<vmem>>, vector<8x512xf32>
    %cst_66 = arith.constant dense<0.000000e+00> : vector<8x512xf32>
    %224 = tpu.matmul %183, %13, %cst_66 {dimension_numbers = #tpu.dot_dimension_numbers<[1], [0], [0], [1], [0, 0, 1, 1], [], []>} : vector<8x128xf32>, vector<128x512xf32>, vector<8x512xf32> -> vector<8x512xf32>
    %225 = arith.addf %223, %224 : vector<8x512xf32>
    %226 = vector.extract_strided_slice %225 {offsets = [0, 0], sizes = [8, 128], strides = [1, 1]} : vector<8x512xf32> to vector<8x128xf32>
    %227 = arith.negf %226 : vector<8x128xf32>
    %228 = math.exp %227 : vector<8x128xf32>
    %cst_67 = arith.constant 1.000000e+00 : f32
    %229 = vector.broadcast %cst_67 : f32 to vector<8x128xf32>
    %230 = arith.addf %229, %228 : vector<8x128xf32>
    %231 = arith.divf %229, %230 : vector<8x128xf32>
    %232 = vector.extract_strided_slice %225 {offsets = [0, 128], sizes = [8, 128], strides = [1, 1]} : vector<8x512xf32> to vector<8x128xf32>
    %233 = arith.negf %232 : vector<8x128xf32>
    %234 = math.exp %233 : vector<8x128xf32>
    %cst_68 = arith.constant 1.000000e+00 : f32
    %235 = vector.broadcast %cst_68 : f32 to vector<8x128xf32>
    %236 = arith.addf %235, %234 : vector<8x128xf32>
    %237 = arith.divf %235, %236 : vector<8x128xf32>
    %238 = vector.extract_strided_slice %225 {offsets = [0, 256], sizes = [8, 128], strides = [1, 1]} : vector<8x512xf32> to vector<8x128xf32>
    %239 = math.tanh %238 : vector<8x128xf32>
    %240 = vector.extract_strided_slice %225 {offsets = [0, 384], sizes = [8, 128], strides = [1, 1]} : vector<8x512xf32> to vector<8x128xf32>
    %241 = arith.negf %240 : vector<8x128xf32>
    %242 = math.exp %241 : vector<8x128xf32>
    %cst_69 = arith.constant 1.000000e+00 : f32
    %243 = vector.broadcast %cst_69 : f32 to vector<8x128xf32>
    %244 = arith.addf %243, %242 : vector<8x128xf32>
    %245 = arith.divf %243, %244 : vector<8x128xf32>
    %246 = arith.mulf %237, %181 : vector<8x128xf32>
    %247 = arith.mulf %231, %239 : vector<8x128xf32>
    %248 = arith.addf %246, %247 : vector<8x128xf32>
    %249 = math.tanh %248 : vector<8x128xf32>
    %250 = arith.mulf %245, %249 : vector<8x128xf32>
    %251 = arith.index_cast %218 : i32 to index
    %c0_70 = arith.constant 0 : index
    %252 = vector.load %arg13[%251, %c0_70] : memref<64x128xf32, #tpu.memory_space<vmem>>, vector<8x128xf32>
    tpu.vector_store %arg13[%251, %c0_70], %250 {strides = array<i32>} : memref<64x128xf32, #tpu.memory_space<vmem>>, vector<8x128xf32>,
    %253 = arith.index_cast %221 : i32 to index
    %c0_71 = arith.constant 0 : index
    %254 = vector.load %arg12[%253, %c0_71] : memref<64x512xf32, #tpu.memory_space<vmem>>, vector<8x512xf32>
    %cst_72 = arith.constant dense<0.000000e+00> : vector<8x512xf32>
    %255 = tpu.matmul %214, %14, %cst_72 {dimension_numbers = #tpu.dot_dimension_numbers<[1], [0], [0], [1], [0, 0, 1, 1], [], []>} : vector<8x128xf32>, vector<128x512xf32>, vector<8x512xf32> -> vector<8x512xf32>
    %256 = arith.addf %254, %255 : vector<8x512xf32>
    %257 = vector.extract_strided_slice %256 {offsets = [0, 0], sizes = [8, 128], strides = [1, 1]} : vector<8x512xf32> to vector<8x128xf32>
    %258 = arith.negf %257 : vector<8x128xf32>
    %259 = math.exp %258 : vector<8x128xf32>
    %cst_73 = arith.constant 1.000000e+00 : f32
    %260 = vector.broadcast %cst_73 : f32 to vector<8x128xf32>
    %261 = arith.addf %260, %259 : vector<8x128xf32>
    %262 = arith.divf %260, %261 : vector<8x128xf32>
    %263 = vector.extract_strided_slice %256 {offsets = [0, 128], sizes = [8, 128], strides = [1, 1]} : vector<8x512xf32> to vector<8x128xf32>
    %264 = arith.negf %263 : vector<8x128xf32>
    %265 = math.exp %264 : vector<8x128xf32>
    %cst_74 = arith.constant 1.000000e+00 : f32
    %266 = vector.broadcast %cst_74 : f32 to vector<8x128xf32>
    %267 = arith.addf %266, %265 : vector<8x128xf32>
    %268 = arith.divf %266, %267 : vector<8x128xf32>
    %269 = vector.extract_strided_slice %256 {offsets = [0, 256], sizes = [8, 128], strides = [1, 1]} : vector<8x512xf32> to vector<8x128xf32>
    %270 = math.tanh %269 : vector<8x128xf32>
    %271 = vector.extract_strided_slice %256 {offsets = [0, 384], sizes = [8, 128], strides = [1, 1]} : vector<8x512xf32> to vector<8x128xf32>
    %272 = arith.negf %271 : vector<8x128xf32>
    %273 = math.exp %272 : vector<8x128xf32>
    %cst_75 = arith.constant 1.000000e+00 : f32
    %274 = vector.broadcast %cst_75 : f32 to vector<8x128xf32>
    %275 = arith.addf %274, %273 : vector<8x128xf32>
    %276 = arith.divf %274, %275 : vector<8x128xf32>
    %277 = arith.mulf %268, %212 : vector<8x128xf32>
    %278 = arith.mulf %262, %270 : vector<8x128xf32>
    %279 = arith.addf %277, %278 : vector<8x128xf32>
    %280 = math.tanh %279 : vector<8x128xf32>
    %281 = arith.mulf %276, %280 : vector<8x128xf32>
    %282 = arith.index_cast %221 : i32 to index
    %c0_76 = arith.constant 0 : index
    %283 = vector.load %arg14[%282, %c0_76] : memref<64x128xf32, #tpu.memory_space<vmem>>, vector<8x128xf32>
    tpu.vector_store %arg14[%282, %c0_76], %281 {strides = array<i32>} : memref<64x128xf32, #tpu.memory_space<vmem>>, vector<8x128xf32>,
    %c4_i32 = arith.constant 4 : i32
    %c8_i32_77 = arith.constant 8 : i32
    %284 = arith.muli %c4_i32, %c8_i32_77 : i32
    %285 = tpu.assume_multiple %284, 8 : i32
    %c7_i32_78 = arith.constant 7 : i32
    %286 = arith.subi %c7_i32_78, %c4_i32 : i32
    %c8_i32_79 = arith.constant 8 : i32
    %287 = arith.muli %286, %c8_i32_79 : i32
    %288 = tpu.assume_multiple %287, 8 : i32
    %289 = arith.index_cast %285 : i32 to index
    %c0_80 = arith.constant 0 : index
    %290 = vector.load %arg11[%289, %c0_80] : memref<64x512xf32, #tpu.memory_space<vmem>>, vector<8x512xf32>
    %cst_81 = arith.constant dense<0.000000e+00> : vector<8x512xf32>
    %291 = tpu.matmul %250, %13, %cst_81 {dimension_numbers = #tpu.dot_dimension_numbers<[1], [0], [0], [1], [0, 0, 1, 1], [], []>} : vector<8x128xf32>, vector<128x512xf32>, vector<8x512xf32> -> vector<8x512xf32>
    %292 = arith.addf %290, %291 : vector<8x512xf32>
    %293 = vector.extract_strided_slice %292 {offsets = [0, 0], sizes = [8, 128], strides = [1, 1]} : vector<8x512xf32> to vector<8x128xf32>
    %294 = arith.negf %293 : vector<8x128xf32>
    %295 = math.exp %294 : vector<8x128xf32>
    %cst_82 = arith.constant 1.000000e+00 : f32
    %296 = vector.broadcast %cst_82 : f32 to vector<8x128xf32>
    %297 = arith.addf %296, %295 : vector<8x128xf32>
    %298 = arith.divf %296, %297 : vector<8x128xf32>
    %299 = vector.extract_strided_slice %292 {offsets = [0, 128], sizes = [8, 128], strides = [1, 1]} : vector<8x512xf32> to vector<8x128xf32>
    %300 = arith.negf %299 : vector<8x128xf32>
    %301 = math.exp %300 : vector<8x128xf32>
    %cst_83 = arith.constant 1.000000e+00 : f32
    %302 = vector.broadcast %cst_83 : f32 to vector<8x128xf32>
    %303 = arith.addf %302, %301 : vector<8x128xf32>
    %304 = arith.divf %302, %303 : vector<8x128xf32>
    %305 = vector.extract_strided_slice %292 {offsets = [0, 256], sizes = [8, 128], strides = [1, 1]} : vector<8x512xf32> to vector<8x128xf32>
    %306 = math.tanh %305 : vector<8x128xf32>
    %307 = vector.extract_strided_slice %292 {offsets = [0, 384], sizes = [8, 128], strides = [1, 1]} : vector<8x512xf32> to vector<8x128xf32>
    %308 = arith.negf %307 : vector<8x128xf32>
    %309 = math.exp %308 : vector<8x128xf32>
    %cst_84 = arith.constant 1.000000e+00 : f32
    %310 = vector.broadcast %cst_84 : f32 to vector<8x128xf32>
    %311 = arith.addf %310, %309 : vector<8x128xf32>
    %312 = arith.divf %310, %311 : vector<8x128xf32>
    %313 = arith.mulf %304, %248 : vector<8x128xf32>
    %314 = arith.mulf %298, %306 : vector<8x128xf32>
    %315 = arith.addf %313, %314 : vector<8x128xf32>
    %316 = math.tanh %315 : vector<8x128xf32>
    %317 = arith.mulf %312, %316 : vector<8x128xf32>
    %318 = arith.index_cast %285 : i32 to index
    %c0_85 = arith.constant 0 : index
    %319 = vector.load %arg13[%318, %c0_85] : memref<64x128xf32, #tpu.memory_space<vmem>>, vector<8x128xf32>
    tpu.vector_store %arg13[%318, %c0_85], %317 {strides = array<i32>} : memref<64x128xf32, #tpu.memory_space<vmem>>, vector<8x128xf32>,
    %320 = arith.index_cast %288 : i32 to index
    %c0_86 = arith.constant 0 : index
    %321 = vector.load %arg12[%320, %c0_86] : memref<64x512xf32, #tpu.memory_space<vmem>>, vector<8x512xf32>
    %cst_87 = arith.constant dense<0.000000e+00> : vector<8x512xf32>
    %322 = tpu.matmul %281, %14, %cst_87 {dimension_numbers = #tpu.dot_dimension_numbers<[1], [0], [0], [1], [0, 0, 1, 1], [], []>} : vector<8x128xf32>, vector<128x512xf32>, vector<8x512xf32> -> vector<8x512xf32>
    %323 = arith.addf %321, %322 : vector<8x512xf32>
    %324 = vector.extract_strided_slice %323 {offsets = [0, 0], sizes = [8, 128], strides = [1, 1]} : vector<8x512xf32> to vector<8x128xf32>
    %325 = arith.negf %324 : vector<8x128xf32>
    %326 = math.exp %325 : vector<8x128xf32>
    %cst_88 = arith.constant 1.000000e+00 : f32
    %327 = vector.broadcast %cst_88 : f32 to vector<8x128xf32>
    %328 = arith.addf %327, %326 : vector<8x128xf32>
    %329 = arith.divf %327, %328 : vector<8x128xf32>
    %330 = vector.extract_strided_slice %323 {offsets = [0, 128], sizes = [8, 128], strides = [1, 1]} : vector<8x512xf32> to vector<8x128xf32>
    %331 = arith.negf %330 : vector<8x128xf32>
    %332 = math.exp %331 : vector<8x128xf32>
    %cst_89 = arith.constant 1.000000e+00 : f32
    %333 = vector.broadcast %cst_89 : f32 to vector<8x128xf32>
    %334 = arith.addf %333, %332 : vector<8x128xf32>
    %335 = arith.divf %333, %334 : vector<8x128xf32>
    %336 = vector.extract_strided_slice %323 {offsets = [0, 256], sizes = [8, 128], strides = [1, 1]} : vector<8x512xf32> to vector<8x128xf32>
    %337 = math.tanh %336 : vector<8x128xf32>
    %338 = vector.extract_strided_slice %323 {offsets = [0, 384], sizes = [8, 128], strides = [1, 1]} : vector<8x512xf32> to vector<8x128xf32>
    %339 = arith.negf %338 : vector<8x128xf32>
    %340 = math.exp %339 : vector<8x128xf32>
    %cst_90 = arith.constant 1.000000e+00 : f32
    %341 = vector.broadcast %cst_90 : f32 to vector<8x128xf32>
    %342 = arith.addf %341, %340 : vector<8x128xf32>
    %343 = arith.divf %341, %342 : vector<8x128xf32>
    %344 = arith.mulf %335, %279 : vector<8x128xf32>
    %345 = arith.mulf %329, %337 : vector<8x128xf32>
    %346 = arith.addf %344, %345 : vector<8x128xf32>
    %347 = math.tanh %346 : vector<8x128xf32>
    %348 = arith.mulf %343, %347 : vector<8x128xf32>
    %349 = arith.index_cast %288 : i32 to index
    %c0_91 = arith.constant 0 : index
    %350 = vector.load %arg14[%349, %c0_91] : memref<64x128xf32, #tpu.memory_space<vmem>>, vector<8x128xf32>
    tpu.vector_store %arg14[%349, %c0_91], %348 {strides = array<i32>} : memref<64x128xf32, #tpu.memory_space<vmem>>, vector<8x128xf32>,
    %c5_i32 = arith.constant 5 : i32
    %c8_i32_92 = arith.constant 8 : i32
    %351 = arith.muli %c5_i32, %c8_i32_92 : i32
    %352 = tpu.assume_multiple %351, 8 : i32
    %c7_i32_93 = arith.constant 7 : i32
    %353 = arith.subi %c7_i32_93, %c5_i32 : i32
    %c8_i32_94 = arith.constant 8 : i32
    %354 = arith.muli %353, %c8_i32_94 : i32
    %355 = tpu.assume_multiple %354, 8 : i32
    %356 = arith.index_cast %352 : i32 to index
    %c0_95 = arith.constant 0 : index
    %357 = vector.load %arg11[%356, %c0_95] : memref<64x512xf32, #tpu.memory_space<vmem>>, vector<8x512xf32>
    %cst_96 = arith.constant dense<0.000000e+00> : vector<8x512xf32>
    %358 = tpu.matmul %317, %13, %cst_96 {dimension_numbers = #tpu.dot_dimension_numbers<[1], [0], [0], [1], [0, 0, 1, 1], [], []>} : vector<8x128xf32>, vector<128x512xf32>, vector<8x512xf32> -> vector<8x512xf32>
    %359 = arith.addf %357, %358 : vector<8x512xf32>
    %360 = vector.extract_strided_slice %359 {offsets = [0, 0], sizes = [8, 128], strides = [1, 1]} : vector<8x512xf32> to vector<8x128xf32>
    %361 = arith.negf %360 : vector<8x128xf32>
    %362 = math.exp %361 : vector<8x128xf32>
    %cst_97 = arith.constant 1.000000e+00 : f32
    %363 = vector.broadcast %cst_97 : f32 to vector<8x128xf32>
    %364 = arith.addf %363, %362 : vector<8x128xf32>
    %365 = arith.divf %363, %364 : vector<8x128xf32>
    %366 = vector.extract_strided_slice %359 {offsets = [0, 128], sizes = [8, 128], strides = [1, 1]} : vector<8x512xf32> to vector<8x128xf32>
    %367 = arith.negf %366 : vector<8x128xf32>
    %368 = math.exp %367 : vector<8x128xf32>
    %cst_98 = arith.constant 1.000000e+00 : f32
    %369 = vector.broadcast %cst_98 : f32 to vector<8x128xf32>
    %370 = arith.addf %369, %368 : vector<8x128xf32>
    %371 = arith.divf %369, %370 : vector<8x128xf32>
    %372 = vector.extract_strided_slice %359 {offsets = [0, 256], sizes = [8, 128], strides = [1, 1]} : vector<8x512xf32> to vector<8x128xf32>
    %373 = math.tanh %372 : vector<8x128xf32>
    %374 = vector.extract_strided_slice %359 {offsets = [0, 384], sizes = [8, 128], strides = [1, 1]} : vector<8x512xf32> to vector<8x128xf32>
    %375 = arith.negf %374 : vector<8x128xf32>
    %376 = math.exp %375 : vector<8x128xf32>
    %cst_99 = arith.constant 1.000000e+00 : f32
    %377 = vector.broadcast %cst_99 : f32 to vector<8x128xf32>
    %378 = arith.addf %377, %376 : vector<8x128xf32>
    %379 = arith.divf %377, %378 : vector<8x128xf32>
    %380 = arith.mulf %371, %315 : vector<8x128xf32>
    %381 = arith.mulf %365, %373 : vector<8x128xf32>
    %382 = arith.addf %380, %381 : vector<8x128xf32>
    %383 = math.tanh %382 : vector<8x128xf32>
    %384 = arith.mulf %379, %383 : vector<8x128xf32>
    %385 = arith.index_cast %352 : i32 to index
    %c0_100 = arith.constant 0 : index
    %386 = vector.load %arg13[%385, %c0_100] : memref<64x128xf32, #tpu.memory_space<vmem>>, vector<8x128xf32>
    tpu.vector_store %arg13[%385, %c0_100], %384 {strides = array<i32>} : memref<64x128xf32, #tpu.memory_space<vmem>>, vector<8x128xf32>,
    %387 = arith.index_cast %355 : i32 to index
    %c0_101 = arith.constant 0 : index
    %388 = vector.load %arg12[%387, %c0_101] : memref<64x512xf32, #tpu.memory_space<vmem>>, vector<8x512xf32>
    %cst_102 = arith.constant dense<0.000000e+00> : vector<8x512xf32>
    %389 = tpu.matmul %348, %14, %cst_102 {dimension_numbers = #tpu.dot_dimension_numbers<[1], [0], [0], [1], [0, 0, 1, 1], [], []>} : vector<8x128xf32>, vector<128x512xf32>, vector<8x512xf32> -> vector<8x512xf32>
    %390 = arith.addf %388, %389 : vector<8x512xf32>
    %391 = vector.extract_strided_slice %390 {offsets = [0, 0], sizes = [8, 128], strides = [1, 1]} : vector<8x512xf32> to vector<8x128xf32>
    %392 = arith.negf %391 : vector<8x128xf32>
    %393 = math.exp %392 : vector<8x128xf32>
    %cst_103 = arith.constant 1.000000e+00 : f32
    %394 = vector.broadcast %cst_103 : f32 to vector<8x128xf32>
    %395 = arith.addf %394, %393 : vector<8x128xf32>
    %396 = arith.divf %394, %395 : vector<8x128xf32>
    %397 = vector.extract_strided_slice %390 {offsets = [0, 128], sizes = [8, 128], strides = [1, 1]} : vector<8x512xf32> to vector<8x128xf32>
    %398 = arith.negf %397 : vector<8x128xf32>
    %399 = math.exp %398 : vector<8x128xf32>
    %cst_104 = arith.constant 1.000000e+00 : f32
    %400 = vector.broadcast %cst_104 : f32 to vector<8x128xf32>
    %401 = arith.addf %400, %399 : vector<8x128xf32>
    %402 = arith.divf %400, %401 : vector<8x128xf32>
    %403 = vector.extract_strided_slice %390 {offsets = [0, 256], sizes = [8, 128], strides = [1, 1]} : vector<8x512xf32> to vector<8x128xf32>
    %404 = math.tanh %403 : vector<8x128xf32>
    %405 = vector.extract_strided_slice %390 {offsets = [0, 384], sizes = [8, 128], strides = [1, 1]} : vector<8x512xf32> to vector<8x128xf32>
    %406 = arith.negf %405 : vector<8x128xf32>
    %407 = math.exp %406 : vector<8x128xf32>
    %cst_105 = arith.constant 1.000000e+00 : f32
    %408 = vector.broadcast %cst_105 : f32 to vector<8x128xf32>
    %409 = arith.addf %408, %407 : vector<8x128xf32>
    %410 = arith.divf %408, %409 : vector<8x128xf32>
    %411 = arith.mulf %402, %346 : vector<8x128xf32>
    %412 = arith.mulf %396, %404 : vector<8x128xf32>
    %413 = arith.addf %411, %412 : vector<8x128xf32>
    %414 = math.tanh %413 : vector<8x128xf32>
    %415 = arith.mulf %410, %414 : vector<8x128xf32>
    %416 = arith.index_cast %355 : i32 to index
    %c0_106 = arith.constant 0 : index
    %417 = vector.load %arg14[%416, %c0_106] : memref<64x128xf32, #tpu.memory_space<vmem>>, vector<8x128xf32>
    tpu.vector_store %arg14[%416, %c0_106], %415 {strides = array<i32>} : memref<64x128xf32, #tpu.memory_space<vmem>>, vector<8x128xf32>,
    %c6_i32 = arith.constant 6 : i32
    %c8_i32_107 = arith.constant 8 : i32
    %418 = arith.muli %c6_i32, %c8_i32_107 : i32
    %419 = tpu.assume_multiple %418, 8 : i32
    %c7_i32_108 = arith.constant 7 : i32
    %420 = arith.subi %c7_i32_108, %c6_i32 : i32
    %c8_i32_109 = arith.constant 8 : i32
    %421 = arith.muli %420, %c8_i32_109 : i32
    %422 = tpu.assume_multiple %421, 8 : i32
    %423 = arith.index_cast %419 : i32 to index
    %c0_110 = arith.constant 0 : index
    %424 = vector.load %arg11[%423, %c0_110] : memref<64x512xf32, #tpu.memory_space<vmem>>, vector<8x512xf32>
    %cst_111 = arith.constant dense<0.000000e+00> : vector<8x512xf32>
    %425 = tpu.matmul %384, %13, %cst_111 {dimension_numbers = #tpu.dot_dimension_numbers<[1], [0], [0], [1], [0, 0, 1, 1], [], []>} : vector<8x128xf32>, vector<128x512xf32>, vector<8x512xf32> -> vector<8x512xf32>
    %426 = arith.addf %424, %425 : vector<8x512xf32>
    %427 = vector.extract_strided_slice %426 {offsets = [0, 0], sizes = [8, 128], strides = [1, 1]} : vector<8x512xf32> to vector<8x128xf32>
    %428 = arith.negf %427 : vector<8x128xf32>
    %429 = math.exp %428 : vector<8x128xf32>
    %cst_112 = arith.constant 1.000000e+00 : f32
    %430 = vector.broadcast %cst_112 : f32 to vector<8x128xf32>
    %431 = arith.addf %430, %429 : vector<8x128xf32>
    %432 = arith.divf %430, %431 : vector<8x128xf32>
    %433 = vector.extract_strided_slice %426 {offsets = [0, 128], sizes = [8, 128], strides = [1, 1]} : vector<8x512xf32> to vector<8x128xf32>
    %434 = arith.negf %433 : vector<8x128xf32>
    %435 = math.exp %434 : vector<8x128xf32>
    %cst_113 = arith.constant 1.000000e+00 : f32
    %436 = vector.broadcast %cst_113 : f32 to vector<8x128xf32>
    %437 = arith.addf %436, %435 : vector<8x128xf32>
    %438 = arith.divf %436, %437 : vector<8x128xf32>
    %439 = vector.extract_strided_slice %426 {offsets = [0, 256], sizes = [8, 128], strides = [1, 1]} : vector<8x512xf32> to vector<8x128xf32>
    %440 = math.tanh %439 : vector<8x128xf32>
    %441 = vector.extract_strided_slice %426 {offsets = [0, 384], sizes = [8, 128], strides = [1, 1]} : vector<8x512xf32> to vector<8x128xf32>
    %442 = arith.negf %441 : vector<8x128xf32>
    %443 = math.exp %442 : vector<8x128xf32>
    %cst_114 = arith.constant 1.000000e+00 : f32
    %444 = vector.broadcast %cst_114 : f32 to vector<8x128xf32>
    %445 = arith.addf %444, %443 : vector<8x128xf32>
    %446 = arith.divf %444, %445 : vector<8x128xf32>
    %447 = arith.mulf %438, %382 : vector<8x128xf32>
    %448 = arith.mulf %432, %440 : vector<8x128xf32>
    %449 = arith.addf %447, %448 : vector<8x128xf32>
    %450 = math.tanh %449 : vector<8x128xf32>
    %451 = arith.mulf %446, %450 : vector<8x128xf32>
    %452 = arith.index_cast %419 : i32 to index
    %c0_115 = arith.constant 0 : index
    %453 = vector.load %arg13[%452, %c0_115] : memref<64x128xf32, #tpu.memory_space<vmem>>, vector<8x128xf32>
    tpu.vector_store %arg13[%452, %c0_115], %451 {strides = array<i32>} : memref<64x128xf32, #tpu.memory_space<vmem>>, vector<8x128xf32>,
    %454 = arith.index_cast %422 : i32 to index
    %c0_116 = arith.constant 0 : index
    %455 = vector.load %arg12[%454, %c0_116] : memref<64x512xf32, #tpu.memory_space<vmem>>, vector<8x512xf32>
    %cst_117 = arith.constant dense<0.000000e+00> : vector<8x512xf32>
    %456 = tpu.matmul %415, %14, %cst_117 {dimension_numbers = #tpu.dot_dimension_numbers<[1], [0], [0], [1], [0, 0, 1, 1], [], []>} : vector<8x128xf32>, vector<128x512xf32>, vector<8x512xf32> -> vector<8x512xf32>
    %457 = arith.addf %455, %456 : vector<8x512xf32>
    %458 = vector.extract_strided_slice %457 {offsets = [0, 0], sizes = [8, 128], strides = [1, 1]} : vector<8x512xf32> to vector<8x128xf32>
    %459 = arith.negf %458 : vector<8x128xf32>
    %460 = math.exp %459 : vector<8x128xf32>
    %cst_118 = arith.constant 1.000000e+00 : f32
    %461 = vector.broadcast %cst_118 : f32 to vector<8x128xf32>
    %462 = arith.addf %461, %460 : vector<8x128xf32>
    %463 = arith.divf %461, %462 : vector<8x128xf32>
    %464 = vector.extract_strided_slice %457 {offsets = [0, 128], sizes = [8, 128], strides = [1, 1]} : vector<8x512xf32> to vector<8x128xf32>
    %465 = arith.negf %464 : vector<8x128xf32>
    %466 = math.exp %465 : vector<8x128xf32>
    %cst_119 = arith.constant 1.000000e+00 : f32
    %467 = vector.broadcast %cst_119 : f32 to vector<8x128xf32>
    %468 = arith.addf %467, %466 : vector<8x128xf32>
    %469 = arith.divf %467, %468 : vector<8x128xf32>
    %470 = vector.extract_strided_slice %457 {offsets = [0, 256], sizes = [8, 128], strides = [1, 1]} : vector<8x512xf32> to vector<8x128xf32>
    %471 = math.tanh %470 : vector<8x128xf32>
    %472 = vector.extract_strided_slice %457 {offsets = [0, 384], sizes = [8, 128], strides = [1, 1]} : vector<8x512xf32> to vector<8x128xf32>
    %473 = arith.negf %472 : vector<8x128xf32>
    %474 = math.exp %473 : vector<8x128xf32>
    %cst_120 = arith.constant 1.000000e+00 : f32
    %475 = vector.broadcast %cst_120 : f32 to vector<8x128xf32>
    %476 = arith.addf %475, %474 : vector<8x128xf32>
    %477 = arith.divf %475, %476 : vector<8x128xf32>
    %478 = arith.mulf %469, %413 : vector<8x128xf32>
    %479 = arith.mulf %463, %471 : vector<8x128xf32>
    %480 = arith.addf %478, %479 : vector<8x128xf32>
    %481 = math.tanh %480 : vector<8x128xf32>
    %482 = arith.mulf %477, %481 : vector<8x128xf32>
    %483 = arith.index_cast %422 : i32 to index
    %c0_121 = arith.constant 0 : index
    %484 = vector.load %arg14[%483, %c0_121] : memref<64x128xf32, #tpu.memory_space<vmem>>, vector<8x128xf32>
    tpu.vector_store %arg14[%483, %c0_121], %482 {strides = array<i32>} : memref<64x128xf32, #tpu.memory_space<vmem>>, vector<8x128xf32>,
    %c7_i32_122 = arith.constant 7 : i32
    %c8_i32_123 = arith.constant 8 : i32
    %485 = arith.muli %c7_i32_122, %c8_i32_123 : i32
    %486 = tpu.assume_multiple %485, 8 : i32
    %c7_i32_124 = arith.constant 7 : i32
    %487 = arith.subi %c7_i32_124, %c7_i32_122 : i32
    %c8_i32_125 = arith.constant 8 : i32
    %488 = arith.muli %487, %c8_i32_125 : i32
    %489 = tpu.assume_multiple %488, 8 : i32
    %490 = arith.index_cast %486 : i32 to index
    %c0_126 = arith.constant 0 : index
    %491 = vector.load %arg11[%490, %c0_126] : memref<64x512xf32, #tpu.memory_space<vmem>>, vector<8x512xf32>
    %cst_127 = arith.constant dense<0.000000e+00> : vector<8x512xf32>
    %492 = tpu.matmul %451, %13, %cst_127 {dimension_numbers = #tpu.dot_dimension_numbers<[1], [0], [0], [1], [0, 0, 1, 1], [], []>} : vector<8x128xf32>, vector<128x512xf32>, vector<8x512xf32> -> vector<8x512xf32>
    %493 = arith.addf %491, %492 : vector<8x512xf32>
    %494 = vector.extract_strided_slice %493 {offsets = [0, 0], sizes = [8, 128], strides = [1, 1]} : vector<8x512xf32> to vector<8x128xf32>
    %495 = arith.negf %494 : vector<8x128xf32>
    %496 = math.exp %495 : vector<8x128xf32>
    %cst_128 = arith.constant 1.000000e+00 : f32
    %497 = vector.broadcast %cst_128 : f32 to vector<8x128xf32>
    %498 = arith.addf %497, %496 : vector<8x128xf32>
    %499 = arith.divf %497, %498 : vector<8x128xf32>
    %500 = vector.extract_strided_slice %493 {offsets = [0, 128], sizes = [8, 128], strides = [1, 1]} : vector<8x512xf32> to vector<8x128xf32>
    %501 = arith.negf %500 : vector<8x128xf32>
    %502 = math.exp %501 : vector<8x128xf32>
    %cst_129 = arith.constant 1.000000e+00 : f32
    %503 = vector.broadcast %cst_129 : f32 to vector<8x128xf32>
    %504 = arith.addf %503, %502 : vector<8x128xf32>
    %505 = arith.divf %503, %504 : vector<8x128xf32>
    %506 = vector.extract_strided_slice %493 {offsets = [0, 256], sizes = [8, 128], strides = [1, 1]} : vector<8x512xf32> to vector<8x128xf32>
    %507 = math.tanh %506 : vector<8x128xf32>
    %508 = vector.extract_strided_slice %493 {offsets = [0, 384], sizes = [8, 128], strides = [1, 1]} : vector<8x512xf32> to vector<8x128xf32>
    %509 = arith.negf %508 : vector<8x128xf32>
    %510 = math.exp %509 : vector<8x128xf32>
    %cst_130 = arith.constant 1.000000e+00 : f32
    %511 = vector.broadcast %cst_130 : f32 to vector<8x128xf32>
    %512 = arith.addf %511, %510 : vector<8x128xf32>
    %513 = arith.divf %511, %512 : vector<8x128xf32>
    %514 = arith.mulf %505, %449 : vector<8x128xf32>
    %515 = arith.mulf %499, %507 : vector<8x128xf32>
    %516 = arith.addf %514, %515 : vector<8x128xf32>
    %517 = math.tanh %516 : vector<8x128xf32>
    %518 = arith.mulf %513, %517 : vector<8x128xf32>
    %519 = arith.index_cast %486 : i32 to index
    %c0_131 = arith.constant 0 : index
    %520 = vector.load %arg13[%519, %c0_131] : memref<64x128xf32, #tpu.memory_space<vmem>>, vector<8x128xf32>
    tpu.vector_store %arg13[%519, %c0_131], %518 {strides = array<i32>} : memref<64x128xf32, #tpu.memory_space<vmem>>, vector<8x128xf32>,
    %521 = arith.index_cast %489 : i32 to index
    %c0_132 = arith.constant 0 : index
    %522 = vector.load %arg12[%521, %c0_132] : memref<64x512xf32, #tpu.memory_space<vmem>>, vector<8x512xf32>
    %cst_133 = arith.constant dense<0.000000e+00> : vector<8x512xf32>
    %523 = tpu.matmul %482, %14, %cst_133 {dimension_numbers = #tpu.dot_dimension_numbers<[1], [0], [0], [1], [0, 0, 1, 1], [], []>} : vector<8x128xf32>, vector<128x512xf32>, vector<8x512xf32> -> vector<8x512xf32>
    %524 = arith.addf %522, %523 : vector<8x512xf32>
    %525 = vector.extract_strided_slice %524 {offsets = [0, 0], sizes = [8, 128], strides = [1, 1]} : vector<8x512xf32> to vector<8x128xf32>
    %526 = arith.negf %525 : vector<8x128xf32>
    %527 = math.exp %526 : vector<8x128xf32>
    %cst_134 = arith.constant 1.000000e+00 : f32
    %528 = vector.broadcast %cst_134 : f32 to vector<8x128xf32>
    %529 = arith.addf %528, %527 : vector<8x128xf32>
    %530 = arith.divf %528, %529 : vector<8x128xf32>
    %531 = vector.extract_strided_slice %524 {offsets = [0, 128], sizes = [8, 128], strides = [1, 1]} : vector<8x512xf32> to vector<8x128xf32>
    %532 = arith.negf %531 : vector<8x128xf32>
    %533 = math.exp %532 : vector<8x128xf32>
    %cst_135 = arith.constant 1.000000e+00 : f32
    %534 = vector.broadcast %cst_135 : f32 to vector<8x128xf32>
    %535 = arith.addf %534, %533 : vector<8x128xf32>
    %536 = arith.divf %534, %535 : vector<8x128xf32>
    %537 = vector.extract_strided_slice %524 {offsets = [0, 256], sizes = [8, 128], strides = [1, 1]} : vector<8x512xf32> to vector<8x128xf32>
    %538 = math.tanh %537 : vector<8x128xf32>
    %539 = vector.extract_strided_slice %524 {offsets = [0, 384], sizes = [8, 128], strides = [1, 1]} : vector<8x512xf32> to vector<8x128xf32>
    %540 = arith.negf %539 : vector<8x128xf32>
    %541 = math.exp %540 : vector<8x128xf32>
    %cst_136 = arith.constant 1.000000e+00 : f32
    %542 = vector.broadcast %cst_136 : f32 to vector<8x128xf32>
    %543 = arith.addf %542, %541 : vector<8x128xf32>
    %544 = arith.divf %542, %543 : vector<8x128xf32>
    %545 = arith.mulf %536, %480 : vector<8x128xf32>
    %546 = arith.mulf %530, %538 : vector<8x128xf32>
    %547 = arith.addf %545, %546 : vector<8x128xf32>
    %548 = math.tanh %547 : vector<8x128xf32>
    %549 = arith.mulf %544, %548 : vector<8x128xf32>
    %550 = arith.index_cast %489 : i32 to index
    %c0_137 = arith.constant 0 : index
    %551 = vector.load %arg14[%550, %c0_137] : memref<64x128xf32, #tpu.memory_space<vmem>>, vector<8x128xf32>
    tpu.vector_store %arg14[%550, %c0_137], %549 {strides = array<i32>} : memref<64x128xf32, #tpu.memory_space<vmem>>, vector<8x128xf32>,
    %c8_i32_138 = arith.constant 8 : i32
    %c0_139 = arith.constant 0 : index
    %c0_140 = arith.constant 0 : index
    %552 = vector.load %arg13[%c0_139, %c0_140] : memref<64x128xf32, #tpu.memory_space<vmem>>, vector<64x128xf32>
    %c0_141 = arith.constant 0 : index
    %c0_142 = arith.constant 0 : index
    %553 = vector.load %arg7[%c0_141, %c0_142] : memref<128x128xf32, #tpu.memory_space<vmem>>, vector<128x128xf32>
    %cst_143 = arith.constant dense<0.000000e+00> : vector<64x128xf32>
    %554 = tpu.matmul %552, %553, %cst_143 {dimension_numbers = #tpu.dot_dimension_numbers<[1], [0], [0], [1], [0, 0, 1, 1], [], []>} : vector<64x128xf32>, vector<128x128xf32>, vector<64x128xf32> -> vector<64x128xf32>
    %c0_144 = arith.constant 0 : index
    %c0_145 = arith.constant 0 : index
    %555 = vector.load %arg14[%c0_144, %c0_145] : memref<64x128xf32, #tpu.memory_space<vmem>>, vector<64x128xf32>
    %c0_146 = arith.constant 0 : index
    %c0_147 = arith.constant 0 : index
    %556 = vector.load %arg8[%c0_146, %c0_147] : memref<128x128xf32, #tpu.memory_space<vmem>>, vector<128x128xf32>
    %cst_148 = arith.constant dense<0.000000e+00> : vector<64x128xf32>
    %557 = tpu.matmul %555, %556, %cst_148 {dimension_numbers = #tpu.dot_dimension_numbers<[1], [0], [0], [1], [0, 0, 1, 1], [], []>} : vector<64x128xf32>, vector<128x128xf32>, vector<64x128xf32> -> vector<64x128xf32>
    %558 = arith.addf %554, %557 : vector<64x128xf32>
    %c0_149 = arith.constant 0 : index
    %c0_150 = arith.constant 0 : index
    %559 = vector.load %arg9[%c0_149, %c0_150] : memref<1x128xf32, #tpu.memory_space<vmem>>, vector<1x128xf32>
    %560 = vector.broadcast %559 : vector<1x128xf32> to vector<64x128xf32>
    %561 = arith.addf %558, %560 : vector<64x128xf32>
    %c0_151 = arith.constant 0 : index
    %c0_152 = arith.constant 0 : index
    %562 = vector.load %arg10[%c0_151, %c0_152] : memref<64x128xf32, #tpu.memory_space<vmem>>, vector<64x128xf32>
    tpu.vector_store %arg10[%c0_151, %c0_152], %561 {strides = array<i32>} : memref<64x128xf32, #tpu.memory_space<vmem>>, vector<64x128xf32>,
    return
  }
}

</mosaic_0001>

<llo_original>
// kernel: tpu_custom_call.1
$region0: #{tpu_custom_call.1}
  #allocation0 [shape = 'u32[]', space=smem, size = 0x4, offset = 0x4, fixed_abs, tag = 'smem constant byte address 0x4 - core index']
  #allocation1 [shape = 'u32[144,128]{1,0:T(1,128)}', space=vmem, size = 0x12000, scoped, tag = 'internal scratch']
  #allocation2 [shape = 'f32[64,512]{1,0:T(8,128)}', space=vmem, size = 0x20000, scoped, tag = 'scratch operand']
  #allocation3 [shape = 'f32[64,512]{1,0:T(8,128)}', space=vmem, size = 0x20000, scoped, tag = 'scratch operand']
  #allocation4 [shape = 'f32[64,128]{1,0:T(8,128)}', space=vmem, size = 0x8000, scoped, tag = 'scratch operand']
  #allocation5 [shape = 'f32[64,128]{1,0:T(8,128)}', space=vmem, size = 0x8000, scoped, tag = 'scratch operand']
  %s0 = inlined_call_operand.vmem [shape: f32[64,32], index: 0, kind: input, shape index: {}]
  %s1 = inlined_call_operand.hbm [shape: f32[32,512], index: 1, kind: input, shape index: {}]
  %s2 = inlined_call_operand.hbm [shape: f32[128,512], index: 2, kind: input, shape index: {}]
  %s3 = inlined_call_operand.vmem [shape: f32[1,512], index: 3, kind: input, shape index: {}]
  %s4 = inlined_call_operand.hbm [shape: f32[32,512], index: 4, kind: input, shape index: {}]
  %s5 = inlined_call_operand.hbm [shape: f32[128,512], index: 5, kind: input, shape index: {}]
  %s6 = inlined_call_operand.vmem [shape: f32[1,512], index: 6, kind: input, shape index: {}]
  %s7 = inlined_call_operand.hbm [shape: f32[128,128], index: 7, kind: input, shape index: {}]
  %s8 = inlined_call_operand.hbm [shape: f32[128,128], index: 8, kind: input, shape index: {}]
  %s9 = inlined_call_operand.vmem [shape: f32[1,128], index: 9, kind: input, shape index: {}]
  %s10 = inlined_call_operand.hbm [shape: f32[64,128], index: 10, kind: output, shape index: {}]
  %s11 = sld [smem:[#allocation0]]
  $region74: #{tpu_custom_call.1} parent=0
    _
  %s13 = ssub.s32 1, %s11
  %s14 = scalar_select 0, %s13, %s11
  $region1: #{tpu_custom_call.1} parent=0
    #allocation6 [shape = 'u8[65536]{0}', space=vmem, size = 0x10000, scoped, tag = 'input window, operand 1, single buffered']
    #allocation7 [shape = 's32[1]{0}', space=sflag, size = 0x4, scoped, tag = 'scoped memory for tpu_custom_call.1']
    #allocation8 [shape = 's32[1]{0}', space=sflag, size = 0x4, scoped, tag = 'scoped memory for tpu_custom_call.1']
    #allocation9 [shape = 'u8[262144]{0}', space=vmem, size = 0x40000, scoped, tag = 'input window, operand 2, single buffered']
    #allocation10 [shape = 's32[1]{0}', space=sflag, size = 0x4, scoped, tag = 'scoped memory for tpu_custom_call.1']
    #allocation11 [shape = 'u8[65536]{0}', space=vmem, size = 0x10000, scoped, tag = 'input window, operand 4, single buffered']
    #allocation12 [shape = 'u8[262144]{0}', space=vmem, size = 0x40000, scoped, tag = 'input window, operand 5, single buffered']
    #allocation13 [shape = 's32[1]{0}', space=sflag, size = 0x4, scoped, tag = 'scoped memory for tpu_custom_call.1']
    #allocation14 [shape = 'u8[65536]{0}', space=vmem, size = 0x10000, scoped, tag = 'input window, operand 7, single buffered']
    #allocation15 [shape = 'u8[65536]{0}', space=vmem, size = 0x10000, scoped, tag = 'input window, operand 8, single buffered']
    #allocation16 [shape = 's32[1]{0}', space=sflag, size = 0x4, scoped, tag = 'scoped memory for tpu_custom_call.1']
    #allocation17 [shape = 'u8[32768]{0}', space=vmem, size = 0x8000, scoped, tag = 'output window, operand 0, single buffered']
    %15 = vsyncpa [#allocation7], 0
    %16 = vsyncpa [#allocation10], 0
    %17 = vsyncpa [#allocation13], 0
    %18 = vsyncpa [#allocation16], 0
    %19 = vsyncpa [#allocation8], 0
    // Predicated region
    $region2: #{tpu_custom_call.1} parent=1 // pred_check
      _
    $region3: #{tpu_custom_call.1} parent=1 // pred_check_branch
      %21 = sbr.rel (0) target = $region5
    $region4: #{tpu_custom_call.1} parent=1 // pred_region
      _
    $region5: #{tpu_custom_call.1} parent=1 // pred_fallthru
      _
    // Predicated region
    $region6: #{tpu_custom_call.1} parent=1 // pred_check
      _
    $region7: #{tpu_custom_call.1} parent=1 // pred_check_branch
      %23 = sbr.rel (0) target = $region9
    $region8: #{tpu_custom_call.1} parent=1 // pred_region
      %s25 = ssub.s32 2048, 2048
      %26 = vsyncadd [#allocation7], %s25
      %s27 = sshll.u32 [#allocation6], 4
      %s28 = int_to_ptr.vmem [resolvable:$true] %s27
      %33 = dma.hbm_to_vmem [thread:$0]  %s1, 2048, %s28, [#allocation7], 512, 512, 32
    $region9: #{tpu_custom_call.1} parent=1 // pred_fallthru
      _
    // Predicated region
    $region10: #{tpu_custom_call.1} parent=1 // pred_check
      _
    $region11: #{tpu_custom_call.1} parent=1 // pred_check_branch
      %35 = sbr.rel (0) target = $region13
    $region12: #{tpu_custom_call.1} parent=1 // pred_region
      %s37 = ssub.s32 8192, 8192
      %38 = vsyncadd [#allocation10], %s37
      %s39 = sshll.u32 [#allocation9], 4
      %s40 = int_to_ptr.vmem [resolvable:$true] %s39
      %45 = dma.hbm_to_vmem [thread:$0]  %s2, 8192, %s40, [#allocation10], 512, 512, 32
    $region13: #{tpu_custom_call.1} parent=1 // pred_fallthru
      _
    // Predicated region
    $region14: #{tpu_custom_call.1} parent=1 // pred_check
      _
    $region15: #{tpu_custom_call.1} parent=1 // pred_check_branch
      %47 = sbr.rel (0) target = $region17
    $region16: #{tpu_custom_call.1} parent=1 // pred_region
      _
    $region17: #{tpu_custom_call.1} parent=1 // pred_fallthru
      _
    // Predicated region
    $region18: #{tpu_custom_call.1} parent=1 // pred_check
      _
    $region19: #{tpu_custom_call.1} parent=1 // pred_check_branch
      %49 = sbr.rel (0) target = $region21
    $region20: #{tpu_custom_call.1} parent=1 // pred_region
      %s51 = ssub.s32 2048, 2048
      %52 = vsyncadd [#allocation10], %s51
      %s53 = sshll.u32 [#allocation11], 4
      %s54 = int_to_ptr.vmem [resolvable:$true] %s53
      %59 = dma.hbm_to_vmem [thread:$0]  %s4, 2048, %s54, [#allocation10], 512, 512, 32
    $region21: #{tpu_custom_call.1} parent=1 // pred_fallthru
      _
    // Predicated region
    $region22: #{tpu_custom_call.1} parent=1 // pred_check
      _
    $region23: #{tpu_custom_call.1} parent=1 // pred_check_branch
      %61 = sbr.rel (0) target = $region25
    $region24: #{tpu_custom_call.1} parent=1 // pred_region
      %s63 = ssub.s32 8192, 8192
      %64 = vsyncadd [#allocation13], %s63
      %s65 = sshll.u32 [#allocation12], 4
      %s66 = int_to_ptr.vmem [resolvable:$true] %s65
      %71 = dma.hbm_to_vmem [thread:$0]  %s5, 8192, %s66, [#allocation13], 512, 512, 32
    $region25: #{tpu_custom_call.1} parent=1 // pred_fallthru
      _
    // Predicated region
    $region26: #{tpu_custom_call.1} parent=1 // pred_check
      _
    $region27: #{tpu_custom_call.1} parent=1 // pred_check_branch
      %73 = sbr.rel (0) target = $region29
    $region28: #{tpu_custom_call.1} parent=1 // pred_region
      _
    $region29: #{tpu_custom_call.1} parent=1 // pred_fallthru
      _
    // Predicated region
    $region30: #{tpu_custom_call.1} parent=1 // pred_check
      _
    $region31: #{tpu_custom_call.1} parent=1 // pred_check_branch
      %75 = sbr.rel (0) target = $region33
    $region32: #{tpu_custom_call.1} parent=1 // pred_region
      %s77 = ssub.s32 2048, 2048
      %78 = vsyncadd [#allocation13], %s77
      %s79 = sshll.u32 [#allocation14], 4
      %s80 = int_to_ptr.vmem [resolvable:$true] %s79
      %85 = dma.hbm_to_vmem [thread:$0]  %s7, 2048, %s80, [#allocation13], 128, 128, 8
    $region33: #{tpu_custom_call.1} parent=1 // pred_fallthru
      _
    // Predicated region
    $region34: #{tpu_custom_call.1} parent=1 // pred_check
      _
    $region35: #{tpu_custom_call.1} parent=1 // pred_check_branch
      %87 = sbr.rel (0) target = $region37
    $region36: #{tpu_custom_call.1} parent=1 // pred_region
      %s89 = ssub.s32 2048, 2048
      %90 = vsyncadd [#allocation16], %s89
      %s91 = sshll.u32 [#allocation15], 4
      %s92 = int_to_ptr.vmem [resolvable:$true] %s91
      %97 = dma.hbm_to_vmem [thread:$0]  %s8, 2048, %s92, [#allocation16], 128, 128, 8
    $region37: #{tpu_custom_call.1} parent=1 // pred_fallthru
      _
    // Predicated region
    $region38: #{tpu_custom_call.1} parent=1 // pred_check
      _
    $region39: #{tpu_custom_call.1} parent=1 // pred_check_branch
      %99 = sbr.rel (0) target = $region41
    $region40: #{tpu_custom_call.1} parent=1 // pred_region
      _
    $region41: #{tpu_custom_call.1} parent=1 // pred_fallthru
      _
    // Predicated region
    $region42: #{tpu_custom_call.1} parent=1 // pred_check
      _
    $region43: #{tpu_custom_call.1} parent=1 // pred_check_branch
      %101 = sbr.rel (0) target = $region45
    $region44: #{tpu_custom_call.1} parent=1 // pred_region
      %102 = dma.done [#allocation7], 2048
    $region45: #{tpu_custom_call.1} parent=1 // pred_fallthru
      _
    // Predicated region
    $region46: #{tpu_custom_call.1} parent=1 // pred_check
      _
    $region47: #{tpu_custom_call.1} parent=1 // pred_check_branch
      %104 = sbr.rel (0) target = $region49
    $region48: #{tpu_custom_call.1} parent=1 // pred_region
      %105 = dma.done [#allocation10], 8192
    $region49: #{tpu_custom_call.1} parent=1 // pred_fallthru
      _
    // Predicated region
    $region50: #{tpu_custom_call.1} parent=1 // pred_check
      _
    $region51: #{tpu_custom_call.1} parent=1 // pred_check_branch
      %107 = sbr.rel (0) target = $region53
    $region52: #{tpu_custom_call.1} parent=1 // pred_region
      %108 = dma.done [#allocation10], 2048
    $region53: #{tpu_custom_call.1} parent=1 // pred_fallthru
      _
    // Predicated region
    $region54: #{tpu_custom_call.1} parent=1 // pred_check
      _
    $region55: #{tpu_custom_call.1} parent=1 // pred_check_branch
      %110 = sbr.rel (0) target = $region57
    $region56: #{tpu_custom_call.1} parent=1 // pred_region
      %111 = dma.done [#allocation13], 8192
    $region57: #{tpu_custom_call.1} parent=1 // pred_fallthru
      _
    // Predicated region
    $region58: #{tpu_custom_call.1} parent=1 // pred_check
      _
    $region59: #{tpu_custom_call.1} parent=1 // pred_check_branch
      %113 = sbr.rel (0) target = $region61
    $region60: #{tpu_custom_call.1} parent=1 // pred_region
      %114 = dma.done [#allocation13], 2048
    $region61: #{tpu_custom_call.1} parent=1 // pred_fallthru
      _
    // Predicated region
    $region62: #{tpu_custom_call.1} parent=1 // pred_check
      _
    $region63: #{tpu_custom_call.1} parent=1 // pred_check_branch
      %116 = sbr.rel (0) target = $region65
    $region64: #{tpu_custom_call.1} parent=1 // pred_region
      %117 = dma.done [#allocation16], 2048
    $region65: #{tpu_custom_call.1} parent=1 // pred_fallthru
      _
    %v118 = vld [vmem:[%s0] sm:$0xff]
    %v119 = vld [vmem:[%s0 + $0x8] sm:$0xff]
    %v120 = vld [vmem:[%s0 + $0x10] sm:$0xff]
    %v121 = vld [vmem:[%s0 + $0x18] sm:$0xff]
    %v122 = vld [vmem:[%s0 + $0x20] sm:$0xff]
    %v123 = vld [vmem:[%s0 + $0x28] sm:$0xff]
    %v124 = vld [vmem:[%s0 + $0x30] sm:$0xff]
    %v125 = vld [vmem:[%s0 + $0x38] sm:$0xff]
    %v126 = vld [vmem:[#allocation6] sm:$0xff]
    %v127 = vld [vmem:[#allocation6 + $0x8] sm:$0xff]
    %v128 = vld [vmem:[#allocation6 + $0x10] sm:$0xff]
    %v129 = vld [vmem:[#allocation6 + $0x18] sm:$0xff]
    %v130 = vld [vmem:[#allocation6 + $0x20] sm:$0xff]
    %v131 = vld [vmem:[#allocation6 + $0x28] sm:$0xff]
    %v132 = vld [vmem:[#allocation6 + $0x30] sm:$0xff]
    %v133 = vld [vmem:[#allocation6 + $0x38] sm:$0xff]
    %v134 = vld [vmem:[#allocation6 + $0x40] sm:$0xff]
    %v135 = vld [vmem:[#allocation6 + $0x48] sm:$0xff]
    %v136 = vld [vmem:[#allocation6 + $0x50] sm:$0xff]
    %v137 = vld [vmem:[#allocation6 + $0x58] sm:$0xff]
    %v138 = vld [vmem:[#allocation6 + $0x60] sm:$0xff]
    %v139 = vld [vmem:[#allocation6 + $0x68] sm:$0xff]
    %v140 = vld [vmem:[#allocation6 + $0x70] sm:$0xff]
    %v141 = vld [vmem:[#allocation6 + $0x78] sm:$0xff]
    %v142 = vld [vmem:[%s3] sm:$0xf]
    %v144 = vlaneseq
    %v145 = vshrl.u32 %v144, 7
    %v146 = vsub.s32 0, %v145
    %v147 = vrot.slane %v142, %v146
    %v148 = vlaneseq
    %v149 = vshrl.u32 %v148, 7
    %v150 = vsub.s32 1, %v149
    %v151 = vrot.slane %v142, %v150
    %v152 = vlaneseq
    %v153 = vshrl.u32 %v152, 7
    %v154 = vsub.s32 2, %v153
    %v155 = vrot.slane %v142, %v154
    %v156 = vlaneseq
    %v157 = vshrl.u32 %v156, 7
    %v158 = vsub.s32 3, %v157
    %v159 = vrot.slane %v142, %v158
    %vm164 = vcmask 261120
    %v166 = vsel %vm164, %v118, 0
    %v169 = vsel %vm164, %v119, 0
    %v172 = vsel %vm164, %v120, 0
    %v175 = vsel %vm164, %v121, 0
    %v178 = vsel %vm164, %v122, 0
    %v181 = vsel %vm164, %v123, 0
    %v184 = vsel %vm164, %v124, 0
    %v187 = vsel %vm164, %v125, 0
    %189 = vmatprep.subr.mxu0 0.0
    %190 = vmatpush1.msra.mxu0 0.0
    %191 = vmatprep.subr.mxu0 0.0
    %192 = vmatpush1.msra.mxu0 0.0
    %193 = vmatprep.subr.mxu0 0.0
    %194 = vmatpush1.msra.mxu0 0.0
    %195 = vmatprep.subr.mxu0 0.0
    %196 = vmatpush1.msra.mxu0 0.0
    %197 = vmatprep.subr.mxu0 0.0
    %198 = vmatpush1.msra.mxu0 0.0
    %199 = vmatprep.subr.mxu0 0.0
    %200 = vmatpush1.msra.mxu0 0.0
    %201 = vmatprep.subr.mxu0 0.0
    %202 = vmatpush1.msra.mxu0 0.0
    %203 = vmatprep.subr.mxu0 0.0
    %204 = vmatpush1.msra.mxu0 0.0
    %205 = vmatprep.subr.mxu0 0.0
    %206 = vmatpush1.msra.mxu0 0.0
    %207 = vmatprep.subr.mxu0 0.0
    %208 = vmatpush1.msra.mxu0 0.0
    %209 = vmatprep.subr.mxu0 0.0
    %210 = vmatpush1.msra.mxu0 0.0
    %211 = vmatprep.subr.mxu0 0.0
    %212 = vmatpush1.msra.mxu0 0.0
    %213 = vmatprep.subr.mxu0 %v139
    %214 = vmatpush1.msra.mxu0 %v138
    %215 = vmatprep.subr.mxu0 %v135
    %216 = vmatpush1.msra.mxu0 %v134
    %217 = vmatprep.subr.mxu0 %v131
    %218 = vmatpush1.msra.mxu0 %v130
    %219 = vmatprep.subr.mxu0 %v127
    %220 = vmatpush1.msra.mxu0 %v126
    %221 = vmatprep.subr.mxu0 0.0
    %222 = vmatpush2.msra.mxu0 0.0
    %223 = vmatprep.subr.mxu0 0.0
    %224 = vmatpush2.msra.mxu0 0.0
    %225 = vmatprep.subr.mxu0 0.0
    %226 = vmatpush2.msra.mxu0 0.0
    %227 = vmatprep.subr.mxu0 0.0
    %228 = vmatpush2.msra.mxu0 0.0
    %229 = vmatprep.subr.mxu0 0.0
    %230 = vmatpush2.msra.mxu0 0.0
    %231 = vmatprep.subr.mxu0 0.0
    %232 = vmatpush2.msra.mxu0 0.0
    %233 = vmatprep.subr.mxu0 0.0
    %234 = vmatpush2.msra.mxu0 0.0
    %235 = vmatprep.subr.mxu0 0.0
    %236 = vmatpush2.msra.mxu0 0.0
    %237 = vmatprep.subr.mxu0 0.0
    %238 = vmatpush2.msra.mxu0 0.0
    %239 = vmatprep.subr.mxu0 0.0
    %240 = vmatpush2.msra.mxu0 0.0
    %241 = vmatprep.subr.mxu0 0.0
    %242 = vmatpush2.msra.mxu0 0.0
    %243 = vmatprep.subr.mxu0 0.0
    %244 = vmatpush2.msra.mxu0 0.0
    %245 = vmatprep.subr.mxu0 0.0
    %246 = vmatpush2.msra.mxu0 0.0
    %247 = vmatprep.subr.mxu0 0.0
    %248 = vmatpush2.msra.mxu0 0.0
    %249 = vmatprep.subr.mxu0 0.0
    %250 = vmatpush2.msra.mxu0 0.0
    %251 = vmatprep.subr.mxu0 0.0
    %252 = vmatpush2.msra.mxu0 0.0
    %253 = vmatprep.mubr.f32.mxu0 0.0
    %254 = vmatmul.mubr.f32.gmra.mxu0 %v166
    %v255 = vpop.f32.mrf.mxu0
    %v256 = vadd.f32 %v147, %v255
    %v257 = vpop.f32.mrf.mxu0
    %v258 = vadd.f32 %v151, %v257
    %259 = vmatprep.mubr.f32.mxu0 0.0
    %260 = vmatmul.mubr.f32.gmra.mxu0 %v169
    %v261 = vpop.f32.mrf.mxu0
    %v262 = vadd.f32 %v147, %v261
    %v263 = vpop.f32.mrf.mxu0
    %v264 = vadd.f32 %v151, %v263
    %265 = vmatprep.mubr.f32.mxu0 0.0
    %266 = vmatmul.mubr.f32.gmra.mxu0 %v172
    %v267 = vpop.f32.mrf.mxu0
    %v268 = vadd.f32 %v147, %v267
    %v269 = vpop.f32.mrf.mxu0
    %v270 = vadd.f32 %v151, %v269
    %271 = vmatprep.mubr.f32.mxu0 0.0
    %272 = vmatmul.mubr.f32.gmra.mxu0 %v175
    %v273 = vpop.f32.mrf.mxu0
    %v274 = vadd.f32 %v147, %v273
    %v275 = vpop.f32.mrf.mxu0
    %v276 = vadd.f32 %v151, %v275
    %277 = vmatprep.mubr.f32.mxu0 0.0
    %278 = vmatmul.mubr.f32.gmra.mxu0 %v178
    %v279 = vpop.f32.mrf.mxu0
    %v280 = vadd.f32 %v147, %v279
    %v281 = vpop.f32.mrf.mxu0
    %v282 = vadd.f32 %v151, %v281
    %283 = vmatprep.mubr.f32.mxu0 0.0
    %284 = vmatmul.mubr.f32.gmra.mxu0 %v181
    %v285 = vpop.f32.mrf.mxu0
    %v286 = vadd.f32 %v147, %v285
    %v287 = vpop.f32.mrf.mxu0
    %v288 = vadd.f32 %v151, %v287
    %289 = vmatprep.mubr.f32.mxu0 0.0
    %290 = vmatmul.mubr.f32.gmra.mxu0 %v184
    %v291 = vpop.f32.mrf.mxu0
    %v292 = vadd.f32 %v147, %v291
    %v293 = vpop.f32.mrf.mxu0
    %v294 = vadd.f32 %v151, %v293
    %295 = vmatprep.mubr.f32.mxu0 0.0
    %296 = vmatmul.mubr.f32.gmra.mxu0 %v187
    %v297 = vpop.f32.mrf.mxu0
    %v298 = vadd.f32 %v147, %v297
    %v299 = vpop.f32.mrf.mxu0
    %v300 = vadd.f32 %v151, %v299
    %301 = vdwg.mxu0
    %302 = vmatprep.subr.mxu0 0.0
    %303 = vmatpush1.msra.mxu0 0.0
    %304 = vmatprep.subr.mxu0 0.0
    %305 = vmatpush1.msra.mxu0 0.0
    %306 = vmatprep.subr.mxu0 0.0
    %307 = vmatpush1.msra.mxu0 0.0
    %308 = vmatprep.subr.mxu0 0.0
    %309 = vmatpush1.msra.mxu0 0.0
    %310 = vmatprep.subr.mxu0 0.0
    %311 = vmatpush1.msra.mxu0 0.0
    %312 = vmatprep.subr.mxu0 0.0
    %313 = vmatpush1.msra.mxu0 0.0
    %314 = vmatprep.subr.mxu0 0.0
    %315 = vmatpush1.msra.mxu0 0.0
    %316 = vmatprep.subr.mxu0 0.0
    %317 = vmatpush1.msra.mxu0 0.0
    %318 = vmatprep.subr.mxu0 0.0
    %319 = vmatpush1.msra.mxu0 0.0
    %320 = vmatprep.subr.mxu0 0.0
    %321 = vmatpush1.msra.mxu0 0.0
    %322 = vmatprep.subr.mxu0 0.0
    %323 = vmatpush1.msra.mxu0 0.0
    %324 = vmatprep.subr.mxu0 0.0
    %325 = vmatpush1.msra.mxu0 0.0
    %326 = vmatprep.subr.mxu0 %v141
    %327 = vmatpush1.msra.mxu0 %v140
    %328 = vmatprep.subr.mxu0 %v137
    %329 = vmatpush1.msra.mxu0 %v136
    %330 = vmatprep.subr.mxu0 %v133
    %331 = vmatpush1.msra.mxu0 %v132
    %332 = vmatprep.subr.mxu0 %v129
    %333 = vmatpush1.msra.mxu0 %v128
    %334 = vmatprep.subr.mxu0 0.0
    %335 = vmatpush2.msra.mxu0 0.0
    %336 = vmatprep.subr.mxu0 0.0
    %337 = vmatpush2.msra.mxu0 0.0
    %338 = vmatprep.subr.mxu0 0.0
    %339 = vmatpush2.msra.mxu0 0.0
    %340 = vmatprep.subr.mxu0 0.0
    %341 = vmatpush2.msra.mxu0 0.0
    %342 = vmatprep.subr.mxu0 0.0
    %343 = vmatpush2.msra.mxu0 0.0
    %344 = vmatprep.subr.mxu0 0.0
    %345 = vmatpush2.msra.mxu0 0.0
    %346 = vmatprep.subr.mxu0 0.0
    %347 = vmatpush2.msra.mxu0 0.0
    %348 = vmatprep.subr.mxu0 0.0
    %349 = vmatpush2.msra.mxu0 0.0
    %350 = vmatprep.subr.mxu0 0.0
    %351 = vmatpush2.msra.mxu0 0.0
    %352 = vmatprep.subr.mxu0 0.0
    %353 = vmatpush2.msra.mxu0 0.0
    %354 = vmatprep.subr.mxu0 0.0
    %355 = vmatpush2.msra.mxu0 0.0
    %356 = vmatprep.subr.mxu0 0.0
    %357 = vmatpush2.msra.mxu0 0.0
    %358 = vmatprep.subr.mxu0 0.0
    %359 = vmatpush2.msra.mxu0 0.0
    %360 = vmatprep.subr.mxu0 0.0
    %361 = vmatpush2.msra.mxu0 0.0
    %362 = vmatprep.subr.mxu0 0.0
    %363 = vmatpush2.msra.mxu0 0.0
    %364 = vmatprep.subr.mxu0 0.0
    %365 = vmatpush2.msra.mxu0 0.0
    %366 = vmatprep.mubr.f32.mxu0 0.0
    %367 = vmatmul.mubr.f32.gmra.mxu0 %v166
    %v368 = vpop.f32.mrf.mxu0
    %v369 = vadd.f32 %v155, %v368
    %v370 = vpop.f32.mrf.mxu0
    %v371 = vadd.f32 %v159, %v370
    %372 = vmatprep.mubr.f32.mxu0 0.0
    %373 = vmatmul.mubr.f32.gmra.mxu0 %v169
    %v374 = vpop.f32.mrf.mxu0
    %v375 = vadd.f32 %v155, %v374
    %v376 = vpop.f32.mrf.mxu0
    %v377 = vadd.f32 %v159, %v376
    %378 = vmatprep.mubr.f32.mxu0 0.0
    %379 = vmatmul.mubr.f32.gmra.mxu0 %v172
    %v380 = vpop.f32.mrf.mxu0
    %v381 = vadd.f32 %v155, %v380
    %v382 = vpop.f32.mrf.mxu0
    %v383 = vadd.f32 %v159, %v382
    %384 = vmatprep.mubr.f32.mxu0 0.0
    %385 = vmatmul.mubr.f32.gmra.mxu0 %v175
    %v386 = vpop.f32.mrf.mxu0
    %v387 = vadd.f32 %v155, %v386
    %v388 = vpop.f32.mrf.mxu0
    %v389 = vadd.f32 %v159, %v388
    %390 = vmatprep.mubr.f32.mxu0 0.0
    %391 = vmatmul.mubr.f32.gmra.mxu0 %v178
    %v392 = vpop.f32.mrf.mxu0
    %v393 = vadd.f32 %v155, %v392
    %v394 = vpop.f32.mrf.mxu0
    %v395 = vadd.f32 %v159, %v394
    %396 = vmatprep.mubr.f32.mxu0 0.0
    %397 = vmatmul.mubr.f32.gmra.mxu0 %v181
    %v398 = vpop.f32.mrf.mxu0
    %v399 = vadd.f32 %v155, %v398
    %v400 = vpop.f32.mrf.mxu0
    %v401 = vadd.f32 %v159, %v400
    %402 = vmatprep.mubr.f32.mxu0 0.0
    %403 = vmatmul.mubr.f32.gmra.mxu0 %v184
    %v404 = vpop.f32.mrf.mxu0
    %v405 = vadd.f32 %v155, %v404
    %v406 = vpop.f32.mrf.mxu0
    %v407 = vadd.f32 %v159, %v406
    %408 = vmatprep.mubr.f32.mxu0 0.0
    %409 = vmatmul.mubr.f32.gmra.mxu0 %v187
    %v410 = vpop.f32.mrf.mxu0
    %v411 = vadd.f32 %v155, %v410
    %v412 = vpop.f32.mrf.mxu0
    %v413 = vadd.f32 %v159, %v412
    %414 = vdwg.mxu0
    %415 = vst [vmem:[#allocation2] sm:$0xff] %v256
    %416 = vst [vmem:[#allocation2 + $0x8] sm:$0xff] %v258
    %417 = vst [vmem:[#allocation2 + $0x10] sm:$0xff] %v369
    %418 = vst [vmem:[#allocation2 + $0x18] sm:$0xff] %v371
    %419 = vst [vmem:[#allocation2 + $0x20] sm:$0xff] %v262
    %420 = vst [vmem:[#allocation2 + $0x28] sm:$0xff] %v264
    %421 = vst [vmem:[#allocation2 + $0x30] sm:$0xff] %v375
    %422 = vst [vmem:[#allocation2 + $0x38] sm:$0xff] %v377
    %423 = vst [vmem:[#allocation2 + $0x40] sm:$0xff] %v268
    %424 = vst [vmem:[#allocation2 + $0x48] sm:$0xff] %v270
    %425 = vst [vmem:[#allocation2 + $0x50] sm:$0xff] %v381
    %426 = vst [vmem:[#allocation2 + $0x58] sm:$0xff] %v383
    %427 = vst [vmem:[#allocation2 + $0x60] sm:$0xff] %v274
    %428 = vst [vmem:[#allocation2 + $0x68] sm:$0xff] %v276
    %429 = vst [vmem:[#allocation2 + $0x70] sm:$0xff] %v387
    %430 = vst [vmem:[#allocation2 + $0x78] sm:$0xff] %v389
    %431 = vst [vmem:[#allocation2 + $0x80] sm:$0xff] %v280
    %432 = vst [vmem:[#allocation2 + $0x88] sm:$0xff] %v282
    %433 = vst [vmem:[#allocation2 + $0x90] sm:$0xff] %v393
    %434 = vst [vmem:[#allocation2 + $0x98] sm:$0xff] %v395
    %435 = vst [vmem:[#allocation2 + $0xa0] sm:$0xff] %v286
    %436 = vst [vmem:[#allocation2 + $0xa8] sm:$0xff] %v288
    %437 = vst [vmem:[#allocation2 + $0xb0] sm:$0xff] %v399
    %438 = vst [vmem:[#allocation2 + $0xb8] sm:$0xff] %v401
    %439 = vst [vmem:[#allocation2 + $0xc0] sm:$0xff] %v292
    %440 = vst [vmem:[#allocation2 + $0xc8] sm:$0xff] %v294
    %441 = vst [vmem:[#allocation2 + $0xd0] sm:$0xff] %v405
    %442 = vst [vmem:[#allocation2 + $0xd8] sm:$0xff] %v407
    %443 = vst [vmem:[#allocation2 + $0xe0] sm:$0xff] %v298
    %444 = vst [vmem:[#allocation2 + $0xe8] sm:$0xff] %v300
    %445 = vst [vmem:[#allocation2 + $0xf0] sm:$0xff] %v411
    %446 = vst [vmem:[#allocation2 + $0xf8] sm:$0xff] %v413
    %v447 = vld [vmem:[#allocation11] sm:$0xff]
    %v448 = vld [vmem:[#allocation11 + $0x8] sm:$0xff]
    %v449 = vld [vmem:[#allocation11 + $0x10] sm:$0xff]
    %v450 = vld [vmem:[#allocation11 + $0x18] sm:$0xff]
    %v451 = vld [vmem:[#allocation11 + $0x20] sm:$0xff]
    %v452 = vld [vmem:[#allocation11 + $0x28] sm:$0xff]
    %v453 = vld [vmem:[#allocation11 + $0x30] sm:$0xff]
    %v454 = vld [vmem:[#allocation11 + $0x38] sm:$0xff]
    %v455 = vld [vmem:[#allocation11 + $0x40] sm:$0xff]
    %v456 = vld [vmem:[#allocation11 + $0x48] sm:$0xff]
    %v457 = vld [vmem:[#allocation11 + $0x50] sm:$0xff]
    %v458 = vld [vmem:[#allocation11 + $0x58] sm:$0xff]
    %v459 = vld [vmem:[#allocation11 + $0x60] sm:$0xff]
    %v460 = vld [vmem:[#allocation11 + $0x68] sm:$0xff]
    %v461 = vld [vmem:[#allocation11 + $0x70] sm:$0xff]
    %v462 = vld [vmem:[#allocation11 + $0x78] sm:$0xff]
    %v463 = vld [vmem:[%s6] sm:$0xf]
    %v465 = vlaneseq
    %v466 = vshrl.u32 %v465, 7
    %v467 = vsub.s32 0, %v466
    %v468 = vrot.slane %v463, %v467
    %v469 = vlaneseq
    %v470 = vshrl.u32 %v469, 7
    %v471 = vsub.s32 1, %v470
    %v472 = vrot.slane %v463, %v471
    %v473 = vlaneseq
    %v474 = vshrl.u32 %v473, 7
    %v475 = vsub.s32 2, %v474
    %v476 = vrot.slane %v463, %v475
    %v477 = vlaneseq
    %v478 = vshrl.u32 %v477, 7
    %v479 = vsub.s32 3, %v478
    %v480 = vrot.slane %v463, %v479
    %485 = vmatprep.subr.mxu0 0.0
    %486 = vmatpush1.msra.mxu0 0.0
    %487 = vmatprep.subr.mxu0 0.0
    %488 = vmatpush1.msra.mxu0 0.0
    %489 = vmatprep.subr.mxu0 0.0
    %490 = vmatpush1.msra.mxu0 0.0
    %491 = vmatprep.subr.mxu0 0.0
    %492 = vmatpush1.msra.mxu0 0.0
    %493 = vmatprep.subr.mxu0 0.0
    %494 = vmatpush1.msra.mxu0 0.0
    %495 = vmatprep.subr.mxu0 0.0
    %496 = vmatpush1.msra.mxu0 0.0
    %497 = vmatprep.subr.mxu0 0.0
    %498 = vmatpush1.msra.mxu0 0.0
    %499 = vmatprep.subr.mxu0 0.0
    %500 = vmatpush1.msra.mxu0 0.0
    %501 = vmatprep.subr.mxu0 0.0
    %502 = vmatpush1.msra.mxu0 0.0
    %503 = vmatprep.subr.mxu0 0.0
    %504 = vmatpush1.msra.mxu0 0.0
    %505 = vmatprep.subr.mxu0 0.0
    %506 = vmatpush1.msra.mxu0 0.0
    %507 = vmatprep.subr.mxu0 0.0
    %508 = vmatpush1.msra.mxu0 0.0
    %509 = vmatprep.subr.mxu0 %v460
    %510 = vmatpush1.msra.mxu0 %v459
    %511 = vmatprep.subr.mxu0 %v456
    %512 = vmatpush1.msra.mxu0 %v455
    %513 = vmatprep.subr.mxu0 %v452
    %514 = vmatpush1.msra.mxu0 %v451
    %515 = vmatprep.subr.mxu0 %v448
    %516 = vmatpush1.msra.mxu0 %v447
    %517 = vmatprep.subr.mxu0 0.0
    %518 = vmatpush2.msra.mxu0 0.0
    %519 = vmatprep.subr.mxu0 0.0
    %520 = vmatpush2.msra.mxu0 0.0
    %521 = vmatprep.subr.mxu0 0.0
    %522 = vmatpush2.msra.mxu0 0.0
    %523 = vmatprep.subr.mxu0 0.0
    %524 = vmatpush2.msra.mxu0 0.0
    %525 = vmatprep.subr.mxu0 0.0
    %526 = vmatpush2.msra.mxu0 0.0
    %527 = vmatprep.subr.mxu0 0.0
    %528 = vmatpush2.msra.mxu0 0.0
    %529 = vmatprep.subr.mxu0 0.0
    %530 = vmatpush2.msra.mxu0 0.0
    %531 = vmatprep.subr.mxu0 0.0
    %532 = vmatpush2.msra.mxu0 0.0
    %533 = vmatprep.subr.mxu0 0.0
    %534 = vmatpush2.msra.mxu0 0.0
    %535 = vmatprep.subr.mxu0 0.0
    %536 = vmatpush2.msra.mxu0 0.0
    %537 = vmatprep.subr.mxu0 0.0
    %538 = vmatpush2.msra.mxu0 0.0
    %539 = vmatprep.subr.mxu0 0.0
    %540 = vmatpush2.msra.mxu0 0.0
    %541 = vmatprep.subr.mxu0 0.0
    %542 = vmatpush2.msra.mxu0 0.0
    %543 = vmatprep.subr.mxu0 0.0
    %544 = vmatpush2.msra.mxu0 0.0
    %545 = vmatprep.subr.mxu0 0.0
    %546 = vmatpush2.msra.mxu0 0.0
    %547 = vmatprep.subr.mxu0 0.0
    %548 = vmatpush2.msra.mxu0 0.0
    %549 = vmatprep.mubr.f32.mxu0 0.0
    %550 = vmatmul.mubr.f32.gmra.mxu0 %v166
    %v551 = vpop.f32.mrf.mxu0
    %v552 = vadd.f32 %v468, %v551
    %v553 = vpop.f32.mrf.mxu0
    %v554 = vadd.f32 %v472, %v553
    %555 = vmatprep.mubr.f32.mxu0 0.0
    %556 = vmatmul.mubr.f32.gmra.mxu0 %v169
    %v557 = vpop.f32.mrf.mxu0
    %v558 = vadd.f32 %v468, %v557
    %v559 = vpop.f32.mrf.mxu0
    %v560 = vadd.f32 %v472, %v559
    %561 = vmatprep.mubr.f32.mxu0 0.0
    %562 = vmatmul.mubr.f32.gmra.mxu0 %v172
    %v563 = vpop.f32.mrf.mxu0
    %v564 = vadd.f32 %v468, %v563
    %v565 = vpop.f32.mrf.mxu0
    %v566 = vadd.f32 %v472, %v565
    %567 = vmatprep.mubr.f32.mxu0 0.0
    %568 = vmatmul.mubr.f32.gmra.mxu0 %v175
    %v569 = vpop.f32.mrf.mxu0
    %v570 = vadd.f32 %v468, %v569
    %v571 = vpop.f32.mrf.mxu0
    %v572 = vadd.f32 %v472, %v571
    %573 = vmatprep.mubr.f32.mxu0 0.0
    %574 = vmatmul.mubr.f32.gmra.mxu0 %v178
    %v575 = vpop.f32.mrf.mxu0
    %v576 = vadd.f32 %v468, %v575
    %v577 = vpop.f32.mrf.mxu0
    %v578 = vadd.f32 %v472, %v577
    %579 = vmatprep.mubr.f32.mxu0 0.0
    %580 = vmatmul.mubr.f32.gmra.mxu0 %v181
    %v581 = vpop.f32.mrf.mxu0
    %v582 = vadd.f32 %v468, %v581
    %v583 = vpop.f32.mrf.mxu0
    %v584 = vadd.f32 %v472, %v583
    %585 = vmatprep.mubr.f32.mxu0 0.0
    %586 = vmatmul.mubr.f32.gmra.mxu0 %v184
    %v587 = vpop.f32.mrf.mxu0
    %v588 = vadd.f32 %v468, %v587
    %v589 = vpop.f32.mrf.mxu0
    %v590 = vadd.f32 %v472, %v589
    %591 = vmatprep.mubr.f32.mxu0 0.0
    %592 = vmatmul.mubr.f32.gmra.mxu0 %v187
    %v593 = vpop.f32.mrf.mxu0
    %v594 = vadd.f32 %v468, %v593
    %v595 = vpop.f32.mrf.mxu0
    %v596 = vadd.f32 %v472, %v595
    %597 = vdwg.mxu0
    %598 = vmatprep.subr.mxu0 0.0
    %599 = vmatpush1.msra.mxu0 0.0
    %600 = vmatprep.subr.mxu0 0.0
    %601 = vmatpush1.msra.mxu0 0.0
    %602 = vmatprep.subr.mxu0 0.0
    %603 = vmatpush1.msra.mxu0 0.0
    %604 = vmatprep.subr.mxu0 0.0
    %605 = vmatpush1.msra.mxu0 0.0
    %606 = vmatprep.subr.mxu0 0.0
    %607 = vmatpush1.msra.mxu0 0.0
    %608 = vmatprep.subr.mxu0 0.0
    %609 = vmatpush1.msra.mxu0 0.0
    %610 = vmatprep.subr.mxu0 0.0
    %611 = vmatpush1.msra.mxu0 0.0
    %612 = vmatprep.subr.mxu0 0.0
    %613 = vmatpush1.msra.mxu0 0.0
    %614 = vmatprep.subr.mxu0 0.0
    %615 = vmatpush1.msra.mxu0 0.0
    %616 = vmatprep.subr.mxu0 0.0
    %617 = vmatpush1.msra.mxu0 0.0
    %618 = vmatprep.subr.mxu0 0.0
    %619 = vmatpush1.msra.mxu0 0.0
    %620 = vmatprep.subr.mxu0 0.0
    %621 = vmatpush1.msra.mxu0 0.0
    %622 = vmatprep.subr.mxu0 %v462
    %623 = vmatpush1.msra.mxu0 %v461
    %624 = vmatprep.subr.mxu0 %v458
    %625 = vmatpush1.msra.mxu0 %v457
    %626 = vmatprep.subr.mxu0 %v454
    %627 = vmatpush1.msra.mxu0 %v453
    %628 = vmatprep.subr.mxu0 %v450
    %629 = vmatpush1.msra.mxu0 %v449
    %630 = vmatprep.subr.mxu0 0.0
    %631 = vmatpush2.msra.mxu0 0.0
    %632 = vmatprep.subr.mxu0 0.0
    %633 = vmatpush2.msra.mxu0 0.0
    %634 = vmatprep.subr.mxu0 0.0
    %635 = vmatpush2.msra.mxu0 0.0
    %636 = vmatprep.subr.mxu0 0.0
    %637 = vmatpush2.msra.mxu0 0.0
    %638 = vmatprep.subr.mxu0 0.0
    %639 = vmatpush2.msra.mxu0 0.0
    %640 = vmatprep.subr.mxu0 0.0
    %641 = vmatpush2.msra.mxu0 0.0
    %642 = vmatprep.subr.mxu0 0.0
    %643 = vmatpush2.msra.mxu0 0.0
    %644 = vmatprep.subr.mxu0 0.0
    %645 = vmatpush2.msra.mxu0 0.0
    %646 = vmatprep.subr.mxu0 0.0
    %647 = vmatpush2.msra.mxu0 0.0
    %648 = vmatprep.subr.mxu0 0.0
    %649 = vmatpush2.msra.mxu0 0.0
    %650 = vmatprep.subr.mxu0 0.0
    %651 = vmatpush2.msra.mxu0 0.0
    %652 = vmatprep.subr.mxu0 0.0
    %653 = vmatpush2.msra.mxu0 0.0
    %654 = vmatprep.subr.mxu0 0.0
    %655 = vmatpush2.msra.mxu0 0.0
    %656 = vmatprep.subr.mxu0 0.0
    %657 = vmatpush2.msra.mxu0 0.0
    %658 = vmatprep.subr.mxu0 0.0
    %659 = vmatpush2.msra.mxu0 0.0
    %660 = vmatprep.subr.mxu0 0.0
    %661 = vmatpush2.msra.mxu0 0.0
    %662 = vmatprep.mubr.f32.mxu0 0.0
    %663 = vmatmul.mubr.f32.gmra.mxu0 %v166
    %v664 = vpop.f32.mrf.mxu0
    %v665 = vadd.f32 %v476, %v664
    %v666 = vpop.f32.mrf.mxu0
    %v667 = vadd.f32 %v480, %v666
    %668 = vmatprep.mubr.f32.mxu0 0.0
    %669 = vmatmul.mubr.f32.gmra.mxu0 %v169
    %v670 = vpop.f32.mrf.mxu0
    %v671 = vadd.f32 %v476, %v670
    %v672 = vpop.f32.mrf.mxu0
    %v673 = vadd.f32 %v480, %v672
    %674 = vmatprep.mubr.f32.mxu0 0.0
    %675 = vmatmul.mubr.f32.gmra.mxu0 %v172
    %v676 = vpop.f32.mrf.mxu0
    %v677 = vadd.f32 %v476, %v676
    %v678 = vpop.f32.mrf.mxu0
    %v679 = vadd.f32 %v480, %v678
    %680 = vmatprep.mubr.f32.mxu0 0.0
    %681 = vmatmul.mubr.f32.gmra.mxu0 %v175
    %v682 = vpop.f32.mrf.mxu0
    %v683 = vadd.f32 %v476, %v682
    %v684 = vpop.f32.mrf.mxu0
    %v685 = vadd.f32 %v480, %v684
    %686 = vmatprep.mubr.f32.mxu0 0.0
    %687 = vmatmul.mubr.f32.gmra.mxu0 %v178
    %v688 = vpop.f32.mrf.mxu0
    %v689 = vadd.f32 %v476, %v688
    %v690 = vpop.f32.mrf.mxu0
    %v691 = vadd.f32 %v480, %v690
    %692 = vmatprep.mubr.f32.mxu0 0.0
    %693 = vmatmul.mubr.f32.gmra.mxu0 %v181
    %v694 = vpop.f32.mrf.mxu0
    %v695 = vadd.f32 %v476, %v694
    %v696 = vpop.f32.mrf.mxu0
    %v697 = vadd.f32 %v480, %v696
    %698 = vmatprep.mubr.f32.mxu0 0.0
    %699 = vmatmul.mubr.f32.gmra.mxu0 %v184
    %v700 = vpop.f32.mrf.mxu0
    %v701 = vadd.f32 %v476, %v700
    %v702 = vpop.f32.mrf.mxu0
    %v703 = vadd.f32 %v480, %v702
    %704 = vmatprep.mubr.f32.mxu0 0.0
    %705 = vmatmul.mubr.f32.gmra.mxu0 %v187
    %v706 = vpop.f32.mrf.mxu0
    %v707 = vadd.f32 %v476, %v706
    %v708 = vpop.f32.mrf.mxu0
    %v709 = vadd.f32 %v480, %v708
    %710 = vdwg.mxu0
    %711 = vst [vmem:[#allocation3] sm:$0xff] %v552
    %712 = vst [vmem:[#allocation3 + $0x8] sm:$0xff] %v554
    %713 = vst [vmem:[#allocation3 + $0x10] sm:$0xff] %v665
    %714 = vst [vmem:[#allocation3 + $0x18] sm:$0xff] %v667
    %715 = vst [vmem:[#allocation3 + $0x20] sm:$0xff] %v558
    %716 = vst [vmem:[#allocation3 + $0x28] sm:$0xff] %v560
    %717 = vst [vmem:[#allocation3 + $0x30] sm:$0xff] %v671
    %718 = vst [vmem:[#allocation3 + $0x38] sm:$0xff] %v673
    %719 = vst [vmem:[#allocation3 + $0x40] sm:$0xff] %v564
    %720 = vst [vmem:[#allocation3 + $0x48] sm:$0xff] %v566
    %721 = vst [vmem:[#allocation3 + $0x50] sm:$0xff] %v677
    %722 = vst [vmem:[#allocation3 + $0x58] sm:$0xff] %v679
    %723 = vst [vmem:[#allocation3 + $0x60] sm:$0xff] %v570
    %724 = vst [vmem:[#allocation3 + $0x68] sm:$0xff] %v572
    %725 = vst [vmem:[#allocation3 + $0x70] sm:$0xff] %v683
    %726 = vst [vmem:[#allocation3 + $0x78] sm:$0xff] %v685
    %727 = vst [vmem:[#allocation3 + $0x80] sm:$0xff] %v576
    %728 = vst [vmem:[#allocation3 + $0x88] sm:$0xff] %v578
    %729 = vst [vmem:[#allocation3 + $0x90] sm:$0xff] %v689
    %730 = vst [vmem:[#allocation3 + $0x98] sm:$0xff] %v691
    %731 = vst [vmem:[#allocation3 + $0xa0] sm:$0xff] %v582
    %732 = vst [vmem:[#allocation3 + $0xa8] sm:$0xff] %v584
    %733 = vst [vmem:[#allocation3 + $0xb0] sm:$0xff] %v695
    %734 = vst [vmem:[#allocation3 + $0xb8] sm:$0xff] %v697
    %735 = vst [vmem:[#allocation3 + $0xc0] sm:$0xff] %v588
    %736 = vst [vmem:[#allocation3 + $0xc8] sm:$0xff] %v590
    %737 = vst [vmem:[#allocation3 + $0xd0] sm:$0xff] %v701
    %738 = vst [vmem:[#allocation3 + $0xd8] sm:$0xff] %v703
    %739 = vst [vmem:[#allocation3 + $0xe0] sm:$0xff] %v594
    %740 = vst [vmem:[#allocation3 + $0xe8] sm:$0xff] %v596
    %741 = vst [vmem:[#allocation3 + $0xf0] sm:$0xff] %v707
    %742 = vst [vmem:[#allocation3 + $0xf8] sm:$0xff] %v709
    %v743 = vld [vmem:[#allocation9] sm:$0xff]
    %v744 = vld [vmem:[#allocation9 + $0x8] sm:$0xff]
    %v745 = vld [vmem:[#allocation9 + $0x10] sm:$0xff]
    %v746 = vld [vmem:[#allocation9 + $0x18] sm:$0xff]
    %v747 = vld [vmem:[#allocation9 + $0x20] sm:$0xff]
    %v748 = vld [vmem:[#allocation9 + $0x28] sm:$0xff]
    %v749 = vld [vmem:[#allocation9 + $0x30] sm:$0xff]
    %v750 = vld [vmem:[#allocation9 + $0x38] sm:$0xff]
    %v751 = vld [vmem:[#allocation9 + $0x40] sm:$0xff]
    %v752 = vld [vmem:[#allocation9 + $0x48] sm:$0xff]
    %v753 = vld [vmem:[#allocation9 + $0x50] sm:$0xff]
    %v754 = vld [vmem:[#allocation9 + $0x58] sm:$0xff]
    %v755 = vld [vmem:[#allocation9 + $0x60] sm:$0xff]
    %v756 = vld [vmem:[#allocation9 + $0x68] sm:$0xff]
    %v757 = vld [vmem:[#allocation9 + $0x70] sm:$0xff]
    %v758 = vld [vmem:[#allocation9 + $0x78] sm:$0xff]
    %v759 = vld [vmem:[#allocation9 + $0x80] sm:$0xff]
    %v760 = vld [vmem:[#allocation9 + $0x88] sm:$0xff]
    %v761 = vld [vmem:[#allocation9 + $0x90] sm:$0xff]
    %v762 = vld [vmem:[#allocation9 + $0x98] sm:$0xff]
    %v763 = vld [vmem:[#allocation9 + $0xa0] sm:$0xff]
    %v764 = vld [vmem:[#allocation9 + $0xa8] sm:$0xff]
    %v765 = vld [vmem:[#allocation9 + $0xb0] sm:$0xff]
    %v766 = vld [vmem:[#allocation9 + $0xb8] sm:$0xff]
    %v767 = vld [vmem:[#allocation9 + $0xc0] sm:$0xff]
    %v768 = vld [vmem:[#allocation9 + $0xc8] sm:$0xff]
    %v769 = vld [vmem:[#allocation9 + $0xd0] sm:$0xff]
    %v770 = vld [vmem:[#allocation9 + $0xd8] sm:$0xff]
    %v771 = vld [vmem:[#allocation9 + $0xe0] sm:$0xff]
    %v772 = vld [vmem:[#allocation9 + $0xe8] sm:$0xff]
    %v773 = vld [vmem:[#allocation9 + $0xf0] sm:$0xff]
    %v774 = vld [vmem:[#allocation9 + $0xf8] sm:$0xff]
    %v775 = vld [vmem:[#allocation9 + $0x100] sm:$0xff]
    %v776 = vld [vmem:[#allocation9 + $0x108] sm:$0xff]
    %v777 = vld [vmem:[#allocation9 + $0x110] sm:$0xff]
    %v778 = vld [vmem:[#allocation9 + $0x118] sm:$0xff]
    %v779 = vld [vmem:[#allocation9 + $0x120] sm:$0xff]
    %v780 = vld [vmem:[#allocation9 + $0x128] sm:$0xff]
    %v781 = vld [vmem:[#allocation9 + $0x130] sm:$0xff]
    %v782 = vld [vmem:[#allocation9 + $0x138] sm:$0xff]
    %v783 = vld [vmem:[#allocation9 + $0x140] sm:$0xff]
    %v784 = vld [vmem:[#allocation9 + $0x148] sm:$0xff]
    %v785 = vld [vmem:[#allocation9 + $0x150] sm:$0xff]
    %v786 = vld [vmem:[#allocation9 + $0x158] sm:$0xff]
    %v787 = vld [vmem:[#allocation9 + $0x160] sm:$0xff]
    %v788 = vld [vmem:[#allocation9 + $0x168] sm:$0xff]
    %v789 = vld [vmem:[#allocation9 + $0x170] sm:$0xff]
    %v790 = vld [vmem:[#allocation9 + $0x178] sm:$0xff]
    %v791 = vld [vmem:[#allocation9 + $0x180] sm:$0xff]
    %v792 = vld [vmem:[#allocation9 + $0x188] sm:$0xff]
    %v793 = vld [vmem:[#allocation9 + $0x190] sm:$0xff]
    %v794 = vld [vmem:[#allocation9 + $0x198] sm:$0xff]
    %v795 = vld [vmem:[#allocation9 + $0x1a0] sm:$0xff]
    %v796 = vld [vmem:[#allocation9 + $0x1a8] sm:$0xff]
    %v797 = vld [vmem:[#allocation9 + $0x1b0] sm:$0xff]
    %v798 = vld [vmem:[#allocation9 + $0x1b8] sm:$0xff]
    %v799 = vld [vmem:[#allocation9 + $0x1c0] sm:$0xff]
    %v800 = vld [vmem:[#allocation9 + $0x1c8] sm:$0xff]
    %v801 = vld [vmem:[#allocation9 + $0x1d0] sm:$0xff]
    %v802 = vld [vmem:[#allocation9 + $0x1d8] sm:$0xff]
    %v803 = vld [vmem:[#allocation9 + $0x1e0] sm:$0xff]
    %v804 = vld [vmem:[#allocation9 + $0x1e8] sm:$0xff]
    %v805 = vld [vmem:[#allocation9 + $0x1f0] sm:$0xff]
    %v806 = vld [vmem:[#allocation9 + $0x1f8] sm:$0xff]
    %v807 = vld [vmem:[#allocation12] sm:$0xff]
    %v808 = vld [vmem:[#allocation12 + $0x8] sm:$0xff]
    %v809 = vld [vmem:[#allocation12 + $0x10] sm:$0xff]
    %v810 = vld [vmem:[#allocation12 + $0x18] sm:$0xff]
    %v811 = vld [vmem:[#allocation12 + $0x20] sm:$0xff]
    %v812 = vld [vmem:[#allocation12 + $0x28] sm:$0xff]
    %v813 = vld [vmem:[#allocation12 + $0x30] sm:$0xff]
    %v814 = vld [vmem:[#allocation12 + $0x38] sm:$0xff]
    %v815 = vld [vmem:[#allocation12 + $0x40] sm:$0xff]
    %v816 = vld [vmem:[#allocation12 + $0x48] sm:$0xff]
    %v817 = vld [vmem:[#allocation12 + $0x50] sm:$0xff]
    %v818 = vld [vmem:[#allocation12 + $0x58] sm:$0xff]
    %v819 = vld [vmem:[#allocation12 + $0x60] sm:$0xff]
    %v820 = vld [vmem:[#allocation12 + $0x68] sm:$0xff]
    %v821 = vld [vmem:[#allocation12 + $0x70] sm:$0xff]
    %v822 = vld [vmem:[#allocation12 + $0x78] sm:$0xff]
    %v823 = vld [vmem:[#allocation12 + $0x80] sm:$0xff]
    %v824 = vld [vmem:[#allocation12 + $0x88] sm:$0xff]
    %v825 = vld [vmem:[#allocation12 + $0x90] sm:$0xff]
    %v826 = vld [vmem:[#allocation12 + $0x98] sm:$0xff]
    %v827 = vld [vmem:[#allocation12 + $0xa0] sm:$0xff]
    %v828 = vld [vmem:[#allocation12 + $0xa8] sm:$0xff]
    %v829 = vld [vmem:[#allocation12 + $0xb0] sm:$0xff]
    %v830 = vld [vmem:[#allocation12 + $0xb8] sm:$0xff]
    %v831 = vld [vmem:[#allocation12 + $0xc0] sm:$0xff]
    %v832 = vld [vmem:[#allocation12 + $0xc8] sm:$0xff]
    %v833 = vld [vmem:[#allocation12 + $0xd0] sm:$0xff]
    %v834 = vld [vmem:[#allocation12 + $0xd8] sm:$0xff]
    %v835 = vld [vmem:[#allocation12 + $0xe0] sm:$0xff]
    %v836 = vld [vmem:[#allocation12 + $0xe8] sm:$0xff]
    %v837 = vld [vmem:[#allocation12 + $0xf0] sm:$0xff]
    %v838 = vld [vmem:[#allocation12 + $0xf8] sm:$0xff]
    %v839 = vld [vmem:[#allocation12 + $0x100] sm:$0xff]
    %v840 = vld [vmem:[#allocation12 + $0x108] sm:$0xff]
    %v841 = vld [vmem:[#allocation12 + $0x110] sm:$0xff]
    %v842 = vld [vmem:[#allocation12 + $0x118] sm:$0xff]
    %v843 = vld [vmem:[#allocation12 + $0x120] sm:$0xff]
    %v844 = vld [vmem:[#allocation12 + $0x128] sm:$0xff]
    %v845 = vld [vmem:[#allocation12 + $0x130] sm:$0xff]
    %v846 = vld [vmem:[#allocation12 + $0x138] sm:$0xff]
    %v847 = vld [vmem:[#allocation12 + $0x140] sm:$0xff]
    %v848 = vld [vmem:[#allocation12 + $0x148] sm:$0xff]
    %v849 = vld [vmem:[#allocation12 + $0x150] sm:$0xff]
    %v850 = vld [vmem:[#allocation12 + $0x158] sm:$0xff]
    %v851 = vld [vmem:[#allocation12 + $0x160] sm:$0xff]
    %v852 = vld [vmem:[#allocation12 + $0x168] sm:$0xff]
    %v853 = vld [vmem:[#allocation12 + $0x170] sm:$0xff]
    %v854 = vld [vmem:[#allocation12 + $0x178] sm:$0xff]
    %v855 = vld [vmem:[#allocation12 + $0x180] sm:$0xff]
    %v856 = vld [vmem:[#allocation12 + $0x188] sm:$0xff]
    %v857 = vld [vmem:[#allocation12 + $0x190] sm:$0xff]
    %v858 = vld [vmem:[#allocation12 + $0x198] sm:$0xff]
    %v859 = vld [vmem:[#allocation12 + $0x1a0] sm:$0xff]
    %v860 = vld [vmem:[#allocation12 + $0x1a8] sm:$0xff]
    %v861 = vld [vmem:[#allocation12 + $0x1b0] sm:$0xff]
    %v862 = vld [vmem:[#allocation12 + $0x1b8] sm:$0xff]
    %v863 = vld [vmem:[#allocation12 + $0x1c0] sm:$0xff]
    %v864 = vld [vmem:[#allocation12 + $0x1c8] sm:$0xff]
    %v865 = vld [vmem:[#allocation12 + $0x1d0] sm:$0xff]
    %v866 = vld [vmem:[#allocation12 + $0x1d8] sm:$0xff]
    %v867 = vld [vmem:[#allocation12 + $0x1e0] sm:$0xff]
    %v868 = vld [vmem:[#allocation12 + $0x1e8] sm:$0xff]
    %v869 = vld [vmem:[#allocation12 + $0x1f0] sm:$0xff]
    %v870 = vld [vmem:[#allocation12 + $0x1f8] sm:$0xff]
    %s871 = smul.u32 0, 4
    %s872 = smul.addr %s871, 8
    %s873 = scalar_lea.vmem [#allocation2], %s872
    %v874 = vld [vmem:[%s873] sm:$0xff]
    %v875 = vld [vmem:[%s873 + $0x8] sm:$0xff]
    %v876 = vld [vmem:[%s873 + $0x10] sm:$0xff]
    %v877 = vld [vmem:[%s873 + $0x18] sm:$0xff]
    %878 = vmatprep.subr.mxu0 %v804
    %879 = vmatpush1.msra.mxu0 %v803
    %880 = vmatprep.subr.mxu0 %v800
    %881 = vmatpush1.msra.mxu0 %v799
    %882 = vmatprep.subr.mxu0 %v796
    %883 = vmatpush1.msra.mxu0 %v795
    %884 = vmatprep.subr.mxu0 %v792
    %885 = vmatpush1.msra.mxu0 %v791
    %886 = vmatprep.subr.mxu0 %v788
    %887 = vmatpush1.msra.mxu0 %v787
    %888 = vmatprep.subr.mxu0 %v784
    %889 = vmatpush1.msra.mxu0 %v783
    %890 = vmatprep.subr.mxu0 %v780
    %891 = vmatpush1.msra.mxu0 %v779
    %892 = vmatprep.subr.mxu0 %v776
    %893 = vmatpush1.msra.mxu0 %v775
    %894 = vmatprep.subr.mxu0 %v772
    %895 = vmatpush1.msra.mxu0 %v771
    %896 = vmatprep.subr.mxu0 %v768
    %897 = vmatpush1.msra.mxu0 %v767
    %898 = vmatprep.subr.mxu0 %v764
    %899 = vmatpush1.msra.mxu0 %v763
    %900 = vmatprep.subr.mxu0 %v760
    %901 = vmatpush1.msra.mxu0 %v759
    %902 = vmatprep.subr.mxu0 %v756
    %903 = vmatpush1.msra.mxu0 %v755
    %904 = vmatprep.subr.mxu0 %v752
    %905 = vmatpush1.msra.mxu0 %v751
    %906 = vmatprep.subr.mxu0 %v748
    %907 = vmatpush1.msra.mxu0 %v747
    %908 = vmatprep.subr.mxu0 %v744
    %909 = vmatpush1.msra.mxu0 %v743
    %910 = vmatprep.subr.mxu0 0.0
    %911 = vmatpush2.msra.mxu0 0.0
    %912 = vmatprep.subr.mxu0 0.0
    %913 = vmatpush2.msra.mxu0 0.0
    %914 = vmatprep.subr.mxu0 0.0
    %915 = vmatpush2.msra.mxu0 0.0
    %916 = vmatprep.subr.mxu0 0.0
    %917 = vmatpush2.msra.mxu0 0.0
    %918 = vmatprep.subr.mxu0 0.0
    %919 = vmatpush2.msra.mxu0 0.0
    %920 = vmatprep.subr.mxu0 0.0
    %921 = vmatpush2.msra.mxu0 0.0
    %922 = vmatprep.subr.mxu0 0.0
    %923 = vmatpush2.msra.mxu0 0.0
    %924 = vmatprep.subr.mxu0 0.0
    %925 = vmatpush2.msra.mxu0 0.0
    %926 = vmatprep.subr.mxu0 0.0
    %927 = vmatpush2.msra.mxu0 0.0
    %928 = vmatprep.subr.mxu0 0.0
    %929 = vmatpush2.msra.mxu0 0.0
    %930 = vmatprep.subr.mxu0 0.0
    %931 = vmatpush2.msra.mxu0 0.0
    %932 = vmatprep.subr.mxu0 0.0
    %933 = vmatpush2.msra.mxu0 0.0
    %934 = vmatprep.subr.mxu0 0.0
    %935 = vmatpush2.msra.mxu0 0.0
    %936 = vmatprep.subr.mxu0 0.0
    %937 = vmatpush2.msra.mxu0 0.0
    %938 = vmatprep.subr.mxu0 0.0
    %939 = vmatpush2.msra.mxu0 0.0
    %940 = vmatprep.subr.mxu0 0.0
    %941 = vmatpush2.msra.mxu0 0.0
    %942 = vmatprep.mubr.f32.mxu0 0.0
    %943 = vmatmul.mubr.f32.gmra.mxu0 0.0
    %v944 = vpop.f32.mrf.mxu0
    %v945 = vadd.f32 0.0, %v944
    %v946 = vpop.f32.mrf.mxu0
    %v947 = vadd.f32 0.0, %v946
    %948 = vdwg.mxu0
    %949 = vmatprep.subr.mxu0 %v806
    %950 = vmatpush1.msra.mxu0 %v805
    %951 = vmatprep.subr.mxu0 %v802
    %952 = vmatpush1.msra.mxu0 %v801
    %953 = vmatprep.subr.mxu0 %v798
    %954 = vmatpush1.msra.mxu0 %v797
    %955 = vmatprep.subr.mxu0 %v794
    %956 = vmatpush1.msra.mxu0 %v793
    %957 = vmatprep.subr.mxu0 %v790
    %958 = vmatpush1.msra.mxu0 %v789
    %959 = vmatprep.subr.mxu0 %v786
    %960 = vmatpush1.msra.mxu0 %v785
    %961 = vmatprep.subr.mxu0 %v782
    %962 = vmatpush1.msra.mxu0 %v781
    %963 = vmatprep.subr.mxu0 %v778
    %964 = vmatpush1.msra.mxu0 %v777
    %965 = vmatprep.subr.mxu0 %v774
    %966 = vmatpush1.msra.mxu0 %v773
    %967 = vmatprep.subr.mxu0 %v770
    %968 = vmatpush1.msra.mxu0 %v769
    %969 = vmatprep.subr.mxu0 %v766
    %970 = vmatpush1.msra.mxu0 %v765
    %971 = vmatprep.subr.mxu0 %v762
    %972 = vmatpush1.msra.mxu0 %v761
    %973 = vmatprep.subr.mxu0 %v758
    %974 = vmatpush1.msra.mxu0 %v757
    %975 = vmatprep.subr.mxu0 %v754
    %976 = vmatpush1.msra.mxu0 %v753
    %977 = vmatprep.subr.mxu0 %v750
    %978 = vmatpush1.msra.mxu0 %v749
    %979 = vmatprep.subr.mxu0 %v746
    %980 = vmatpush1.msra.mxu0 %v745
    %981 = vmatprep.subr.mxu0 0.0
    %982 = vmatpush2.msra.mxu0 0.0
    %983 = vmatprep.subr.mxu0 0.0
    %984 = vmatpush2.msra.mxu0 0.0
    %985 = vmatprep.subr.mxu0 0.0
    %986 = vmatpush2.msra.mxu0 0.0
    %987 = vmatprep.subr.mxu0 0.0
    %988 = vmatpush2.msra.mxu0 0.0
    %989 = vmatprep.subr.mxu0 0.0
    %990 = vmatpush2.msra.mxu0 0.0
    %991 = vmatprep.subr.mxu0 0.0
    %992 = vmatpush2.msra.mxu0 0.0
    %993 = vmatprep.subr.mxu0 0.0
    %994 = vmatpush2.msra.mxu0 0.0
    %995 = vmatprep.subr.mxu0 0.0
    %996 = vmatpush2.msra.mxu0 0.0
    %997 = vmatprep.subr.mxu0 0.0
    %998 = vmatpush2.msra.mxu0 0.0
    %999 = vmatprep.subr.mxu0 0.0
    %1000 = vmatpush2.msra.mxu0 0.0
    %1001 = vmatprep.subr.mxu0 0.0
    %1002 = vmatpush2.msra.mxu0 0.0
    %1003 = vmatprep.subr.mxu0 0.0
    %1004 = vmatpush2.msra.mxu0 0.0
    %1005 = vmatprep.subr.mxu0 0.0
    %1006 = vmatpush2.msra.mxu0 0.0
    %1007 = vmatprep.subr.mxu0 0.0
    %1008 = vmatpush2.msra.mxu0 0.0
    %1009 = vmatprep.subr.mxu0 0.0
    %1010 = vmatpush2.msra.mxu0 0.0
    %1011 = vmatprep.subr.mxu0 0.0
    %1012 = vmatpush2.msra.mxu0 0.0
    %1013 = vmatprep.mubr.f32.mxu0 0.0
    %1014 = vmatmul.mubr.f32.gmra.mxu0 0.0
    %v1015 = vpop.f32.mrf.mxu0
    %v1016 = vadd.f32 0.0, %v1015
    %v1017 = vpop.f32.mrf.mxu0
    %v1018 = vadd.f32 0.0, %v1017
    %1019 = vdwg.mxu0
    %v1020 = vadd.f32 %v874, %v945
    %v1021 = vadd.f32 %v875, %v947
    %v1022 = vadd.f32 %v876, %v1016
    %v1023 = vadd.f32 %v877, %v1018
    %v1024 = vxor.u32 %v1020, 2147483648
    %v1025 = vmul.f32 %v1024, 1.442695
    %v1026 = vpow.pop %v1025
    %v1027 = vadd.f32 %v1026, 1.0
    %v1028 = vrcp.pop %v1027
    %v1029 = vmul.f32 1.0, %v1028
    %v1030 = vxor.u32 %v1021, 2147483648
    %v1031 = vmul.f32 %v1030, 1.442695
    %v1032 = vpow.pop %v1031
    %v1033 = vadd.f32 %v1032, 1.0
    %v1034 = vrcp.pop %v1033
    %v1035 = vmul.f32 1.0, %v1034
    %v1036 = vtanh.pop %v1022
    %v1037 = vxor.u32 %v1023, 2147483648
    %v1038 = vmul.f32 %v1037, 1.442695
    %v1039 = vpow.pop %v1038
    %v1040 = vadd.f32 %v1039, 1.0
    %v1041 = vrcp.pop %v1040
    %v1042 = vmul.f32 1.0, %v1041
    %v1043 = vmul.f32 %v1035, 0.0
    %v1044 = vmul.f32 %v1029, %v1036
    %v1045 = vadd.f32 %v1043, %v1044
    %v1046 = vtanh.pop %v1045
    %v1047 = vmul.f32 %v1042, %v1046
    %1048 = vst [vmem:[#allocation4] sm:$0xff] %v1047
    %s1049 = smul.u32 7, 4
    %s1050 = smul.addr %s1049, 8
    %s1051 = scalar_lea.vmem [#allocation3], %s1050
    %v1052 = vld [vmem:[%s1051] sm:$0xff]
    %v1053 = vld [vmem:[%s1051 + $0x8] sm:$0xff]
    %v1054 = vld [vmem:[%s1051 + $0x10] sm:$0xff]
    %v1055 = vld [vmem:[%s1051 + $0x18] sm:$0xff]
    %1056 = vmatprep.subr.mxu0 %v868
    %1057 = vmatpush1.msra.mxu0 %v867
    %1058 = vmatprep.subr.mxu0 %v864
    %1059 = vmatpush1.msra.mxu0 %v863
    %1060 = vmatprep.subr.mxu0 %v860
    %1061 = vmatpush1.msra.mxu0 %v859
    %1062 = vmatprep.subr.mxu0 %v856
    %1063 = vmatpush1.msra.mxu0 %v855
    %1064 = vmatprep.subr.mxu0 %v852
    %1065 = vmatpush1.msra.mxu0 %v851
    %1066 = vmatprep.subr.mxu0 %v848
    %1067 = vmatpush1.msra.mxu0 %v847
    %1068 = vmatprep.subr.mxu0 %v844
    %1069 = vmatpush1.msra.mxu0 %v843
    %1070 = vmatprep.subr.mxu0 %v840
    %1071 = vmatpush1.msra.mxu0 %v839
    %1072 = vmatprep.subr.mxu0 %v836
    %1073 = vmatpush1.msra.mxu0 %v835
    %1074 = vmatprep.subr.mxu0 %v832
    %1075 = vmatpush1.msra.mxu0 %v831
    %1076 = vmatprep.subr.mxu0 %v828
    %1077 = vmatpush1.msra.mxu0 %v827
    %1078 = vmatprep.subr.mxu0 %v824
    %1079 = vmatpush1.msra.mxu0 %v823
    %1080 = vmatprep.subr.mxu0 %v820
    %1081 = vmatpush1.msra.mxu0 %v819
    %1082 = vmatprep.subr.mxu0 %v816
    %1083 = vmatpush1.msra.mxu0 %v815
    %1084 = vmatprep.subr.mxu0 %v812
    %1085 = vmatpush1.msra.mxu0 %v811
    %1086 = vmatprep.subr.mxu0 %v808
    %1087 = vmatpush1.msra.mxu0 %v807
    %1088 = vmatprep.subr.mxu0 0.0
    %1089 = vmatpush2.msra.mxu0 0.0
    %1090 = vmatprep.subr.mxu0 0.0
    %1091 = vmatpush2.msra.mxu0 0.0
    %1092 = vmatprep.subr.mxu0 0.0
    %1093 = vmatpush2.msra.mxu0 0.0
    %1094 = vmatprep.subr.mxu0 0.0
    %1095 = vmatpush2.msra.mxu0 0.0
    %1096 = vmatprep.subr.mxu0 0.0
    %1097 = vmatpush2.msra.mxu0 0.0
    %1098 = vmatprep.subr.mxu0 0.0
    %1099 = vmatpush2.msra.mxu0 0.0
    %1100 = vmatprep.subr.mxu0 0.0
    %1101 = vmatpush2.msra.mxu0 0.0
    %1102 = vmatprep.subr.mxu0 0.0
    %1103 = vmatpush2.msra.mxu0 0.0
    %1104 = vmatprep.subr.mxu0 0.0
    %1105 = vmatpush2.msra.mxu0 0.0
    %1106 = vmatprep.subr.mxu0 0.0
    %1107 = vmatpush2.msra.mxu0 0.0
    %1108 = vmatprep.subr.mxu0 0.0
    %1109 = vmatpush2.msra.mxu0 0.0
    %1110 = vmatprep.subr.mxu0 0.0
    %1111 = vmatpush2.msra.mxu0 0.0
    %1112 = vmatprep.subr.mxu0 0.0
    %1113 = vmatpush2.msra.mxu0 0.0
    %1114 = vmatprep.subr.mxu0 0.0
    %1115 = vmatpush2.msra.mxu0 0.0
    %1116 = vmatprep.subr.mxu0 0.0
    %1117 = vmatpush2.msra.mxu0 0.0
    %1118 = vmatprep.subr.mxu0 0.0
    %1119 = vmatpush2.msra.mxu0 0.0
    %1120 = vmatprep.mubr.f32.mxu0 0.0
    %1121 = vmatmul.mubr.f32.gmra.mxu0 0.0
    %v1122 = vpop.f32.mrf.mxu0
    %v1123 = vadd.f32 0.0, %v1122
    %v1124 = vpop.f32.mrf.mxu0
    %v1125 = vadd.f32 0.0, %v1124
    %1126 = vdwg.mxu0
    %1127 = vmatprep.subr.mxu0 %v870
    %1128 = vmatpush1.msra.mxu0 %v869
    %1129 = vmatprep.subr.mxu0 %v866
    %1130 = vmatpush1.msra.mxu0 %v865
    %1131 = vmatprep.subr.mxu0 %v862
    %1132 = vmatpush1.msra.mxu0 %v861
    %1133 = vmatprep.subr.mxu0 %v858
    %1134 = vmatpush1.msra.mxu0 %v857
    %1135 = vmatprep.subr.mxu0 %v854
    %1136 = vmatpush1.msra.mxu0 %v853
    %1137 = vmatprep.subr.mxu0 %v850
    %1138 = vmatpush1.msra.mxu0 %v849
    %1139 = vmatprep.subr.mxu0 %v846
    %1140 = vmatpush1.msra.mxu0 %v845
    %1141 = vmatprep.subr.mxu0 %v842
    %1142 = vmatpush1.msra.mxu0 %v841
    %1143 = vmatprep.subr.mxu0 %v838
    %1144 = vmatpush1.msra.mxu0 %v837
    %1145 = vmatprep.subr.mxu0 %v834
    %1146 = vmatpush1.msra.mxu0 %v833
    %1147 = vmatprep.subr.mxu0 %v830
    %1148 = vmatpush1.msra.mxu0 %v829
    %1149 = vmatprep.subr.mxu0 %v826
    %1150 = vmatpush1.msra.mxu0 %v825
    %1151 = vmatprep.subr.mxu0 %v822
    %1152 = vmatpush1.msra.mxu0 %v821
    %1153 = vmatprep.subr.mxu0 %v818
    %1154 = vmatpush1.msra.mxu0 %v817
    %1155 = vmatprep.subr.mxu0 %v814
    %1156 = vmatpush1.msra.mxu0 %v813
    %1157 = vmatprep.subr.mxu0 %v810
    %1158 = vmatpush1.msra.mxu0 %v809
    %1159 = vmatprep.subr.mxu0 0.0
    %1160 = vmatpush2.msra.mxu0 0.0
    %1161 = vmatprep.subr.mxu0 0.0
    %1162 = vmatpush2.msra.mxu0 0.0
    %1163 = vmatprep.subr.mxu0 0.0
    %1164 = vmatpush2.msra.mxu0 0.0
    %1165 = vmatprep.subr.mxu0 0.0
    %1166 = vmatpush2.msra.mxu0 0.0
    %1167 = vmatprep.subr.mxu0 0.0
    %1168 = vmatpush2.msra.mxu0 0.0
    %1169 = vmatprep.subr.mxu0 0.0
    %1170 = vmatpush2.msra.mxu0 0.0
    %1171 = vmatprep.subr.mxu0 0.0
    %1172 = vmatpush2.msra.mxu0 0.0
    %1173 = vmatprep.subr.mxu0 0.0
    %1174 = vmatpush2.msra.mxu0 0.0
    %1175 = vmatprep.subr.mxu0 0.0
    %1176 = vmatpush2.msra.mxu0 0.0
    %1177 = vmatprep.subr.mxu0 0.0
    %1178 = vmatpush2.msra.mxu0 0.0
    %1179 = vmatprep.subr.mxu0 0.0
    %1180 = vmatpush2.msra.mxu0 0.0
    %1181 = vmatprep.subr.mxu0 0.0
    %1182 = vmatpush2.msra.mxu0 0.0
    %1183 = vmatprep.subr.mxu0 0.0
    %1184 = vmatpush2.msra.mxu0 0.0
    %1185 = vmatprep.subr.mxu0 0.0
    %1186 = vmatpush2.msra.mxu0 0.0
    %1187 = vmatprep.subr.mxu0 0.0
    %1188 = vmatpush2.msra.mxu0 0.0
    %1189 = vmatprep.subr.mxu0 0.0
    %1190 = vmatpush2.msra.mxu0 0.0
    %1191 = vmatprep.mubr.f32.mxu0 0.0
    %1192 = vmatmul.mubr.f32.gmra.mxu0 0.0
    %v1193 = vpop.f32.mrf.mxu0
    %v1194 = vadd.f32 0.0, %v1193
    %v1195 = vpop.f32.mrf.mxu0
    %v1196 = vadd.f32 0.0, %v1195
    %1197 = vdwg.mxu0
    %v1198 = vadd.f32 %v1052, %v1123
    %v1199 = vadd.f32 %v1053, %v1125
    %v1200 = vadd.f32 %v1054, %v1194
    %v1201 = vadd.f32 %v1055, %v1196
    %v1202 = vxor.u32 %v1198, 2147483648
    %v1203 = vmul.f32 %v1202, 1.442695
    %v1204 = vpow.pop %v1203
    %v1205 = vadd.f32 %v1204, 1.0
    %v1206 = vrcp.pop %v1205
    %v1207 = vmul.f32 1.0, %v1206
    %v1208 = vxor.u32 %v1199, 2147483648
    %v1209 = vmul.f32 %v1208, 1.442695
    %v1210 = vpow.pop %v1209
    %v1211 = vadd.f32 %v1210, 1.0
    %v1212 = vrcp.pop %v1211
    %v1213 = vmul.f32 1.0, %v1212
    %v1214 = vtanh.pop %v1200
    %v1215 = vxor.u32 %v1201, 2147483648
    %v1216 = vmul.f32 %v1215, 1.442695
    %v1217 = vpow.pop %v1216
    %v1218 = vadd.f32 %v1217, 1.0
    %v1219 = vrcp.pop %v1218
    %v1220 = vmul.f32 1.0, %v1219
    %v1221 = vmul.f32 %v1213, 0.0
    %v1222 = vmul.f32 %v1207, %v1214
    %v1223 = vadd.f32 %v1221, %v1222
    %v1224 = vtanh.pop %v1223
    %v1225 = vmul.f32 %v1220, %v1224
    %s1226 = scalar_lea.vmem [#allocation5], 56
    %1227 = vst [vmem:[%s1226] sm:$0xff] %v1225
    %s1228 = smul.u32 1, 4
    %s1229 = smul.addr %s1228, 8
    %s1230 = scalar_lea.vmem [#allocation2], %s1229
    %v1231 = vld [vmem:[%s1230] sm:$0xff]
    %v1232 = vld [vmem:[%s1230 + $0x8] sm:$0xff]
    %v1233 = vld [vmem:[%s1230 + $0x10] sm:$0xff]
    %v1234 = vld [vmem:[%s1230 + $0x18] sm:$0xff]
    %1235 = vmatprep.subr.mxu0 %v804
    %1236 = vmatpush1.msra.mxu0 %v803
    %1237 = vmatprep.subr.mxu0 %v800
    %1238 = vmatpush1.msra.mxu0 %v799
    %1239 = vmatprep.subr.mxu0 %v796
    %1240 = vmatpush1.msra.mxu0 %v795
    %1241 = vmatprep.subr.mxu0 %v792
    %1242 = vmatpush1.msra.mxu0 %v791
    %1243 = vmatprep.subr.mxu0 %v788
    %1244 = vmatpush1.msra.mxu0 %v787
    %1245 = vmatprep.subr.mxu0 %v784
    %1246 = vmatpush1.msra.mxu0 %v783
    %1247 = vmatprep.subr.mxu0 %v780
    %1248 = vmatpush1.msra.mxu0 %v779
    %1249 = vmatprep.subr.mxu0 %v776
    %1250 = vmatpush1.msra.mxu0 %v775
    %1251 = vmatprep.subr.mxu0 %v772
    %1252 = vmatpush1.msra.mxu0 %v771
    %1253 = vmatprep.subr.mxu0 %v768
    %1254 = vmatpush1.msra.mxu0 %v767
    %1255 = vmatprep.subr.mxu0 %v764
    %1256 = vmatpush1.msra.mxu0 %v763
    %1257 = vmatprep.subr.mxu0 %v760
    %1258 = vmatpush1.msra.mxu0 %v759
    %1259 = vmatprep.subr.mxu0 %v756
    %1260 = vmatpush1.msra.mxu0 %v755
    %1261 = vmatprep.subr.mxu0 %v752
    %1262 = vmatpush1.msra.mxu0 %v751
    %1263 = vmatprep.subr.mxu0 %v748
    %1264 = vmatpush1.msra.mxu0 %v747
    %1265 = vmatprep.subr.mxu0 %v744
    %1266 = vmatpush1.msra.mxu0 %v743
    %1267 = vmatprep.subr.mxu0 0.0
    %1268 = vmatpush2.msra.mxu0 0.0
    %1269 = vmatprep.subr.mxu0 0.0
    %1270 = vmatpush2.msra.mxu0 0.0
    %1271 = vmatprep.subr.mxu0 0.0
    %1272 = vmatpush2.msra.mxu0 0.0
    %1273 = vmatprep.subr.mxu0 0.0
    %1274 = vmatpush2.msra.mxu0 0.0
    %1275 = vmatprep.subr.mxu0 0.0
    %1276 = vmatpush2.msra.mxu0 0.0
    %1277 = vmatprep.subr.mxu0 0.0
    %1278 = vmatpush2.msra.mxu0 0.0
    %1279 = vmatprep.subr.mxu0 0.0
    %1280 = vmatpush2.msra.mxu0 0.0
    %1281 = vmatprep.subr.mxu0 0.0
    %1282 = vmatpush2.msra.mxu0 0.0
    %1283 = vmatprep.subr.mxu0 0.0
    %1284 = vmatpush2.msra.mxu0 0.0
    %1285 = vmatprep.subr.mxu0 0.0
    %1286 = vmatpush2.msra.mxu0 0.0
    %1287 = vmatprep.subr.mxu0 0.0
    %1288 = vmatpush2.msra.mxu0 0.0
    %1289 = vmatprep.subr.mxu0 0.0
    %1290 = vmatpush2.msra.mxu0 0.0
    %1291 = vmatprep.subr.mxu0 0.0
    %1292 = vmatpush2.msra.mxu0 0.0
    %1293 = vmatprep.subr.mxu0 0.0
    %1294 = vmatpush2.msra.mxu0 0.0
    %1295 = vmatprep.subr.mxu0 0.0
    %1296 = vmatpush2.msra.mxu0 0.0
    %1297 = vmatprep.subr.mxu0 0.0
    %1298 = vmatpush2.msra.mxu0 0.0
    %1299 = vmatprep.mubr.f32.mxu0 0.0
    %1300 = vmatmul.mubr.f32.gmra.mxu0 %v1047
    %v1301 = vpop.f32.mrf.mxu0
    %v1302 = vadd.f32 0.0, %v1301
    %v1303 = vpop.f32.mrf.mxu0
    %v1304 = vadd.f32 0.0, %v1303
    %1305 = vdwg.mxu0
    %1306 = vmatprep.subr.mxu0 %v806
    %1307 = vmatpush1.msra.mxu0 %v805
    %1308 = vmatprep.subr.mxu0 %v802
    %1309 = vmatpush1.msra.mxu0 %v801
    %1310 = vmatprep.subr.mxu0 %v798
    %1311 = vmatpush1.msra.mxu0 %v797
    %1312 = vmatprep.subr.mxu0 %v794
    %1313 = vmatpush1.msra.mxu0 %v793
    %1314 = vmatprep.subr.mxu0 %v790
    %1315 = vmatpush1.msra.mxu0 %v789
    %1316 = vmatprep.subr.mxu0 %v786
    %1317 = vmatpush1.msra.mxu0 %v785
    %1318 = vmatprep.subr.mxu0 %v782
    %1319 = vmatpush1.msra.mxu0 %v781
    %1320 = vmatprep.subr.mxu0 %v778
    %1321 = vmatpush1.msra.mxu0 %v777
    %1322 = vmatprep.subr.mxu0 %v774
    %1323 = vmatpush1.msra.mxu0 %v773
    %1324 = vmatprep.subr.mxu0 %v770
    %1325 = vmatpush1.msra.mxu0 %v769
    %1326 = vmatprep.subr.mxu0 %v766
    %1327 = vmatpush1.msra.mxu0 %v765
    %1328 = vmatprep.subr.mxu0 %v762
    %1329 = vmatpush1.msra.mxu0 %v761
    %1330 = vmatprep.subr.mxu0 %v758
    %1331 = vmatpush1.msra.mxu0 %v757
    %1332 = vmatprep.subr.mxu0 %v754
    %1333 = vmatpush1.msra.mxu0 %v753
    %1334 = vmatprep.subr.mxu0 %v750
    %1335 = vmatpush1.msra.mxu0 %v749
    %1336 = vmatprep.subr.mxu0 %v746
    %1337 = vmatpush1.msra.mxu0 %v745
    %1338 = vmatprep.subr.mxu0 0.0
    %1339 = vmatpush2.msra.mxu0 0.0
    %1340 = vmatprep.subr.mxu0 0.0
    %1341 = vmatpush2.msra.mxu0 0.0
    %1342 = vmatprep.subr.mxu0 0.0
    %1343 = vmatpush2.msra.mxu0 0.0
    %1344 = vmatprep.subr.mxu0 0.0
    %1345 = vmatpush2.msra.mxu0 0.0
    %1346 = vmatprep.subr.mxu0 0.0
    %1347 = vmatpush2.msra.mxu0 0.0
    %1348 = vmatprep.subr.mxu0 0.0
    %1349 = vmatpush2.msra.mxu0 0.0
    %1350 = vmatprep.subr.mxu0 0.0
    %1351 = vmatpush2.msra.mxu0 0.0
    %1352 = vmatprep.subr.mxu0 0.0
    %1353 = vmatpush2.msra.mxu0 0.0
    %1354 = vmatprep.subr.mxu0 0.0
    %1355 = vmatpush2.msra.mxu0 0.0
    %1356 = vmatprep.subr.mxu0 0.0
    %1357 = vmatpush2.msra.mxu0 0.0
    %1358 = vmatprep.subr.mxu0 0.0
    %1359 = vmatpush2.msra.mxu0 0.0
    %1360 = vmatprep.subr.mxu0 0.0
    %1361 = vmatpush2.msra.mxu0 0.0
    %1362 = vmatprep.subr.mxu0 0.0
    %1363 = vmatpush2.msra.mxu0 0.0
    %1364 = vmatprep.subr.mxu0 0.0
    %1365 = vmatpush2.msra.mxu0 0.0
    %1366 = vmatprep.subr.mxu0 0.0
    %1367 = vmatpush2.msra.mxu0 0.0
    %1368 = vmatprep.subr.mxu0 0.0
    %1369 = vmatpush2.msra.mxu0 0.0
    %1370 = vmatprep.mubr.f32.mxu0 0.0
    %1371 = vmatmul.mubr.f32.gmra.mxu0 %v1047
    %v1372 = vpop.f32.mrf.mxu0
    %v1373 = vadd.f32 0.0, %v1372
    %v1374 = vpop.f32.mrf.mxu0
    %v1375 = vadd.f32 0.0, %v1374
    %1376 = vdwg.mxu0
    %v1377 = vadd.f32 %v1231, %v1302
    %v1378 = vadd.f32 %v1232, %v1304
    %v1379 = vadd.f32 %v1233, %v1373
    %v1380 = vadd.f32 %v1234, %v1375
    %v1381 = vxor.u32 %v1377, 2147483648
    %v1382 = vmul.f32 %v1381, 1.442695
    %v1383 = vpow.pop %v1382
    %v1384 = vadd.f32 %v1383, 1.0
    %v1385 = vrcp.pop %v1384
    %v1386 = vmul.f32 1.0, %v1385
    %v1387 = vxor.u32 %v1378, 2147483648
    %v1388 = vmul.f32 %v1387, 1.442695
    %v1389 = vpow.pop %v1388
    %v1390 = vadd.f32 %v1389, 1.0
    %v1391 = vrcp.pop %v1390
    %v1392 = vmul.f32 1.0, %v1391
    %v1393 = vtanh.pop %v1379
    %v1394 = vxor.u32 %v1380, 2147483648
    %v1395 = vmul.f32 %v1394, 1.442695
    %v1396 = vpow.pop %v1395
    %v1397 = vadd.f32 %v1396, 1.0
    %v1398 = vrcp.pop %v1397
    %v1399 = vmul.f32 1.0, %v1398
    %v1400 = vmul.f32 %v1392, %v1045
    %v1401 = vmul.f32 %v1386, %v1393
    %v1402 = vadd.f32 %v1400, %v1401
    %v1403 = vtanh.pop %v1402
    %v1404 = vmul.f32 %v1399, %v1403
    %s1405 = scalar_lea.vmem [#allocation4], 8
    %1406 = vst [vmem:[%s1405] sm:$0xff] %v1404
    %s1407 = smul.u32 6, 4
    %s1408 = smul.addr %s1407, 8
    %s1409 = scalar_lea.vmem [#allocation3], %s1408
    %v1410 = vld [vmem:[%s1409] sm:$0xff]
    %v1411 = vld [vmem:[%s1409 + $0x8] sm:$0xff]
    %v1412 = vld [vmem:[%s1409 + $0x10] sm:$0xff]
    %v1413 = vld [vmem:[%s1409 + $0x18] sm:$0xff]
    %1414 = vmatprep.subr.mxu0 %v868
    %1415 = vmatpush1.msra.mxu0 %v867
    %1416 = vmatprep.subr.mxu0 %v864
    %1417 = vmatpush1.msra.mxu0 %v863
    %1418 = vmatprep.subr.mxu0 %v860
    %1419 = vmatpush1.msra.mxu0 %v859
    %1420 = vmatprep.subr.mxu0 %v856
    %1421 = vmatpush1.msra.mxu0 %v855
    %1422 = vmatprep.subr.mxu0 %v852
    %1423 = vmatpush1.msra.mxu0 %v851
    %1424 = vmatprep.subr.mxu0 %v848
    %1425 = vmatpush1.msra.mxu0 %v847
    %1426 = vmatprep.subr.mxu0 %v844
    %1427 = vmatpush1.msra.mxu0 %v843
    %1428 = vmatprep.subr.mxu0 %v840
    %1429 = vmatpush1.msra.mxu0 %v839
    %1430 = vmatprep.subr.mxu0 %v836
    %1431 = vmatpush1.msra.mxu0 %v835
    %1432 = vmatprep.subr.mxu0 %v832
    %1433 = vmatpush1.msra.mxu0 %v831
    %1434 = vmatprep.subr.mxu0 %v828
    %1435 = vmatpush1.msra.mxu0 %v827
    %1436 = vmatprep.subr.mxu0 %v824
    %1437 = vmatpush1.msra.mxu0 %v823
    %1438 = vmatprep.subr.mxu0 %v820
    %1439 = vmatpush1.msra.mxu0 %v819
    %1440 = vmatprep.subr.mxu0 %v816
    %1441 = vmatpush1.msra.mxu0 %v815
    %1442 = vmatprep.subr.mxu0 %v812
    %1443 = vmatpush1.msra.mxu0 %v811
    %1444 = vmatprep.subr.mxu0 %v808
    %1445 = vmatpush1.msra.mxu0 %v807
    %1446 = vmatprep.subr.mxu0 0.0
    %1447 = vmatpush2.msra.mxu0 0.0
    %1448 = vmatprep.subr.mxu0 0.0
    %1449 = vmatpush2.msra.mxu0 0.0
    %1450 = vmatprep.subr.mxu0 0.0
    %1451 = vmatpush2.msra.mxu0 0.0
    %1452 = vmatprep.subr.mxu0 0.0
    %1453 = vmatpush2.msra.mxu0 0.0
    %1454 = vmatprep.subr.mxu0 0.0
    %1455 = vmatpush2.msra.mxu0 0.0
    %1456 = vmatprep.subr.mxu0 0.0
    %1457 = vmatpush2.msra.mxu0 0.0
    %1458 = vmatprep.subr.mxu0 0.0
    %1459 = vmatpush2.msra.mxu0 0.0
    %1460 = vmatprep.subr.mxu0 0.0
    %1461 = vmatpush2.msra.mxu0 0.0
    %1462 = vmatprep.subr.mxu0 0.0
    %1463 = vmatpush2.msra.mxu0 0.0
    %1464 = vmatprep.subr.mxu0 0.0
    %1465 = vmatpush2.msra.mxu0 0.0
    %1466 = vmatprep.subr.mxu0 0.0
    %1467 = vmatpush2.msra.mxu0 0.0
    %1468 = vmatprep.subr.mxu0 0.0
    %1469 = vmatpush2.msra.mxu0 0.0
    %1470 = vmatprep.subr.mxu0 0.0
    %1471 = vmatpush2.msra.mxu0 0.0
    %1472 = vmatprep.subr.mxu0 0.0
    %1473 = vmatpush2.msra.mxu0 0.0
    %1474 = vmatprep.subr.mxu0 0.0
    %1475 = vmatpush2.msra.mxu0 0.0
    %1476 = vmatprep.subr.mxu0 0.0
    %1477 = vmatpush2.msra.mxu0 0.0
    %1478 = vmatprep.mubr.f32.mxu0 0.0
    %1479 = vmatmul.mubr.f32.gmra.mxu0 %v1225
    %v1480 = vpop.f32.mrf.mxu0
    %v1481 = vadd.f32 0.0, %v1480
    %v1482 = vpop.f32.mrf.mxu0
    %v1483 = vadd.f32 0.0, %v1482
    %1484 = vdwg.mxu0
    %1485 = vmatprep.subr.mxu0 %v870
    %1486 = vmatpush1.msra.mxu0 %v869
    %1487 = vmatprep.subr.mxu0 %v866
    %1488 = vmatpush1.msra.mxu0 %v865
    %1489 = vmatprep.subr.mxu0 %v862
    %1490 = vmatpush1.msra.mxu0 %v861
    %1491 = vmatprep.subr.mxu0 %v858
    %1492 = vmatpush1.msra.mxu0 %v857
    %1493 = vmatprep.subr.mxu0 %v854
    %1494 = vmatpush1.msra.mxu0 %v853
    %1495 = vmatprep.subr.mxu0 %v850
    %1496 = vmatpush1.msra.mxu0 %v849
    %1497 = vmatprep.subr.mxu0 %v846
    %1498 = vmatpush1.msra.mxu0 %v845
    %1499 = vmatprep.subr.mxu0 %v842
    %1500 = vmatpush1.msra.mxu0 %v841
    %1501 = vmatprep.subr.mxu0 %v838
    %1502 = vmatpush1.msra.mxu0 %v837
    %1503 = vmatprep.subr.mxu0 %v834
    %1504 = vmatpush1.msra.mxu0 %v833
    %1505 = vmatprep.subr.mxu0 %v830
    %1506 = vmatpush1.msra.mxu0 %v829
    %1507 = vmatprep.subr.mxu0 %v826
    %1508 = vmatpush1.msra.mxu0 %v825
    %1509 = vmatprep.subr.mxu0 %v822
    %1510 = vmatpush1.msra.mxu0 %v821
    %1511 = vmatprep.subr.mxu0 %v818
    %1512 = vmatpush1.msra.mxu0 %v817
    %1513 = vmatprep.subr.mxu0 %v814
    %1514 = vmatpush1.msra.mxu0 %v813
    %1515 = vmatprep.subr.mxu0 %v810
    %1516 = vmatpush1.msra.mxu0 %v809
    %1517 = vmatprep.subr.mxu0 0.0
    %1518 = vmatpush2.msra.mxu0 0.0
    %1519 = vmatprep.subr.mxu0 0.0
    %1520 = vmatpush2.msra.mxu0 0.0
    %1521 = vmatprep.subr.mxu0 0.0
    %1522 = vmatpush2.msra.mxu0 0.0
    %1523 = vmatprep.subr.mxu0 0.0
    %1524 = vmatpush2.msra.mxu0 0.0
    %1525 = vmatprep.subr.mxu0 0.0
    %1526 = vmatpush2.msra.mxu0 0.0
    %1527 = vmatprep.subr.mxu0 0.0
    %1528 = vmatpush2.msra.mxu0 0.0
    %1529 = vmatprep.subr.mxu0 0.0
    %1530 = vmatpush2.msra.mxu0 0.0
    %1531 = vmatprep.subr.mxu0 0.0
    %1532 = vmatpush2.msra.mxu0 0.0
    %1533 = vmatprep.subr.mxu0 0.0
    %1534 = vmatpush2.msra.mxu0 0.0
    %1535 = vmatprep.subr.mxu0 0.0
    %1536 = vmatpush2.msra.mxu0 0.0
    %1537 = vmatprep.subr.mxu0 0.0
    %1538 = vmatpush2.msra.mxu0 0.0
    %1539 = vmatprep.subr.mxu0 0.0
    %1540 = vmatpush2.msra.mxu0 0.0
    %1541 = vmatprep.subr.mxu0 0.0
    %1542 = vmatpush2.msra.mxu0 0.0
    %1543 = vmatprep.subr.mxu0 0.0
    %1544 = vmatpush2.msra.mxu0 0.0
    %1545 = vmatprep.subr.mxu0 0.0
    %1546 = vmatpush2.msra.mxu0 0.0
    %1547 = vmatprep.subr.mxu0 0.0
    %1548 = vmatpush2.msra.mxu0 0.0
    %1549 = vmatprep.mubr.f32.mxu0 0.0
    %1550 = vmatmul.mubr.f32.gmra.mxu0 %v1225
    %v1551 = vpop.f32.mrf.mxu0
    %v1552 = vadd.f32 0.0, %v1551
    %v1553 = vpop.f32.mrf.mxu0
    %v1554 = vadd.f32 0.0, %v1553
    %1555 = vdwg.mxu0
    %v1556 = vadd.f32 %v1410, %v1481
    %v1557 = vadd.f32 %v1411, %v1483
    %v1558 = vadd.f32 %v1412, %v1552
    %v1559 = vadd.f32 %v1413, %v1554
    %v1560 = vxor.u32 %v1556, 2147483648
    %v1561 = vmul.f32 %v1560, 1.442695
    %v1562 = vpow.pop %v1561
    %v1563 = vadd.f32 %v1562, 1.0
    %v1564 = vrcp.pop %v1563
    %v1565 = vmul.f32 1.0, %v1564
    %v1566 = vxor.u32 %v1557, 2147483648
    %v1567 = vmul.f32 %v1566, 1.442695
    %v1568 = vpow.pop %v1567
    %v1569 = vadd.f32 %v1568, 1.0
    %v1570 = vrcp.pop %v1569
    %v1571 = vmul.f32 1.0, %v1570
    %v1572 = vtanh.pop %v1558
    %v1573 = vxor.u32 %v1559, 2147483648
    %v1574 = vmul.f32 %v1573, 1.442695
    %v1575 = vpow.pop %v1574
    %v1576 = vadd.f32 %v1575, 1.0
    %v1577 = vrcp.pop %v1576
    %v1578 = vmul.f32 1.0, %v1577
    %v1579 = vmul.f32 %v1571, %v1223
    %v1580 = vmul.f32 %v1565, %v1572
    %v1581 = vadd.f32 %v1579, %v1580
    %v1582 = vtanh.pop %v1581
    %v1583 = vmul.f32 %v1578, %v1582
    %s1584 = scalar_lea.vmem [#allocation5], 48
    %1585 = vst [vmem:[%s1584] sm:$0xff] %v1583
    %s1586 = smul.u32 2, 4
    %s1587 = smul.addr %s1586, 8
    %s1588 = scalar_lea.vmem [#allocation2], %s1587
    %v1589 = vld [vmem:[%s1588] sm:$0xff]
    %v1590 = vld [vmem:[%s1588 + $0x8] sm:$0xff]
    %v1591 = vld [vmem:[%s1588 + $0x10] sm:$0xff]
    %v1592 = vld [vmem:[%s1588 + $0x18] sm:$0xff]
    %1593 = vmatprep.subr.mxu0 %v804
    %1594 = vmatpush1.msra.mxu0 %v803
    %1595 = vmatprep.subr.mxu0 %v800
    %1596 = vmatpush1.msra.mxu0 %v799
    %1597 = vmatprep.subr.mxu0 %v796
    %1598 = vmatpush1.msra.mxu0 %v795
    %1599 = vmatprep.subr.mxu0 %v792
    %1600 = vmatpush1.msra.mxu0 %v791
    %1601 = vmatprep.subr.mxu0 %v788
    %1602 = vmatpush1.msra.mxu0 %v787
    %1603 = vmatprep.subr.mxu0 %v784
    %1604 = vmatpush1.msra.mxu0 %v783
    %1605 = vmatprep.subr.mxu0 %v780
    %1606 = vmatpush1.msra.mxu0 %v779
    %1607 = vmatprep.subr.mxu0 %v776
    %1608 = vmatpush1.msra.mxu0 %v775
    %1609 = vmatprep.subr.mxu0 %v772
    %1610 = vmatpush1.msra.mxu0 %v771
    %1611 = vmatprep.subr.mxu0 %v768
    %1612 = vmatpush1.msra.mxu0 %v767
    %1613 = vmatprep.subr.mxu0 %v764
    %1614 = vmatpush1.msra.mxu0 %v763
    %1615 = vmatprep.subr.mxu0 %v760
    %1616 = vmatpush1.msra.mxu0 %v759
    %1617 = vmatprep.subr.mxu0 %v756
    %1618 = vmatpush1.msra.mxu0 %v755
    %1619 = vmatprep.subr.mxu0 %v752
    %1620 = vmatpush1.msra.mxu0 %v751
    %1621 = vmatprep.subr.mxu0 %v748
    %1622 = vmatpush1.msra.mxu0 %v747
    %1623 = vmatprep.subr.mxu0 %v744
    %1624 = vmatpush1.msra.mxu0 %v743
    %1625 = vmatprep.subr.mxu0 0.0
    %1626 = vmatpush2.msra.mxu0 0.0
    %1627 = vmatprep.subr.mxu0 0.0
    %1628 = vmatpush2.msra.mxu0 0.0
    %1629 = vmatprep.subr.mxu0 0.0
    %1630 = vmatpush2.msra.mxu0 0.0
    %1631 = vmatprep.subr.mxu0 0.0
    %1632 = vmatpush2.msra.mxu0 0.0
    %1633 = vmatprep.subr.mxu0 0.0
    %1634 = vmatpush2.msra.mxu0 0.0
    %1635 = vmatprep.subr.mxu0 0.0
    %1636 = vmatpush2.msra.mxu0 0.0
    %1637 = vmatprep.subr.mxu0 0.0
    %1638 = vmatpush2.msra.mxu0 0.0
    %1639 = vmatprep.subr.mxu0 0.0
    %1640 = vmatpush2.msra.mxu0 0.0
    %1641 = vmatprep.subr.mxu0 0.0
    %1642 = vmatpush2.msra.mxu0 0.0
    %1643 = vmatprep.subr.mxu0 0.0
    %1644 = vmatpush2.msra.mxu0 0.0
    %1645 = vmatprep.subr.mxu0 0.0
    %1646 = vmatpush2.msra.mxu0 0.0
    %1647 = vmatprep.subr.mxu0 0.0
    %1648 = vmatpush2.msra.mxu0 0.0
    %1649 = vmatprep.subr.mxu0 0.0
    %1650 = vmatpush2.msra.mxu0 0.0
    %1651 = vmatprep.subr.mxu0 0.0
    %1652 = vmatpush2.msra.mxu0 0.0
    %1653 = vmatprep.subr.mxu0 0.0
    %1654 = vmatpush2.msra.mxu0 0.0
    %1655 = vmatprep.subr.mxu0 0.0
    %1656 = vmatpush2.msra.mxu0 0.0
    %1657 = vmatprep.mubr.f32.mxu0 0.0
    %1658 = vmatmul.mubr.f32.gmra.mxu0 %v1404
    %v1659 = vpop.f32.mrf.mxu0
    %v1660 = vadd.f32 0.0, %v1659
    %v1661 = vpop.f32.mrf.mxu0
    %v1662 = vadd.f32 0.0, %v1661
    %1663 = vdwg.mxu0
    %1664 = vmatprep.subr.mxu0 %v806
    %1665 = vmatpush1.msra.mxu0 %v805
    %1666 = vmatprep.subr.mxu0 %v802
    %1667 = vmatpush1.msra.mxu0 %v801
    %1668 = vmatprep.subr.mxu0 %v798
    %1669 = vmatpush1.msra.mxu0 %v797
    %1670 = vmatprep.subr.mxu0 %v794
    %1671 = vmatpush1.msra.mxu0 %v793
    %1672 = vmatprep.subr.mxu0 %v790
    %1673 = vmatpush1.msra.mxu0 %v789
    %1674 = vmatprep.subr.mxu0 %v786
    %1675 = vmatpush1.msra.mxu0 %v785
    %1676 = vmatprep.subr.mxu0 %v782
    %1677 = vmatpush1.msra.mxu0 %v781
    %1678 = vmatprep.subr.mxu0 %v778
    %1679 = vmatpush1.msra.mxu0 %v777
    %1680 = vmatprep.subr.mxu0 %v774
    %1681 = vmatpush1.msra.mxu0 %v773
    %1682 = vmatprep.subr.mxu0 %v770
    %1683 = vmatpush1.msra.mxu0 %v769
    %1684 = vmatprep.subr.mxu0 %v766
    %1685 = vmatpush1.msra.mxu0 %v765
    %1686 = vmatprep.subr.mxu0 %v762
    %1687 = vmatpush1.msra.mxu0 %v761
    %1688 = vmatprep.subr.mxu0 %v758
    %1689 = vmatpush1.msra.mxu0 %v757
    %1690 = vmatprep.subr.mxu0 %v754
    %1691 = vmatpush1.msra.mxu0 %v753
    %1692 = vmatprep.subr.mxu0 %v750
    %1693 = vmatpush1.msra.mxu0 %v749
    %1694 = vmatprep.subr.mxu0 %v746
    %1695 = vmatpush1.msra.mxu0 %v745
    %1696 = vmatprep.subr.mxu0 0.0
    %1697 = vmatpush2.msra.mxu0 0.0
    %1698 = vmatprep.subr.mxu0 0.0
    %1699 = vmatpush2.msra.mxu0 0.0
    %1700 = vmatprep.subr.mxu0 0.0
    %1701 = vmatpush2.msra.mxu0 0.0
    %1702 = vmatprep.subr.mxu0 0.0
    %1703 = vmatpush2.msra.mxu0 0.0
    %1704 = vmatprep.subr.mxu0 0.0
    %1705 = vmatpush2.msra.mxu0 0.0
    %1706 = vmatprep.subr.mxu0 0.0
    %1707 = vmatpush2.msra.mxu0 0.0
    %1708 = vmatprep.subr.mxu0 0.0
    %1709 = vmatpush2.msra.mxu0 0.0
    %1710 = vmatprep.subr.mxu0 0.0
    %1711 = vmatpush2.msra.mxu0 0.0
    %1712 = vmatprep.subr.mxu0 0.0
    %1713 = vmatpush2.msra.mxu0 0.0
    %1714 = vmatprep.subr.mxu0 0.0
    %1715 = vmatpush2.msra.mxu0 0.0
    %1716 = vmatprep.subr.mxu0 0.0
    %1717 = vmatpush2.msra.mxu0 0.0
    %1718 = vmatprep.subr.mxu0 0.0
    %1719 = vmatpush2.msra.mxu0 0.0
    %1720 = vmatprep.subr.mxu0 0.0
    %1721 = vmatpush2.msra.mxu0 0.0
    %1722 = vmatprep.subr.mxu0 0.0
    %1723 = vmatpush2.msra.mxu0 0.0
    %1724 = vmatprep.subr.mxu0 0.0
    %1725 = vmatpush2.msra.mxu0 0.0
    %1726 = vmatprep.subr.mxu0 0.0
    %1727 = vmatpush2.msra.mxu0 0.0
    %1728 = vmatprep.mubr.f32.mxu0 0.0
    %1729 = vmatmul.mubr.f32.gmra.mxu0 %v1404
    %v1730 = vpop.f32.mrf.mxu0
    %v1731 = vadd.f32 0.0, %v1730
    %v1732 = vpop.f32.mrf.mxu0
    %v1733 = vadd.f32 0.0, %v1732
    %1734 = vdwg.mxu0
    %v1735 = vadd.f32 %v1589, %v1660
    %v1736 = vadd.f32 %v1590, %v1662
    %v1737 = vadd.f32 %v1591, %v1731
    %v1738 = vadd.f32 %v1592, %v1733
    %v1739 = vxor.u32 %v1735, 2147483648
    %v1740 = vmul.f32 %v1739, 1.442695
    %v1741 = vpow.pop %v1740
    %v1742 = vadd.f32 %v1741, 1.0
    %v1743 = vrcp.pop %v1742
    %v1744 = vmul.f32 1.0, %v1743
    %v1745 = vxor.u32 %v1736, 2147483648
    %v1746 = vmul.f32 %v1745, 1.442695
    %v1747 = vpow.pop %v1746
    %v1748 = vadd.f32 %v1747, 1.0
    %v1749 = vrcp.pop %v1748
    %v1750 = vmul.f32 1.0, %v1749
    %v1751 = vtanh.pop %v1737
    %v1752 = vxor.u32 %v1738, 2147483648
    %v1753 = vmul.f32 %v1752, 1.442695
    %v1754 = vpow.pop %v1753
    %v1755 = vadd.f32 %v1754, 1.0
    %v1756 = vrcp.pop %v1755
    %v1757 = vmul.f32 1.0, %v1756
    %v1758 = vmul.f32 %v1750, %v1402
    %v1759 = vmul.f32 %v1744, %v1751
    %v1760 = vadd.f32 %v1758, %v1759
    %v1761 = vtanh.pop %v1760
    %v1762 = vmul.f32 %v1757, %v1761
    %s1763 = scalar_lea.vmem [#allocation4], 16
    %1764 = vst [vmem:[%s1763] sm:$0xff] %v1762
    %s1765 = smul.u32 5, 4
    %s1766 = smul.addr %s1765, 8
    %s1767 = scalar_lea.vmem [#allocation3], %s1766
    %v1768 = vld [vmem:[%s1767] sm:$0xff]
    %v1769 = vld [vmem:[%s1767 + $0x8] sm:$0xff]
    %v1770 = vld [vmem:[%s1767 + $0x10] sm:$0xff]
    %v1771 = vld [vmem:[%s1767 + $0x18] sm:$0xff]
    %1772 = vmatprep.subr.mxu0 %v868
    %1773 = vmatpush1.msra.mxu0 %v867
    %1774 = vmatprep.subr.mxu0 %v864
    %1775 = vmatpush1.msra.mxu0 %v863
    %1776 = vmatprep.subr.mxu0 %v860
    %1777 = vmatpush1.msra.mxu0 %v859
    %1778 = vmatprep.subr.mxu0 %v856
    %1779 = vmatpush1.msra.mxu0 %v855
    %1780 = vmatprep.subr.mxu0 %v852
    %1781 = vmatpush1.msra.mxu0 %v851
    %1782 = vmatprep.subr.mxu0 %v848
    %1783 = vmatpush1.msra.mxu0 %v847
    %1784 = vmatprep.subr.mxu0 %v844
    %1785 = vmatpush1.msra.mxu0 %v843
    %1786 = vmatprep.subr.mxu0 %v840
    %1787 = vmatpush1.msra.mxu0 %v839
    %1788 = vmatprep.subr.mxu0 %v836
    %1789 = vmatpush1.msra.mxu0 %v835
    %1790 = vmatprep.subr.mxu0 %v832
    %1791 = vmatpush1.msra.mxu0 %v831
    %1792 = vmatprep.subr.mxu0 %v828
    %1793 = vmatpush1.msra.mxu0 %v827
    %1794 = vmatprep.subr.mxu0 %v824
    %1795 = vmatpush1.msra.mxu0 %v823
    %1796 = vmatprep.subr.mxu0 %v820
    %1797 = vmatpush1.msra.mxu0 %v819
    %1798 = vmatprep.subr.mxu0 %v816
    %1799 = vmatpush1.msra.mxu0 %v815
    %1800 = vmatprep.subr.mxu0 %v812
    %1801 = vmatpush1.msra.mxu0 %v811
    %1802 = vmatprep.subr.mxu0 %v808
    %1803 = vmatpush1.msra.mxu0 %v807
    %1804 = vmatprep.subr.mxu0 0.0
    %1805 = vmatpush2.msra.mxu0 0.0
    %1806 = vmatprep.subr.mxu0 0.0
    %1807 = vmatpush2.msra.mxu0 0.0
    %1808 = vmatprep.subr.mxu0 0.0
    %1809 = vmatpush2.msra.mxu0 0.0
    %1810 = vmatprep.subr.mxu0 0.0
    %1811 = vmatpush2.msra.mxu0 0.0
    %1812 = vmatprep.subr.mxu0 0.0
    %1813 = vmatpush2.msra.mxu0 0.0
    %1814 = vmatprep.subr.mxu0 0.0
    %1815 = vmatpush2.msra.mxu0 0.0
    %1816 = vmatprep.subr.mxu0 0.0
    %1817 = vmatpush2.msra.mxu0 0.0
    %1818 = vmatprep.subr.mxu0 0.0
    %1819 = vmatpush2.msra.mxu0 0.0
    %1820 = vmatprep.subr.mxu0 0.0
    %1821 = vmatpush2.msra.mxu0 0.0
    %1822 = vmatprep.subr.mxu0 0.0
    %1823 = vmatpush2.msra.mxu0 0.0
    %1824 = vmatprep.subr.mxu0 0.0
    %1825 = vmatpush2.msra.mxu0 0.0
    %1826 = vmatprep.subr.mxu0 0.0
    %1827 = vmatpush2.msra.mxu0 0.0
    %1828 = vmatprep.subr.mxu0 0.0
    %1829 = vmatpush2.msra.mxu0 0.0
    %1830 = vmatprep.subr.mxu0 0.0
    %1831 = vmatpush2.msra.mxu0 0.0
    %1832 = vmatprep.subr.mxu0 0.0
    %1833 = vmatpush2.msra.mxu0 0.0
    %1834 = vmatprep.subr.mxu0 0.0
    %1835 = vmatpush2.msra.mxu0 0.0
    %1836 = vmatprep.mubr.f32.mxu0 0.0
    %1837 = vmatmul.mubr.f32.gmra.mxu0 %v1583
    %v1838 = vpop.f32.mrf.mxu0
    %v1839 = vadd.f32 0.0, %v1838
    %v1840 = vpop.f32.mrf.mxu0
    %v1841 = vadd.f32 0.0, %v1840
    %1842 = vdwg.mxu0
    %1843 = vmatprep.subr.mxu0 %v870
    %1844 = vmatpush1.msra.mxu0 %v869
    %1845 = vmatprep.subr.mxu0 %v866
    %1846 = vmatpush1.msra.mxu0 %v865
    %1847 = vmatprep.subr.mxu0 %v862
    %1848 = vmatpush1.msra.mxu0 %v861
    %1849 = vmatprep.subr.mxu0 %v858
    %1850 = vmatpush1.msra.mxu0 %v857
    %1851 = vmatprep.subr.mxu0 %v854
    %1852 = vmatpush1.msra.mxu0 %v853
    %1853 = vmatprep.subr.mxu0 %v850
    %1854 = vmatpush1.msra.mxu0 %v849
    %1855 = vmatprep.subr.mxu0 %v846
    %1856 = vmatpush1.msra.mxu0 %v845
    %1857 = vmatprep.subr.mxu0 %v842
    %1858 = vmatpush1.msra.mxu0 %v841
    %1859 = vmatprep.subr.mxu0 %v838
    %1860 = vmatpush1.msra.mxu0 %v837
    %1861 = vmatprep.subr.mxu0 %v834
    %1862 = vmatpush1.msra.mxu0 %v833
    %1863 = vmatprep.subr.mxu0 %v830
    %1864 = vmatpush1.msra.mxu0 %v829
    %1865 = vmatprep.subr.mxu0 %v826
    %1866 = vmatpush1.msra.mxu0 %v825
    %1867 = vmatprep.subr.mxu0 %v822
    %1868 = vmatpush1.msra.mxu0 %v821
    %1869 = vmatprep.subr.mxu0 %v818
    %1870 = vmatpush1.msra.mxu0 %v817
    %1871 = vmatprep.subr.mxu0 %v814
    %1872 = vmatpush1.msra.mxu0 %v813
    %1873 = vmatprep.subr.mxu0 %v810
    %1874 = vmatpush1.msra.mxu0 %v809
    %1875 = vmatprep.subr.mxu0 0.0
    %1876 = vmatpush2.msra.mxu0 0.0
    %1877 = vmatprep.subr.mxu0 0.0
    %1878 = vmatpush2.msra.mxu0 0.0
    %1879 = vmatprep.subr.mxu0 0.0
    %1880 = vmatpush2.msra.mxu0 0.0
    %1881 = vmatprep.subr.mxu0 0.0
    %1882 = vmatpush2.msra.mxu0 0.0
    %1883 = vmatprep.subr.mxu0 0.0
    %1884 = vmatpush2.msra.mxu0 0.0
    %1885 = vmatprep.subr.mxu0 0.0
    %1886 = vmatpush2.msra.mxu0 0.0
    %1887 = vmatprep.subr.mxu0 0.0
    %1888 = vmatpush2.msra.mxu0 0.0
    %1889 = vmatprep.subr.mxu0 0.0
    %1890 = vmatpush2.msra.mxu0 0.0
    %1891 = vmatprep.subr.mxu0 0.0
    %1892 = vmatpush2.msra.mxu0 0.0
    %1893 = vmatprep.subr.mxu0 0.0
    %1894 = vmatpush2.msra.mxu0 0.0
    %1895 = vmatprep.subr.mxu0 0.0
    %1896 = vmatpush2.msra.mxu0 0.0
    %1897 = vmatprep.subr.mxu0 0.0
    %1898 = vmatpush2.msra.mxu0 0.0
    %1899 = vmatprep.subr.mxu0 0.0
    %1900 = vmatpush2.msra.mxu0 0.0
    %1901 = vmatprep.subr.mxu0 0.0
    %1902 = vmatpush2.msra.mxu0 0.0
    %1903 = vmatprep.subr.mxu0 0.0
    %1904 = vmatpush2.msra.mxu0 0.0
    %1905 = vmatprep.subr.mxu0 0.0
    %1906 = vmatpush2.msra.mxu0 0.0
    %1907 = vmatprep.mubr.f32.mxu0 0.0
    %1908 = vmatmul.mubr.f32.gmra.mxu0 %v1583
    %v1909 = vpop.f32.mrf.mxu0
    %v1910 = vadd.f32 0.0, %v1909
    %v1911 = vpop.f32.mrf.mxu0
    %v1912 = vadd.f32 0.0, %v1911
    %1913 = vdwg.mxu0
    %v1914 = vadd.f32 %v1768, %v1839
    %v1915 = vadd.f32 %v1769, %v1841
    %v1916 = vadd.f32 %v1770, %v1910
    %v1917 = vadd.f32 %v1771, %v1912
    %v1918 = vxor.u32 %v1914, 2147483648
    %v1919 = vmul.f32 %v1918, 1.442695
    %v1920 = vpow.pop %v1919
    %v1921 = vadd.f32 %v1920, 1.0
    %v1922 = vrcp.pop %v1921
    %v1923 = vmul.f32 1.0, %v1922
    %v1924 = vxor.u32 %v1915, 2147483648
    %v1925 = vmul.f32 %v1924, 1.442695
    %v1926 = vpow.pop %v1925
    %v1927 = vadd.f32 %v1926, 1.0
    %v1928 = vrcp.pop %v1927
    %v1929 = vmul.f32 1.0, %v1928
    %v1930 = vtanh.pop %v1916
    %v1931 = vxor.u32 %v1917, 2147483648
    %v1932 = vmul.f32 %v1931, 1.442695
    %v1933 = vpow.pop %v1932
    %v1934 = vadd.f32 %v1933, 1.0
    %v1935 = vrcp.pop %v1934
    %v1936 = vmul.f32 1.0, %v1935
    %v1937 = vmul.f32 %v1929, %v1581
    %v1938 = vmul.f32 %v1923, %v1930
    %v1939 = vadd.f32 %v1937, %v1938
    %v1940 = vtanh.pop %v1939
    %v1941 = vmul.f32 %v1936, %v1940
    %s1942 = scalar_lea.vmem [#allocation5], 40
    %1943 = vst [vmem:[%s1942] sm:$0xff] %v1941
    %s1944 = smul.u32 3, 4
    %s1945 = smul.addr %s1944, 8
    %s1946 = scalar_lea.vmem [#allocation2], %s1945
    %v1947 = vld [vmem:[%s1946] sm:$0xff]
    %v1948 = vld [vmem:[%s1946 + $0x8] sm:$0xff]
    %v1949 = vld [vmem:[%s1946 + $0x10] sm:$0xff]
    %v1950 = vld [vmem:[%s1946 + $0x18] sm:$0xff]
    %1951 = vmatprep.subr.mxu0 %v804
    %1952 = vmatpush1.msra.mxu0 %v803
    %1953 = vmatprep.subr.mxu0 %v800
    %1954 = vmatpush1.msra.mxu0 %v799
    %1955 = vmatprep.subr.mxu0 %v796
    %1956 = vmatpush1.msra.mxu0 %v795
    %1957 = vmatprep.subr.mxu0 %v792
    %1958 = vmatpush1.msra.mxu0 %v791
    %1959 = vmatprep.subr.mxu0 %v788
    %1960 = vmatpush1.msra.mxu0 %v787
    %1961 = vmatprep.subr.mxu0 %v784
    %1962 = vmatpush1.msra.mxu0 %v783
    %1963 = vmatprep.subr.mxu0 %v780
    %1964 = vmatpush1.msra.mxu0 %v779
    %1965 = vmatprep.subr.mxu0 %v776
    %1966 = vmatpush1.msra.mxu0 %v775
    %1967 = vmatprep.subr.mxu0 %v772
    %1968 = vmatpush1.msra.mxu0 %v771
    %1969 = vmatprep.subr.mxu0 %v768
    %1970 = vmatpush1.msra.mxu0 %v767
    %1971 = vmatprep.subr.mxu0 %v764
    %1972 = vmatpush1.msra.mxu0 %v763
    %1973 = vmatprep.subr.mxu0 %v760
    %1974 = vmatpush1.msra.mxu0 %v759
    %1975 = vmatprep.subr.mxu0 %v756
    %1976 = vmatpush1.msra.mxu0 %v755
    %1977 = vmatprep.subr.mxu0 %v752
    %1978 = vmatpush1.msra.mxu0 %v751
    %1979 = vmatprep.subr.mxu0 %v748
    %1980 = vmatpush1.msra.mxu0 %v747
    %1981 = vmatprep.subr.mxu0 %v744
    %1982 = vmatpush1.msra.mxu0 %v743
    %1983 = vmatprep.subr.mxu0 0.0
    %1984 = vmatpush2.msra.mxu0 0.0
    %1985 = vmatprep.subr.mxu0 0.0
    %1986 = vmatpush2.msra.mxu0 0.0
    %1987 = vmatprep.subr.mxu0 0.0
    %1988 = vmatpush2.msra.mxu0 0.0
    %1989 = vmatprep.subr.mxu0 0.0
    %1990 = vmatpush2.msra.mxu0 0.0
    %1991 = vmatprep.subr.mxu0 0.0
    %1992 = vmatpush2.msra.mxu0 0.0
    %1993 = vmatprep.subr.mxu0 0.0
    %1994 = vmatpush2.msra.mxu0 0.0
    %1995 = vmatprep.subr.mxu0 0.0
    %1996 = vmatpush2.msra.mxu0 0.0
    %1997 = vmatprep.subr.mxu0 0.0
    %1998 = vmatpush2.msra.mxu0 0.0
    %1999 = vmatprep.subr.mxu0 0.0
    %2000 = vmatpush2.msra.mxu0 0.0
    %2001 = vmatprep.subr.mxu0 0.0
    %2002 = vmatpush2.msra.mxu0 0.0
    %2003 = vmatprep.subr.mxu0 0.0
    %2004 = vmatpush2.msra.mxu0 0.0
    %2005 = vmatprep.subr.mxu0 0.0
    %2006 = vmatpush2.msra.mxu0 0.0
    %2007 = vmatprep.subr.mxu0 0.0
    %2008 = vmatpush2.msra.mxu0 0.0
    %2009 = vmatprep.subr.mxu0 0.0
    %2010 = vmatpush2.msra.mxu0 0.0
    %2011 = vmatprep.subr.mxu0 0.0
    %2012 = vmatpush2.msra.mxu0 0.0
    %2013 = vmatprep.subr.mxu0 0.0
    %2014 = vmatpush2.msra.mxu0 0.0
    %2015 = vmatprep.mubr.f32.mxu0 0.0
    %2016 = vmatmul.mubr.f32.gmra.mxu0 %v1762
    %v2017 = vpop.f32.mrf.mxu0
    %v2018 = vadd.f32 0.0, %v2017
    %v2019 = vpop.f32.mrf.mxu0
    %v2020 = vadd.f32 0.0, %v2019
    %2021 = vdwg.mxu0
    %2022 = vmatprep.subr.mxu0 %v806
    %2023 = vmatpush1.msra.mxu0 %v805
    %2024 = vmatprep.subr.mxu0 %v802
    %2025 = vmatpush1.msra.mxu0 %v801
    %2026 = vmatprep.subr.mxu0 %v798
    %2027 = vmatpush1.msra.mxu0 %v797
    %2028 = vmatprep.subr.mxu0 %v794
    %2029 = vmatpush1.msra.mxu0 %v793
    %2030 = vmatprep.subr.mxu0 %v790
    %2031 = vmatpush1.msra.mxu0 %v789
    %2032 = vmatprep.subr.mxu0 %v786
    %2033 = vmatpush1.msra.mxu0 %v785
    %2034 = vmatprep.subr.mxu0 %v782
    %2035 = vmatpush1.msra.mxu0 %v781
    %2036 = vmatprep.subr.mxu0 %v778
    %2037 = vmatpush1.msra.mxu0 %v777
    %2038 = vmatprep.subr.mxu0 %v774
    %2039 = vmatpush1.msra.mxu0 %v773
    %2040 = vmatprep.subr.mxu0 %v770
    %2041 = vmatpush1.msra.mxu0 %v769
    %2042 = vmatprep.subr.mxu0 %v766
    %2043 = vmatpush1.msra.mxu0 %v765
    %2044 = vmatprep.subr.mxu0 %v762
    %2045 = vmatpush1.msra.mxu0 %v761
    %2046 = vmatprep.subr.mxu0 %v758
    %2047 = vmatpush1.msra.mxu0 %v757
    %2048 = vmatprep.subr.mxu0 %v754
    %2049 = vmatpush1.msra.mxu0 %v753
    %2050 = vmatprep.subr.mxu0 %v750
    %2051 = vmatpush1.msra.mxu0 %v749
    %2052 = vmatprep.subr.mxu0 %v746
    %2053 = vmatpush1.msra.mxu0 %v745
    %2054 = vmatprep.subr.mxu0 0.0
    %2055 = vmatpush2.msra.mxu0 0.0
    %2056 = vmatprep.subr.mxu0 0.0
    %2057 = vmatpush2.msra.mxu0 0.0
    %2058 = vmatprep.subr.mxu0 0.0
    %2059 = vmatpush2.msra.mxu0 0.0
    %2060 = vmatprep.subr.mxu0 0.0
    %2061 = vmatpush2.msra.mxu0 0.0
    %2062 = vmatprep.subr.mxu0 0.0
    %2063 = vmatpush2.msra.mxu0 0.0
    %2064 = vmatprep.subr.mxu0 0.0
    %2065 = vmatpush2.msra.mxu0 0.0
    %2066 = vmatprep.subr.mxu0 0.0
    %2067 = vmatpush2.msra.mxu0 0.0
    %2068 = vmatprep.subr.mxu0 0.0
    %2069 = vmatpush2.msra.mxu0 0.0
    %2070 = vmatprep.subr.mxu0 0.0
    %2071 = vmatpush2.msra.mxu0 0.0
    %2072 = vmatprep.subr.mxu0 0.0
    %2073 = vmatpush2.msra.mxu0 0.0
    %2074 = vmatprep.subr.mxu0 0.0
    %2075 = vmatpush2.msra.mxu0 0.0
    %2076 = vmatprep.subr.mxu0 0.0
    %2077 = vmatpush2.msra.mxu0 0.0
    %2078 = vmatprep.subr.mxu0 0.0
    %2079 = vmatpush2.msra.mxu0 0.0
    %2080 = vmatprep.subr.mxu0 0.0
    %2081 = vmatpush2.msra.mxu0 0.0
    %2082 = vmatprep.subr.mxu0 0.0
    %2083 = vmatpush2.msra.mxu0 0.0
    %2084 = vmatprep.subr.mxu0 0.0
    %2085 = vmatpush2.msra.mxu0 0.0
    %2086 = vmatprep.mubr.f32.mxu0 0.0
    %2087 = vmatmul.mubr.f32.gmra.mxu0 %v1762
    %v2088 = vpop.f32.mrf.mxu0
    %v2089 = vadd.f32 0.0, %v2088
    %v2090 = vpop.f32.mrf.mxu0
    %v2091 = vadd.f32 0.0, %v2090
    %2092 = vdwg.mxu0
    %v2093 = vadd.f32 %v1947, %v2018
    %v2094 = vadd.f32 %v1948, %v2020
    %v2095 = vadd.f32 %v1949, %v2089
    %v2096 = vadd.f32 %v1950, %v2091
    %v2097 = vxor.u32 %v2093, 2147483648
    %v2098 = vmul.f32 %v2097, 1.442695
    %v2099 = vpow.pop %v2098
    %v2100 = vadd.f32 %v2099, 1.0
    %v2101 = vrcp.pop %v2100
    %v2102 = vmul.f32 1.0, %v2101
    %v2103 = vxor.u32 %v2094, 2147483648
    %v2104 = vmul.f32 %v2103, 1.442695
    %v2105 = vpow.pop %v2104
    %v2106 = vadd.f32 %v2105, 1.0
    %v2107 = vrcp.pop %v2106
    %v2108 = vmul.f32 1.0, %v2107
    %v2109 = vtanh.pop %v2095
    %v2110 = vxor.u32 %v2096, 2147483648
    %v2111 = vmul.f32 %v2110, 1.442695
    %v2112 = vpow.pop %v2111
    %v2113 = vadd.f32 %v2112, 1.0
    %v2114 = vrcp.pop %v2113
    %v2115 = vmul.f32 1.0, %v2114
    %v2116 = vmul.f32 %v2108, %v1760
    %v2117 = vmul.f32 %v2102, %v2109
    %v2118 = vadd.f32 %v2116, %v2117
    %v2119 = vtanh.pop %v2118
    %v2120 = vmul.f32 %v2115, %v2119
    %s2121 = scalar_lea.vmem [#allocation4], 24
    %2122 = vst [vmem:[%s2121] sm:$0xff] %v2120
    %s2123 = smul.u32 4, 4
    %s2124 = smul.addr %s2123, 8
    %s2125 = scalar_lea.vmem [#allocation3], %s2124
    %v2126 = vld [vmem:[%s2125] sm:$0xff]
    %v2127 = vld [vmem:[%s2125 + $0x8] sm:$0xff]
    %v2128 = vld [vmem:[%s2125 + $0x10] sm:$0xff]
    %v2129 = vld [vmem:[%s2125 + $0x18] sm:$0xff]
    %2130 = vmatprep.subr.mxu0 %v868
    %2131 = vmatpush1.msra.mxu0 %v867
    %2132 = vmatprep.subr.mxu0 %v864
    %2133 = vmatpush1.msra.mxu0 %v863
    %2134 = vmatprep.subr.mxu0 %v860
    %2135 = vmatpush1.msra.mxu0 %v859
    %2136 = vmatprep.subr.mxu0 %v856
    %2137 = vmatpush1.msra.mxu0 %v855
    %2138 = vmatprep.subr.mxu0 %v852
    %2139 = vmatpush1.msra.mxu0 %v851
    %2140 = vmatprep.subr.mxu0 %v848
    %2141 = vmatpush1.msra.mxu0 %v847
    %2142 = vmatprep.subr.mxu0 %v844
    %2143 = vmatpush1.msra.mxu0 %v843
    %2144 = vmatprep.subr.mxu0 %v840
    %2145 = vmatpush1.msra.mxu0 %v839
    %2146 = vmatprep.subr.mxu0 %v836
    %2147 = vmatpush1.msra.mxu0 %v835
    %2148 = vmatprep.subr.mxu0 %v832
    %2149 = vmatpush1.msra.mxu0 %v831
    %2150 = vmatprep.subr.mxu0 %v828
    %2151 = vmatpush1.msra.mxu0 %v827
    %2152 = vmatprep.subr.mxu0 %v824
    %2153 = vmatpush1.msra.mxu0 %v823
    %2154 = vmatprep.subr.mxu0 %v820
    %2155 = vmatpush1.msra.mxu0 %v819
    %2156 = vmatprep.subr.mxu0 %v816
    %2157 = vmatpush1.msra.mxu0 %v815
    %2158 = vmatprep.subr.mxu0 %v812
    %2159 = vmatpush1.msra.mxu0 %v811
    %2160 = vmatprep.subr.mxu0 %v808
    %2161 = vmatpush1.msra.mxu0 %v807
    %2162 = vmatprep.subr.mxu0 0.0
    %2163 = vmatpush2.msra.mxu0 0.0
    %2164 = vmatprep.subr.mxu0 0.0
    %2165 = vmatpush2.msra.mxu0 0.0
    %2166 = vmatprep.subr.mxu0 0.0
    %2167 = vmatpush2.msra.mxu0 0.0
    %2168 = vmatprep.subr.mxu0 0.0
    %2169 = vmatpush2.msra.mxu0 0.0
    %2170 = vmatprep.subr.mxu0 0.0
    %2171 = vmatpush2.msra.mxu0 0.0
    %2172 = vmatprep.subr.mxu0 0.0
    %2173 = vmatpush2.msra.mxu0 0.0
    %2174 = vmatprep.subr.mxu0 0.0
    %2175 = vmatpush2.msra.mxu0 0.0
    %2176 = vmatprep.subr.mxu0 0.0
    %2177 = vmatpush2.msra.mxu0 0.0
    %2178 = vmatprep.subr.mxu0 0.0
    %2179 = vmatpush2.msra.mxu0 0.0
    %2180 = vmatprep.subr.mxu0 0.0
    %2181 = vmatpush2.msra.mxu0 0.0
    %2182 = vmatprep.subr.mxu0 0.0
    %2183 = vmatpush2.msra.mxu0 0.0
    %2184 = vmatprep.subr.mxu0 0.0
    %2185 = vmatpush2.msra.mxu0 0.0
    %2186 = vmatprep.subr.mxu0 0.0
    %2187 = vmatpush2.msra.mxu0 0.0
    %2188 = vmatprep.subr.mxu0 0.0
    %2189 = vmatpush2.msra.mxu0 0.0
    %2190 = vmatprep.subr.mxu0 0.0
    %2191 = vmatpush2.msra.mxu0 0.0
    %2192 = vmatprep.subr.mxu0 0.0
    %2193 = vmatpush2.msra.mxu0 0.0
    %2194 = vmatprep.mubr.f32.mxu0 0.0
    %2195 = vmatmul.mubr.f32.gmra.mxu0 %v1941
    %v2196 = vpop.f32.mrf.mxu0
    %v2197 = vadd.f32 0.0, %v2196
    %v2198 = vpop.f32.mrf.mxu0
    %v2199 = vadd.f32 0.0, %v2198
    %2200 = vdwg.mxu0
    %2201 = vmatprep.subr.mxu0 %v870
    %2202 = vmatpush1.msra.mxu0 %v869
    %2203 = vmatprep.subr.mxu0 %v866
    %2204 = vmatpush1.msra.mxu0 %v865
    %2205 = vmatprep.subr.mxu0 %v862
    %2206 = vmatpush1.msra.mxu0 %v861
    %2207 = vmatprep.subr.mxu0 %v858
    %2208 = vmatpush1.msra.mxu0 %v857
    %2209 = vmatprep.subr.mxu0 %v854
    %2210 = vmatpush1.msra.mxu0 %v853
    %2211 = vmatprep.subr.mxu0 %v850
    %2212 = vmatpush1.msra.mxu0 %v849
    %2213 = vmatprep.subr.mxu0 %v846
    %2214 = vmatpush1.msra.mxu0 %v845
    %2215 = vmatprep.subr.mxu0 %v842
    %2216 = vmatpush1.msra.mxu0 %v841
    %2217 = vmatprep.subr.mxu0 %v838
    %2218 = vmatpush1.msra.mxu0 %v837
    %2219 = vmatprep.subr.mxu0 %v834
    %2220 = vmatpush1.msra.mxu0 %v833
    %2221 = vmatprep.subr.mxu0 %v830
    %2222 = vmatpush1.msra.mxu0 %v829
    %2223 = vmatprep.subr.mxu0 %v826
    %2224 = vmatpush1.msra.mxu0 %v825
    %2225 = vmatprep.subr.mxu0 %v822
    %2226 = vmatpush1.msra.mxu0 %v821
    %2227 = vmatprep.subr.mxu0 %v818
    %2228 = vmatpush1.msra.mxu0 %v817
    %2229 = vmatprep.subr.mxu0 %v814
    %2230 = vmatpush1.msra.mxu0 %v813
    %2231 = vmatprep.subr.mxu0 %v810
    %2232 = vmatpush1.msra.mxu0 %v809
    %2233 = vmatprep.subr.mxu0 0.0
    %2234 = vmatpush2.msra.mxu0 0.0
    %2235 = vmatprep.subr.mxu0 0.0
    %2236 = vmatpush2.msra.mxu0 0.0
    %2237 = vmatprep.subr.mxu0 0.0
    %2238 = vmatpush2.msra.mxu0 0.0
    %2239 = vmatprep.subr.mxu0 0.0
    %2240 = vmatpush2.msra.mxu0 0.0
    %2241 = vmatprep.subr.mxu0 0.0
    %2242 = vmatpush2.msra.mxu0 0.0
    %2243 = vmatprep.subr.mxu0 0.0
    %2244 = vmatpush2.msra.mxu0 0.0
    %2245 = vmatprep.subr.mxu0 0.0
    %2246 = vmatpush2.msra.mxu0 0.0
    %2247 = vmatprep.subr.mxu0 0.0
    %2248 = vmatpush2.msra.mxu0 0.0
    %2249 = vmatprep.subr.mxu0 0.0
    %2250 = vmatpush2.msra.mxu0 0.0
    %2251 = vmatprep.subr.mxu0 0.0
    %2252 = vmatpush2.msra.mxu0 0.0
    %2253 = vmatprep.subr.mxu0 0.0
    %2254 = vmatpush2.msra.mxu0 0.0
    %2255 = vmatprep.subr.mxu0 0.0
    %2256 = vmatpush2.msra.mxu0 0.0
    %2257 = vmatprep.subr.mxu0 0.0
    %2258 = vmatpush2.msra.mxu0 0.0
    %2259 = vmatprep.subr.mxu0 0.0
    %2260 = vmatpush2.msra.mxu0 0.0
    %2261 = vmatprep.subr.mxu0 0.0
    %2262 = vmatpush2.msra.mxu0 0.0
    %2263 = vmatprep.subr.mxu0 0.0
    %2264 = vmatpush2.msra.mxu0 0.0
    %2265 = vmatprep.mubr.f32.mxu0 0.0
    %2266 = vmatmul.mubr.f32.gmra.mxu0 %v1941
    %v2267 = vpop.f32.mrf.mxu0
    %v2268 = vadd.f32 0.0, %v2267
    %v2269 = vpop.f32.mrf.mxu0
    %v2270 = vadd.f32 0.0, %v2269
    %2271 = vdwg.mxu0
    %v2272 = vadd.f32 %v2126, %v2197
    %v2273 = vadd.f32 %v2127, %v2199
    %v2274 = vadd.f32 %v2128, %v2268
    %v2275 = vadd.f32 %v2129, %v2270
    %v2276 = vxor.u32 %v2272, 2147483648
    %v2277 = vmul.f32 %v2276, 1.442695
    %v2278 = vpow.pop %v2277
    %v2279 = vadd.f32 %v2278, 1.0
    %v2280 = vrcp.pop %v2279
    %v2281 = vmul.f32 1.0, %v2280
    %v2282 = vxor.u32 %v2273, 2147483648
    %v2283 = vmul.f32 %v2282, 1.442695
    %v2284 = vpow.pop %v2283
    %v2285 = vadd.f32 %v2284, 1.0
    %v2286 = vrcp.pop %v2285
    %v2287 = vmul.f32 1.0, %v2286
    %v2288 = vtanh.pop %v2274
    %v2289 = vxor.u32 %v2275, 2147483648
    %v2290 = vmul.f32 %v2289, 1.442695
    %v2291 = vpow.pop %v2290
    %v2292 = vadd.f32 %v2291, 1.0
    %v2293 = vrcp.pop %v2292
    %v2294 = vmul.f32 1.0, %v2293
    %v2295 = vmul.f32 %v2287, %v1939
    %v2296 = vmul.f32 %v2281, %v2288
    %v2297 = vadd.f32 %v2295, %v2296
    %v2298 = vtanh.pop %v2297
    %v2299 = vmul.f32 %v2294, %v2298
    %s2300 = scalar_lea.vmem [#allocation5], 32
    %2301 = vst [vmem:[%s2300] sm:$0xff] %v2299
    %s2302 = smul.addr %s2123, 8
    %s2303 = scalar_lea.vmem [#allocation2], %s2302
    %v2304 = vld [vmem:[%s2303] sm:$0xff]
    %v2305 = vld [vmem:[%s2303 + $0x8] sm:$0xff]
    %v2306 = vld [vmem:[%s2303 + $0x10] sm:$0xff]
    %v2307 = vld [vmem:[%s2303 + $0x18] sm:$0xff]
    %2308 = vmatprep.subr.mxu0 %v804
    %2309 = vmatpush1.msra.mxu0 %v803
    %2310 = vmatprep.subr.mxu0 %v800
    %2311 = vmatpush1.msra.mxu0 %v799
    %2312 = vmatprep.subr.mxu0 %v796
    %2313 = vmatpush1.msra.mxu0 %v795
    %2314 = vmatprep.subr.mxu0 %v792
    %2315 = vmatpush1.msra.mxu0 %v791
    %2316 = vmatprep.subr.mxu0 %v788
    %2317 = vmatpush1.msra.mxu0 %v787
    %2318 = vmatprep.subr.mxu0 %v784
    %2319 = vmatpush1.msra.mxu0 %v783
    %2320 = vmatprep.subr.mxu0 %v780
    %2321 = vmatpush1.msra.mxu0 %v779
    %2322 = vmatprep.subr.mxu0 %v776
    %2323 = vmatpush1.msra.mxu0 %v775
    %2324 = vmatprep.subr.mxu0 %v772
    %2325 = vmatpush1.msra.mxu0 %v771
    %2326 = vmatprep.subr.mxu0 %v768
    %2327 = vmatpush1.msra.mxu0 %v767
    %2328 = vmatprep.subr.mxu0 %v764
    %2329 = vmatpush1.msra.mxu0 %v763
    %2330 = vmatprep.subr.mxu0 %v760
    %2331 = vmatpush1.msra.mxu0 %v759
    %2332 = vmatprep.subr.mxu0 %v756
    %2333 = vmatpush1.msra.mxu0 %v755
    %2334 = vmatprep.subr.mxu0 %v752
    %2335 = vmatpush1.msra.mxu0 %v751
    %2336 = vmatprep.subr.mxu0 %v748
    %2337 = vmatpush1.msra.mxu0 %v747
    %2338 = vmatprep.subr.mxu0 %v744
    %2339 = vmatpush1.msra.mxu0 %v743
    %2340 = vmatprep.subr.mxu0 0.0
    %2341 = vmatpush2.msra.mxu0 0.0
    %2342 = vmatprep.subr.mxu0 0.0
    %2343 = vmatpush2.msra.mxu0 0.0
    %2344 = vmatprep.subr.mxu0 0.0
    %2345 = vmatpush2.msra.mxu0 0.0
    %2346 = vmatprep.subr.mxu0 0.0
    %2347 = vmatpush2.msra.mxu0 0.0
    %2348 = vmatprep.subr.mxu0 0.0
    %2349 = vmatpush2.msra.mxu0 0.0
    %2350 = vmatprep.subr.mxu0 0.0
    %2351 = vmatpush2.msra.mxu0 0.0
    %2352 = vmatprep.subr.mxu0 0.0
    %2353 = vmatpush2.msra.mxu0 0.0
    %2354 = vmatprep.subr.mxu0 0.0
    %2355 = vmatpush2.msra.mxu0 0.0
    %2356 = vmatprep.subr.mxu0 0.0
    %2357 = vmatpush2.msra.mxu0 0.0
    %2358 = vmatprep.subr.mxu0 0.0
    %2359 = vmatpush2.msra.mxu0 0.0
    %2360 = vmatprep.subr.mxu0 0.0
    %2361 = vmatpush2.msra.mxu0 0.0
    %2362 = vmatprep.subr.mxu0 0.0
    %2363 = vmatpush2.msra.mxu0 0.0
    %2364 = vmatprep.subr.mxu0 0.0
    %2365 = vmatpush2.msra.mxu0 0.0
    %2366 = vmatprep.subr.mxu0 0.0
    %2367 = vmatpush2.msra.mxu0 0.0
    %2368 = vmatprep.subr.mxu0 0.0
    %2369 = vmatpush2.msra.mxu0 0.0
    %2370 = vmatprep.subr.mxu0 0.0
    %2371 = vmatpush2.msra.mxu0 0.0
    %2372 = vmatprep.mubr.f32.mxu0 0.0
    %2373 = vmatmul.mubr.f32.gmra.mxu0 %v2120
    %v2374 = vpop.f32.mrf.mxu0
    %v2375 = vadd.f32 0.0, %v2374
    %v2376 = vpop.f32.mrf.mxu0
    %v2377 = vadd.f32 0.0, %v2376
    %2378 = vdwg.mxu0
    %2379 = vmatprep.subr.mxu0 %v806
    %2380 = vmatpush1.msra.mxu0 %v805
    %2381 = vmatprep.subr.mxu0 %v802
    %2382 = vmatpush1.msra.mxu0 %v801
    %2383 = vmatprep.subr.mxu0 %v798
    %2384 = vmatpush1.msra.mxu0 %v797
    %2385 = vmatprep.subr.mxu0 %v794
    %2386 = vmatpush1.msra.mxu0 %v793
    %2387 = vmatprep.subr.mxu0 %v790
    %2388 = vmatpush1.msra.mxu0 %v789
    %2389 = vmatprep.subr.mxu0 %v786
    %2390 = vmatpush1.msra.mxu0 %v785
    %2391 = vmatprep.subr.mxu0 %v782
    %2392 = vmatpush1.msra.mxu0 %v781
    %2393 = vmatprep.subr.mxu0 %v778
    %2394 = vmatpush1.msra.mxu0 %v777
    %2395 = vmatprep.subr.mxu0 %v774
    %2396 = vmatpush1.msra.mxu0 %v773
    %2397 = vmatprep.subr.mxu0 %v770
    %2398 = vmatpush1.msra.mxu0 %v769
    %2399 = vmatprep.subr.mxu0 %v766
    %2400 = vmatpush1.msra.mxu0 %v765
    %2401 = vmatprep.subr.mxu0 %v762
    %2402 = vmatpush1.msra.mxu0 %v761
    %2403 = vmatprep.subr.mxu0 %v758
    %2404 = vmatpush1.msra.mxu0 %v757
    %2405 = vmatprep.subr.mxu0 %v754
    %2406 = vmatpush1.msra.mxu0 %v753
    %2407 = vmatprep.subr.mxu0 %v750
    %2408 = vmatpush1.msra.mxu0 %v749
    %2409 = vmatprep.subr.mxu0 %v746
    %2410 = vmatpush1.msra.mxu0 %v745
    %2411 = vmatprep.subr.mxu0 0.0
    %2412 = vmatpush2.msra.mxu0 0.0
    %2413 = vmatprep.subr.mxu0 0.0
    %2414 = vmatpush2.msra.mxu0 0.0
    %2415 = vmatprep.subr.mxu0 0.0
    %2416 = vmatpush2.msra.mxu0 0.0
    %2417 = vmatprep.subr.mxu0 0.0
    %2418 = vmatpush2.msra.mxu0 0.0
    %2419 = vmatprep.subr.mxu0 0.0
    %2420 = vmatpush2.msra.mxu0 0.0
    %2421 = vmatprep.subr.mxu0 0.0
    %2422 = vmatpush2.msra.mxu0 0.0
    %2423 = vmatprep.subr.mxu0 0.0
    %2424 = vmatpush2.msra.mxu0 0.0
    %2425 = vmatprep.subr.mxu0 0.0
    %2426 = vmatpush2.msra.mxu0 0.0
    %2427 = vmatprep.subr.mxu0 0.0
    %2428 = vmatpush2.msra.mxu0 0.0
    %2429 = vmatprep.subr.mxu0 0.0
    %2430 = vmatpush2.msra.mxu0 0.0
    %2431 = vmatprep.subr.mxu0 0.0
    %2432 = vmatpush2.msra.mxu0 0.0
    %2433 = vmatprep.subr.mxu0 0.0
    %2434 = vmatpush2.msra.mxu0 0.0
    %2435 = vmatprep.subr.mxu0 0.0
    %2436 = vmatpush2.msra.mxu0 0.0
    %2437 = vmatprep.subr.mxu0 0.0
    %2438 = vmatpush2.msra.mxu0 0.0
    %2439 = vmatprep.subr.mxu0 0.0
    %2440 = vmatpush2.msra.mxu0 0.0
    %2441 = vmatprep.subr.mxu0 0.0
    %2442 = vmatpush2.msra.mxu0 0.0
    %2443 = vmatprep.mubr.f32.mxu0 0.0
    %2444 = vmatmul.mubr.f32.gmra.mxu0 %v2120
    %v2445 = vpop.f32.mrf.mxu0
    %v2446 = vadd.f32 0.0, %v2445
    %v2447 = vpop.f32.mrf.mxu0
    %v2448 = vadd.f32 0.0, %v2447
    %2449 = vdwg.mxu0
    %v2450 = vadd.f32 %v2304, %v2375
    %v2451 = vadd.f32 %v2305, %v2377
    %v2452 = vadd.f32 %v2306, %v2446
    %v2453 = vadd.f32 %v2307, %v2448
    %v2454 = vxor.u32 %v2450, 2147483648
    %v2455 = vmul.f32 %v2454, 1.442695
    %v2456 = vpow.pop %v2455
    %v2457 = vadd.f32 %v2456, 1.0
    %v2458 = vrcp.pop %v2457
    %v2459 = vmul.f32 1.0, %v2458
    %v2460 = vxor.u32 %v2451, 2147483648
    %v2461 = vmul.f32 %v2460, 1.442695
    %v2462 = vpow.pop %v2461
    %v2463 = vadd.f32 %v2462, 1.0
    %v2464 = vrcp.pop %v2463
    %v2465 = vmul.f32 1.0, %v2464
    %v2466 = vtanh.pop %v2452
    %v2467 = vxor.u32 %v2453, 2147483648
    %v2468 = vmul.f32 %v2467, 1.442695
    %v2469 = vpow.pop %v2468
    %v2470 = vadd.f32 %v2469, 1.0
    %v2471 = vrcp.pop %v2470
    %v2472 = vmul.f32 1.0, %v2471
    %v2473 = vmul.f32 %v2465, %v2118
    %v2474 = vmul.f32 %v2459, %v2466
    %v2475 = vadd.f32 %v2473, %v2474
    %v2476 = vtanh.pop %v2475
    %v2477 = vmul.f32 %v2472, %v2476
    %s2478 = scalar_lea.vmem [#allocation4], 32
    %2479 = vst [vmem:[%s2478] sm:$0xff] %v2477
    %s2480 = smul.addr %s1944, 8
    %s2481 = scalar_lea.vmem [#allocation3], %s2480
    %v2482 = vld [vmem:[%s2481] sm:$0xff]
    %v2483 = vld [vmem:[%s2481 + $0x8] sm:$0xff]
    %v2484 = vld [vmem:[%s2481 + $0x10] sm:$0xff]
    %v2485 = vld [vmem:[%s2481 + $0x18] sm:$0xff]
    %2486 = vmatprep.subr.mxu0 %v868
    %2487 = vmatpush1.msra.mxu0 %v867
    %2488 = vmatprep.subr.mxu0 %v864
    %2489 = vmatpush1.msra.mxu0 %v863
    %2490 = vmatprep.subr.mxu0 %v860
    %2491 = vmatpush1.msra.mxu0 %v859
    %2492 = vmatprep.subr.mxu0 %v856
    %2493 = vmatpush1.msra.mxu0 %v855
    %2494 = vmatprep.subr.mxu0 %v852
    %2495 = vmatpush1.msra.mxu0 %v851
    %2496 = vmatprep.subr.mxu0 %v848
    %2497 = vmatpush1.msra.mxu0 %v847
    %2498 = vmatprep.subr.mxu0 %v844
    %2499 = vmatpush1.msra.mxu0 %v843
    %2500 = vmatprep.subr.mxu0 %v840
    %2501 = vmatpush1.msra.mxu0 %v839
    %2502 = vmatprep.subr.mxu0 %v836
    %2503 = vmatpush1.msra.mxu0 %v835
    %2504 = vmatprep.subr.mxu0 %v832
    %2505 = vmatpush1.msra.mxu0 %v831
    %2506 = vmatprep.subr.mxu0 %v828
    %2507 = vmatpush1.msra.mxu0 %v827
    %2508 = vmatprep.subr.mxu0 %v824
    %2509 = vmatpush1.msra.mxu0 %v823
    %2510 = vmatprep.subr.mxu0 %v820
    %2511 = vmatpush1.msra.mxu0 %v819
    %2512 = vmatprep.subr.mxu0 %v816
    %2513 = vmatpush1.msra.mxu0 %v815
    %2514 = vmatprep.subr.mxu0 %v812
    %2515 = vmatpush1.msra.mxu0 %v811
    %2516 = vmatprep.subr.mxu0 %v808
    %2517 = vmatpush1.msra.mxu0 %v807
    %2518 = vmatprep.subr.mxu0 0.0
    %2519 = vmatpush2.msra.mxu0 0.0
    %2520 = vmatprep.subr.mxu0 0.0
    %2521 = vmatpush2.msra.mxu0 0.0
    %2522 = vmatprep.subr.mxu0 0.0
    %2523 = vmatpush2.msra.mxu0 0.0
    %2524 = vmatprep.subr.mxu0 0.0
    %2525 = vmatpush2.msra.mxu0 0.0
    %2526 = vmatprep.subr.mxu0 0.0
    %2527 = vmatpush2.msra.mxu0 0.0
    %2528 = vmatprep.subr.mxu0 0.0
    %2529 = vmatpush2.msra.mxu0 0.0
    %2530 = vmatprep.subr.mxu0 0.0
    %2531 = vmatpush2.msra.mxu0 0.0
    %2532 = vmatprep.subr.mxu0 0.0
    %2533 = vmatpush2.msra.mxu0 0.0
    %2534 = vmatprep.subr.mxu0 0.0
    %2535 = vmatpush2.msra.mxu0 0.0
    %2536 = vmatprep.subr.mxu0 0.0
    %2537 = vmatpush2.msra.mxu0 0.0
    %2538 = vmatprep.subr.mxu0 0.0
    %2539 = vmatpush2.msra.mxu0 0.0
    %2540 = vmatprep.subr.mxu0 0.0
    %2541 = vmatpush2.msra.mxu0 0.0
    %2542 = vmatprep.subr.mxu0 0.0
    %2543 = vmatpush2.msra.mxu0 0.0
    %2544 = vmatprep.subr.mxu0 0.0
    %2545 = vmatpush2.msra.mxu0 0.0
    %2546 = vmatprep.subr.mxu0 0.0
    %2547 = vmatpush2.msra.mxu0 0.0
    %2548 = vmatprep.subr.mxu0 0.0
    %2549 = vmatpush2.msra.mxu0 0.0
    %2550 = vmatprep.mubr.f32.mxu0 0.0
    %2551 = vmatmul.mubr.f32.gmra.mxu0 %v2299
    %v2552 = vpop.f32.mrf.mxu0
    %v2553 = vadd.f32 0.0, %v2552
    %v2554 = vpop.f32.mrf.mxu0
    %v2555 = vadd.f32 0.0, %v2554
    %2556 = vdwg.mxu0
    %2557 = vmatprep.subr.mxu0 %v870
    %2558 = vmatpush1.msra.mxu0 %v869
    %2559 = vmatprep.subr.mxu0 %v866
    %2560 = vmatpush1.msra.mxu0 %v865
    %2561 = vmatprep.subr.mxu0 %v862
    %2562 = vmatpush1.msra.mxu0 %v861
    %2563 = vmatprep.subr.mxu0 %v858
    %2564 = vmatpush1.msra.mxu0 %v857
    %2565 = vmatprep.subr.mxu0 %v854
    %2566 = vmatpush1.msra.mxu0 %v853
    %2567 = vmatprep.subr.mxu0 %v850
    %2568 = vmatpush1.msra.mxu0 %v849
    %2569 = vmatprep.subr.mxu0 %v846
    %2570 = vmatpush1.msra.mxu0 %v845
    %2571 = vmatprep.subr.mxu0 %v842
    %2572 = vmatpush1.msra.mxu0 %v841
    %2573 = vmatprep.subr.mxu0 %v838
    %2574 = vmatpush1.msra.mxu0 %v837
    %2575 = vmatprep.subr.mxu0 %v834
    %2576 = vmatpush1.msra.mxu0 %v833
    %2577 = vmatprep.subr.mxu0 %v830
    %2578 = vmatpush1.msra.mxu0 %v829
    %2579 = vmatprep.subr.mxu0 %v826
    %2580 = vmatpush1.msra.mxu0 %v825
    %2581 = vmatprep.subr.mxu0 %v822
    %2582 = vmatpush1.msra.mxu0 %v821
    %2583 = vmatprep.subr.mxu0 %v818
    %2584 = vmatpush1.msra.mxu0 %v817
    %2585 = vmatprep.subr.mxu0 %v814
    %2586 = vmatpush1.msra.mxu0 %v813
    %2587 = vmatprep.subr.mxu0 %v810
    %2588 = vmatpush1.msra.mxu0 %v809
    %2589 = vmatprep.subr.mxu0 0.0
    %2590 = vmatpush2.msra.mxu0 0.0
    %2591 = vmatprep.subr.mxu0 0.0
    %2592 = vmatpush2.msra.mxu0 0.0
    %2593 = vmatprep.subr.mxu0 0.0
    %2594 = vmatpush2.msra.mxu0 0.0
    %2595 = vmatprep.subr.mxu0 0.0
    %2596 = vmatpush2.msra.mxu0 0.0
    %2597 = vmatprep.subr.mxu0 0.0
    %2598 = vmatpush2.msra.mxu0 0.0
    %2599 = vmatprep.subr.mxu0 0.0
    %2600 = vmatpush2.msra.mxu0 0.0
    %2601 = vmatprep.subr.mxu0 0.0
    %2602 = vmatpush2.msra.mxu0 0.0
    %2603 = vmatprep.subr.mxu0 0.0
    %2604 = vmatpush2.msra.mxu0 0.0
    %2605 = vmatprep.subr.mxu0 0.0
    %2606 = vmatpush2.msra.mxu0 0.0
    %2607 = vmatprep.subr.mxu0 0.0
    %2608 = vmatpush2.msra.mxu0 0.0
    %2609 = vmatprep.subr.mxu0 0.0
    %2610 = vmatpush2.msra.mxu0 0.0
    %2611 = vmatprep.subr.mxu0 0.0
    %2612 = vmatpush2.msra.mxu0 0.0
    %2613 = vmatprep.subr.mxu0 0.0
    %2614 = vmatpush2.msra.mxu0 0.0
    %2615 = vmatprep.subr.mxu0 0.0
    %2616 = vmatpush2.msra.mxu0 0.0
    %2617 = vmatprep.subr.mxu0 0.0
    %2618 = vmatpush2.msra.mxu0 0.0
    %2619 = vmatprep.subr.mxu0 0.0
    %2620 = vmatpush2.msra.mxu0 0.0
    %2621 = vmatprep.mubr.f32.mxu0 0.0
    %2622 = vmatmul.mubr.f32.gmra.mxu0 %v2299
    %v2623 = vpop.f32.mrf.mxu0
    %v2624 = vadd.f32 0.0, %v2623
    %v2625 = vpop.f32.mrf.mxu0
    %v2626 = vadd.f32 0.0, %v2625
    %2627 = vdwg.mxu0
    %v2628 = vadd.f32 %v2482, %v2553
    %v2629 = vadd.f32 %v2483, %v2555
    %v2630 = vadd.f32 %v2484, %v2624
    %v2631 = vadd.f32 %v2485, %v2626
    %v2632 = vxor.u32 %v2628, 2147483648
    %v2633 = vmul.f32 %v2632, 1.442695
    %v2634 = vpow.pop %v2633
    %v2635 = vadd.f32 %v2634, 1.0
    %v2636 = vrcp.pop %v2635
    %v2637 = vmul.f32 1.0, %v2636
    %v2638 = vxor.u32 %v2629, 2147483648
    %v2639 = vmul.f32 %v2638, 1.442695
    %v2640 = vpow.pop %v2639
    %v2641 = vadd.f32 %v2640, 1.0
    %v2642 = vrcp.pop %v2641
    %v2643 = vmul.f32 1.0, %v2642
    %v2644 = vtanh.pop %v2630
    %v2645 = vxor.u32 %v2631, 2147483648
    %v2646 = vmul.f32 %v2645, 1.442695
    %v2647 = vpow.pop %v2646
    %v2648 = vadd.f32 %v2647, 1.0
    %v2649 = vrcp.pop %v2648
    %v2650 = vmul.f32 1.0, %v2649
    %v2651 = vmul.f32 %v2643, %v2297
    %v2652 = vmul.f32 %v2637, %v2644
    %v2653 = vadd.f32 %v2651, %v2652
    %v2654 = vtanh.pop %v2653
    %v2655 = vmul.f32 %v2650, %v2654
    %s2656 = scalar_lea.vmem [#allocation5], 24
    %2657 = vst [vmem:[%s2656] sm:$0xff] %v2655
    %s2658 = smul.addr %s1765, 8
    %s2659 = scalar_lea.vmem [#allocation2], %s2658
    %v2660 = vld [vmem:[%s2659] sm:$0xff]
    %v2661 = vld [vmem:[%s2659 + $0x8] sm:$0xff]
    %v2662 = vld [vmem:[%s2659 + $0x10] sm:$0xff]
    %v2663 = vld [vmem:[%s2659 + $0x18] sm:$0xff]
    %2664 = vmatprep.subr.mxu0 %v804
    %2665 = vmatpush1.msra.mxu0 %v803
    %2666 = vmatprep.subr.mxu0 %v800
    %2667 = vmatpush1.msra.mxu0 %v799
    %2668 = vmatprep.subr.mxu0 %v796
    %2669 = vmatpush1.msra.mxu0 %v795
    %2670 = vmatprep.subr.mxu0 %v792
    %2671 = vmatpush1.msra.mxu0 %v791
    %2672 = vmatprep.subr.mxu0 %v788
    %2673 = vmatpush1.msra.mxu0 %v787
    %2674 = vmatprep.subr.mxu0 %v784
    %2675 = vmatpush1.msra.mxu0 %v783
    %2676 = vmatprep.subr.mxu0 %v780
    %2677 = vmatpush1.msra.mxu0 %v779
    %2678 = vmatprep.subr.mxu0 %v776
    %2679 = vmatpush1.msra.mxu0 %v775
    %2680 = vmatprep.subr.mxu0 %v772
    %2681 = vmatpush1.msra.mxu0 %v771
    %2682 = vmatprep.subr.mxu0 %v768
    %2683 = vmatpush1.msra.mxu0 %v767
    %2684 = vmatprep.subr.mxu0 %v764
    %2685 = vmatpush1.msra.mxu0 %v763
    %2686 = vmatprep.subr.mxu0 %v760
    %2687 = vmatpush1.msra.mxu0 %v759
    %2688 = vmatprep.subr.mxu0 %v756
    %2689 = vmatpush1.msra.mxu0 %v755
    %2690 = vmatprep.subr.mxu0 %v752
    %2691 = vmatpush1.msra.mxu0 %v751
    %2692 = vmatprep.subr.mxu0 %v748
    %2693 = vmatpush1.msra.mxu0 %v747
    %2694 = vmatprep.subr.mxu0 %v744
    %2695 = vmatpush1.msra.mxu0 %v743
    %2696 = vmatprep.subr.mxu0 0.0
    %2697 = vmatpush2.msra.mxu0 0.0
    %2698 = vmatprep.subr.mxu0 0.0
    %2699 = vmatpush2.msra.mxu0 0.0
    %2700 = vmatprep.subr.mxu0 0.0
    %2701 = vmatpush2.msra.mxu0 0.0
    %2702 = vmatprep.subr.mxu0 0.0
    %2703 = vmatpush2.msra.mxu0 0.0
    %2704 = vmatprep.subr.mxu0 0.0
    %2705 = vmatpush2.msra.mxu0 0.0
    %2706 = vmatprep.subr.mxu0 0.0
    %2707 = vmatpush2.msra.mxu0 0.0
    %2708 = vmatprep.subr.mxu0 0.0
    %2709 = vmatpush2.msra.mxu0 0.0
    %2710 = vmatprep.subr.mxu0 0.0
    %2711 = vmatpush2.msra.mxu0 0.0
    %2712 = vmatprep.subr.mxu0 0.0
    %2713 = vmatpush2.msra.mxu0 0.0
    %2714 = vmatprep.subr.mxu0 0.0
    %2715 = vmatpush2.msra.mxu0 0.0
    %2716 = vmatprep.subr.mxu0 0.0
    %2717 = vmatpush2.msra.mxu0 0.0
    %2718 = vmatprep.subr.mxu0 0.0
    %2719 = vmatpush2.msra.mxu0 0.0
    %2720 = vmatprep.subr.mxu0 0.0
    %2721 = vmatpush2.msra.mxu0 0.0
    %2722 = vmatprep.subr.mxu0 0.0
    %2723 = vmatpush2.msra.mxu0 0.0
    %2724 = vmatprep.subr.mxu0 0.0
    %2725 = vmatpush2.msra.mxu0 0.0
    %2726 = vmatprep.subr.mxu0 0.0
    %2727 = vmatpush2.msra.mxu0 0.0
    %2728 = vmatprep.mubr.f32.mxu0 0.0
    %2729 = vmatmul.mubr.f32.gmra.mxu0 %v2477
    %v2730 = vpop.f32.mrf.mxu0
    %v2731 = vadd.f32 0.0, %v2730
    %v2732 = vpop.f32.mrf.mxu0
    %v2733 = vadd.f32 0.0, %v2732
    %2734 = vdwg.mxu0
    %2735 = vmatprep.subr.mxu0 %v806
    %2736 = vmatpush1.msra.mxu0 %v805
    %2737 = vmatprep.subr.mxu0 %v802
    %2738 = vmatpush1.msra.mxu0 %v801
    %2739 = vmatprep.subr.mxu0 %v798
    %2740 = vmatpush1.msra.mxu0 %v797
    %2741 = vmatprep.subr.mxu0 %v794
    %2742 = vmatpush1.msra.mxu0 %v793
    %2743 = vmatprep.subr.mxu0 %v790
    %2744 = vmatpush1.msra.mxu0 %v789
    %2745 = vmatprep.subr.mxu0 %v786
    %2746 = vmatpush1.msra.mxu0 %v785
    %2747 = vmatprep.subr.mxu0 %v782
    %2748 = vmatpush1.msra.mxu0 %v781
    %2749 = vmatprep.subr.mxu0 %v778
    %2750 = vmatpush1.msra.mxu0 %v777
    %2751 = vmatprep.subr.mxu0 %v774
    %2752 = vmatpush1.msra.mxu0 %v773
    %2753 = vmatprep.subr.mxu0 %v770
    %2754 = vmatpush1.msra.mxu0 %v769
    %2755 = vmatprep.subr.mxu0 %v766
    %2756 = vmatpush1.msra.mxu0 %v765
    %2757 = vmatprep.subr.mxu0 %v762
    %2758 = vmatpush1.msra.mxu0 %v761
    %2759 = vmatprep.subr.mxu0 %v758
    %2760 = vmatpush1.msra.mxu0 %v757
    %2761 = vmatprep.subr.mxu0 %v754
    %2762 = vmatpush1.msra.mxu0 %v753
    %2763 = vmatprep.subr.mxu0 %v750
    %2764 = vmatpush1.msra.mxu0 %v749
    %2765 = vmatprep.subr.mxu0 %v746
    %2766 = vmatpush1.msra.mxu0 %v745
    %2767 = vmatprep.subr.mxu0 0.0
    %2768 = vmatpush2.msra.mxu0 0.0
    %2769 = vmatprep.subr.mxu0 0.0
    %2770 = vmatpush2.msra.mxu0 0.0
    %2771 = vmatprep.subr.mxu0 0.0
    %2772 = vmatpush2.msra.mxu0 0.0
    %2773 = vmatprep.subr.mxu0 0.0
    %2774 = vmatpush2.msra.mxu0 0.0
    %2775 = vmatprep.subr.mxu0 0.0
    %2776 = vmatpush2.msra.mxu0 0.0
    %2777 = vmatprep.subr.mxu0 0.0
    %2778 = vmatpush2.msra.mxu0 0.0
    %2779 = vmatprep.subr.mxu0 0.0
    %2780 = vmatpush2.msra.mxu0 0.0
    %2781 = vmatprep.subr.mxu0 0.0
    %2782 = vmatpush2.msra.mxu0 0.0
    %2783 = vmatprep.subr.mxu0 0.0
    %2784 = vmatpush2.msra.mxu0 0.0
    %2785 = vmatprep.subr.mxu0 0.0
    %2786 = vmatpush2.msra.mxu0 0.0
    %2787 = vmatprep.subr.mxu0 0.0
    %2788 = vmatpush2.msra.mxu0 0.0
    %2789 = vmatprep.subr.mxu0 0.0
    %2790 = vmatpush2.msra.mxu0 0.0
    %2791 = vmatprep.subr.mxu0 0.0
    %2792 = vmatpush2.msra.mxu0 0.0
    %2793 = vmatprep.subr.mxu0 0.0
    %2794 = vmatpush2.msra.mxu0 0.0
    %2795 = vmatprep.subr.mxu0 0.0
    %2796 = vmatpush2.msra.mxu0 0.0
    %2797 = vmatprep.subr.mxu0 0.0
    %2798 = vmatpush2.msra.mxu0 0.0
    %2799 = vmatprep.mubr.f32.mxu0 0.0
    %2800 = vmatmul.mubr.f32.gmra.mxu0 %v2477
    %v2801 = vpop.f32.mrf.mxu0
    %v2802 = vadd.f32 0.0, %v2801
    %v2803 = vpop.f32.mrf.mxu0
    %v2804 = vadd.f32 0.0, %v2803
    %2805 = vdwg.mxu0
    %v2806 = vadd.f32 %v2660, %v2731
    %v2807 = vadd.f32 %v2661, %v2733
    %v2808 = vadd.f32 %v2662, %v2802
    %v2809 = vadd.f32 %v2663, %v2804
    %v2810 = vxor.u32 %v2806, 2147483648
    %v2811 = vmul.f32 %v2810, 1.442695
    %v2812 = vpow.pop %v2811
    %v2813 = vadd.f32 %v2812, 1.0
    %v2814 = vrcp.pop %v2813
    %v2815 = vmul.f32 1.0, %v2814
    %v2816 = vxor.u32 %v2807, 2147483648
    %v2817 = vmul.f32 %v2816, 1.442695
    %v2818 = vpow.pop %v2817
    %v2819 = vadd.f32 %v2818, 1.0
    %v2820 = vrcp.pop %v2819
    %v2821 = vmul.f32 1.0, %v2820
    %v2822 = vtanh.pop %v2808
    %v2823 = vxor.u32 %v2809, 2147483648
    %v2824 = vmul.f32 %v2823, 1.442695
    %v2825 = vpow.pop %v2824
    %v2826 = vadd.f32 %v2825, 1.0
    %v2827 = vrcp.pop %v2826
    %v2828 = vmul.f32 1.0, %v2827
    %v2829 = vmul.f32 %v2821, %v2475
    %v2830 = vmul.f32 %v2815, %v2822
    %v2831 = vadd.f32 %v2829, %v2830
    %v2832 = vtanh.pop %v2831
    %v2833 = vmul.f32 %v2828, %v2832
    %s2834 = scalar_lea.vmem [#allocation4], 40
    %2835 = vst [vmem:[%s2834] sm:$0xff] %v2833
    %s2836 = smul.addr %s1586, 8
    %s2837 = scalar_lea.vmem [#allocation3], %s2836
    %v2838 = vld [vmem:[%s2837] sm:$0xff]
    %v2839 = vld [vmem:[%s2837 + $0x8] sm:$0xff]
    %v2840 = vld [vmem:[%s2837 + $0x10] sm:$0xff]
    %v2841 = vld [vmem:[%s2837 + $0x18] sm:$0xff]
    %2842 = vmatprep.subr.mxu0 %v868
    %2843 = vmatpush1.msra.mxu0 %v867
    %2844 = vmatprep.subr.mxu0 %v864
    %2845 = vmatpush1.msra.mxu0 %v863
    %2846 = vmatprep.subr.mxu0 %v860
    %2847 = vmatpush1.msra.mxu0 %v859
    %2848 = vmatprep.subr.mxu0 %v856
    %2849 = vmatpush1.msra.mxu0 %v855
    %2850 = vmatprep.subr.mxu0 %v852
    %2851 = vmatpush1.msra.mxu0 %v851
    %2852 = vmatprep.subr.mxu0 %v848
    %2853 = vmatpush1.msra.mxu0 %v847
    %2854 = vmatprep.subr.mxu0 %v844
    %2855 = vmatpush1.msra.mxu0 %v843
    %2856 = vmatprep.subr.mxu0 %v840
    %2857 = vmatpush1.msra.mxu0 %v839
    %2858 = vmatprep.subr.mxu0 %v836
    %2859 = vmatpush1.msra.mxu0 %v835
    %2860 = vmatprep.subr.mxu0 %v832
    %2861 = vmatpush1.msra.mxu0 %v831
    %2862 = vmatprep.subr.mxu0 %v828
    %2863 = vmatpush1.msra.mxu0 %v827
    %2864 = vmatprep.subr.mxu0 %v824
    %2865 = vmatpush1.msra.mxu0 %v823
    %2866 = vmatprep.subr.mxu0 %v820
    %2867 = vmatpush1.msra.mxu0 %v819
    %2868 = vmatprep.subr.mxu0 %v816
    %2869 = vmatpush1.msra.mxu0 %v815
    %2870 = vmatprep.subr.mxu0 %v812
    %2871 = vmatpush1.msra.mxu0 %v811
    %2872 = vmatprep.subr.mxu0 %v808
    %2873 = vmatpush1.msra.mxu0 %v807
    %2874 = vmatprep.subr.mxu0 0.0
    %2875 = vmatpush2.msra.mxu0 0.0
    %2876 = vmatprep.subr.mxu0 0.0
    %2877 = vmatpush2.msra.mxu0 0.0
    %2878 = vmatprep.subr.mxu0 0.0
    %2879 = vmatpush2.msra.mxu0 0.0
    %2880 = vmatprep.subr.mxu0 0.0
    %2881 = vmatpush2.msra.mxu0 0.0
    %2882 = vmatprep.subr.mxu0 0.0
    %2883 = vmatpush2.msra.mxu0 0.0
    %2884 = vmatprep.subr.mxu0 0.0
    %2885 = vmatpush2.msra.mxu0 0.0
    %2886 = vmatprep.subr.mxu0 0.0
    %2887 = vmatpush2.msra.mxu0 0.0
    %2888 = vmatprep.subr.mxu0 0.0
    %2889 = vmatpush2.msra.mxu0 0.0
    %2890 = vmatprep.subr.mxu0 0.0
    %2891 = vmatpush2.msra.mxu0 0.0
    %2892 = vmatprep.subr.mxu0 0.0
    %2893 = vmatpush2.msra.mxu0 0.0
    %2894 = vmatprep.subr.mxu0 0.0
    %2895 = vmatpush2.msra.mxu0 0.0
    %2896 = vmatprep.subr.mxu0 0.0
    %2897 = vmatpush2.msra.mxu0 0.0
    %2898 = vmatprep.subr.mxu0 0.0
    %2899 = vmatpush2.msra.mxu0 0.0
    %2900 = vmatprep.subr.mxu0 0.0
    %2901 = vmatpush2.msra.mxu0 0.0
    %2902 = vmatprep.subr.mxu0 0.0
    %2903 = vmatpush2.msra.mxu0 0.0
    %2904 = vmatprep.subr.mxu0 0.0
    %2905 = vmatpush2.msra.mxu0 0.0
    %2906 = vmatprep.mubr.f32.mxu0 0.0
    %2907 = vmatmul.mubr.f32.gmra.mxu0 %v2655
    %v2908 = vpop.f32.mrf.mxu0
    %v2909 = vadd.f32 0.0, %v2908
    %v2910 = vpop.f32.mrf.mxu0
    %v2911 = vadd.f32 0.0, %v2910
    %2912 = vdwg.mxu0
    %2913 = vmatprep.subr.mxu0 %v870
    %2914 = vmatpush1.msra.mxu0 %v869
    %2915 = vmatprep.subr.mxu0 %v866
    %2916 = vmatpush1.msra.mxu0 %v865
    %2917 = vmatprep.subr.mxu0 %v862
    %2918 = vmatpush1.msra.mxu0 %v861
    %2919 = vmatprep.subr.mxu0 %v858
    %2920 = vmatpush1.msra.mxu0 %v857
    %2921 = vmatprep.subr.mxu0 %v854
    %2922 = vmatpush1.msra.mxu0 %v853
    %2923 = vmatprep.subr.mxu0 %v850
    %2924 = vmatpush1.msra.mxu0 %v849
    %2925 = vmatprep.subr.mxu0 %v846
    %2926 = vmatpush1.msra.mxu0 %v845
    %2927 = vmatprep.subr.mxu0 %v842
    %2928 = vmatpush1.msra.mxu0 %v841
    %2929 = vmatprep.subr.mxu0 %v838
    %2930 = vmatpush1.msra.mxu0 %v837
    %2931 = vmatprep.subr.mxu0 %v834
    %2932 = vmatpush1.msra.mxu0 %v833
    %2933 = vmatprep.subr.mxu0 %v830
    %2934 = vmatpush1.msra.mxu0 %v829
    %2935 = vmatprep.subr.mxu0 %v826
    %2936 = vmatpush1.msra.mxu0 %v825
    %2937 = vmatprep.subr.mxu0 %v822
    %2938 = vmatpush1.msra.mxu0 %v821
    %2939 = vmatprep.subr.mxu0 %v818
    %2940 = vmatpush1.msra.mxu0 %v817
    %2941 = vmatprep.subr.mxu0 %v814
    %2942 = vmatpush1.msra.mxu0 %v813
    %2943 = vmatprep.subr.mxu0 %v810
    %2944 = vmatpush1.msra.mxu0 %v809
    %2945 = vmatprep.subr.mxu0 0.0
    %2946 = vmatpush2.msra.mxu0 0.0
    %2947 = vmatprep.subr.mxu0 0.0
    %2948 = vmatpush2.msra.mxu0 0.0
    %2949 = vmatprep.subr.mxu0 0.0
    %2950 = vmatpush2.msra.mxu0 0.0
    %2951 = vmatprep.subr.mxu0 0.0
    %2952 = vmatpush2.msra.mxu0 0.0
    %2953 = vmatprep.subr.mxu0 0.0
    %2954 = vmatpush2.msra.mxu0 0.0
    %2955 = vmatprep.subr.mxu0 0.0
    %2956 = vmatpush2.msra.mxu0 0.0
    %2957 = vmatprep.subr.mxu0 0.0
    %2958 = vmatpush2.msra.mxu0 0.0
    %2959 = vmatprep.subr.mxu0 0.0
    %2960 = vmatpush2.msra.mxu0 0.0
    %2961 = vmatprep.subr.mxu0 0.0
    %2962 = vmatpush2.msra.mxu0 0.0
    %2963 = vmatprep.subr.mxu0 0.0
    %2964 = vmatpush2.msra.mxu0 0.0
    %2965 = vmatprep.subr.mxu0 0.0
    %2966 = vmatpush2.msra.mxu0 0.0
    %2967 = vmatprep.subr.mxu0 0.0
    %2968 = vmatpush2.msra.mxu0 0.0
    %2969 = vmatprep.subr.mxu0 0.0
    %2970 = vmatpush2.msra.mxu0 0.0
    %2971 = vmatprep.subr.mxu0 0.0
    %2972 = vmatpush2.msra.mxu0 0.0
    %2973 = vmatprep.subr.mxu0 0.0
    %2974 = vmatpush2.msra.mxu0 0.0
    %2975 = vmatprep.subr.mxu0 0.0
    %2976 = vmatpush2.msra.mxu0 0.0
    %2977 = vmatprep.mubr.f32.mxu0 0.0
    %2978 = vmatmul.mubr.f32.gmra.mxu0 %v2655
    %v2979 = vpop.f32.mrf.mxu0
    %v2980 = vadd.f32 0.0, %v2979
    %v2981 = vpop.f32.mrf.mxu0
    %v2982 = vadd.f32 0.0, %v2981
    %2983 = vdwg.mxu0
    %v2984 = vadd.f32 %v2838, %v2909
    %v2985 = vadd.f32 %v2839, %v2911
    %v2986 = vadd.f32 %v2840, %v2980
    %v2987 = vadd.f32 %v2841, %v2982
    %v2988 = vxor.u32 %v2984, 2147483648
    %v2989 = vmul.f32 %v2988, 1.442695
    %v2990 = vpow.pop %v2989
    %v2991 = vadd.f32 %v2990, 1.0
    %v2992 = vrcp.pop %v2991
    %v2993 = vmul.f32 1.0, %v2992
    %v2994 = vxor.u32 %v2985, 2147483648
    %v2995 = vmul.f32 %v2994, 1.442695
    %v2996 = vpow.pop %v2995
    %v2997 = vadd.f32 %v2996, 1.0
    %v2998 = vrcp.pop %v2997
    %v2999 = vmul.f32 1.0, %v2998
    %v3000 = vtanh.pop %v2986
    %v3001 = vxor.u32 %v2987, 2147483648
    %v3002 = vmul.f32 %v3001, 1.442695
    %v3003 = vpow.pop %v3002
    %v3004 = vadd.f32 %v3003, 1.0
    %v3005 = vrcp.pop %v3004
    %v3006 = vmul.f32 1.0, %v3005
    %v3007 = vmul.f32 %v2999, %v2653
    %v3008 = vmul.f32 %v2993, %v3000
    %v3009 = vadd.f32 %v3007, %v3008
    %v3010 = vtanh.pop %v3009
    %v3011 = vmul.f32 %v3006, %v3010
    %s3012 = scalar_lea.vmem [#allocation5], 16
    %3013 = vst [vmem:[%s3012] sm:$0xff] %v3011
    %s3014 = smul.addr %s1407, 8
    %s3015 = scalar_lea.vmem [#allocation2], %s3014
    %v3016 = vld [vmem:[%s3015] sm:$0xff]
    %v3017 = vld [vmem:[%s3015 + $0x8] sm:$0xff]
    %v3018 = vld [vmem:[%s3015 + $0x10] sm:$0xff]
    %v3019 = vld [vmem:[%s3015 + $0x18] sm:$0xff]
    %3020 = vmatprep.subr.mxu0 %v804
    %3021 = vmatpush1.msra.mxu0 %v803
    %3022 = vmatprep.subr.mxu0 %v800
    %3023 = vmatpush1.msra.mxu0 %v799
    %3024 = vmatprep.subr.mxu0 %v796
    %3025 = vmatpush1.msra.mxu0 %v795
    %3026 = vmatprep.subr.mxu0 %v792
    %3027 = vmatpush1.msra.mxu0 %v791
    %3028 = vmatprep.subr.mxu0 %v788
    %3029 = vmatpush1.msra.mxu0 %v787
    %3030 = vmatprep.subr.mxu0 %v784
    %3031 = vmatpush1.msra.mxu0 %v783
    %3032 = vmatprep.subr.mxu0 %v780
    %3033 = vmatpush1.msra.mxu0 %v779
    %3034 = vmatprep.subr.mxu0 %v776
    %3035 = vmatpush1.msra.mxu0 %v775
    %3036 = vmatprep.subr.mxu0 %v772
    %3037 = vmatpush1.msra.mxu0 %v771
    %3038 = vmatprep.subr.mxu0 %v768
    %3039 = vmatpush1.msra.mxu0 %v767
    %3040 = vmatprep.subr.mxu0 %v764
    %3041 = vmatpush1.msra.mxu0 %v763
    %3042 = vmatprep.subr.mxu0 %v760
    %3043 = vmatpush1.msra.mxu0 %v759
    %3044 = vmatprep.subr.mxu0 %v756
    %3045 = vmatpush1.msra.mxu0 %v755
    %3046 = vmatprep.subr.mxu0 %v752
    %3047 = vmatpush1.msra.mxu0 %v751
    %3048 = vmatprep.subr.mxu0 %v748
    %3049 = vmatpush1.msra.mxu0 %v747
    %3050 = vmatprep.subr.mxu0 %v744
    %3051 = vmatpush1.msra.mxu0 %v743
    %3052 = vmatprep.subr.mxu0 0.0
    %3053 = vmatpush2.msra.mxu0 0.0
    %3054 = vmatprep.subr.mxu0 0.0
    %3055 = vmatpush2.msra.mxu0 0.0
    %3056 = vmatprep.subr.mxu0 0.0
    %3057 = vmatpush2.msra.mxu0 0.0
    %3058 = vmatprep.subr.mxu0 0.0
    %3059 = vmatpush2.msra.mxu0 0.0
    %3060 = vmatprep.subr.mxu0 0.0
    %3061 = vmatpush2.msra.mxu0 0.0
    %3062 = vmatprep.subr.mxu0 0.0
    %3063 = vmatpush2.msra.mxu0 0.0
    %3064 = vmatprep.subr.mxu0 0.0
    %3065 = vmatpush2.msra.mxu0 0.0
    %3066 = vmatprep.subr.mxu0 0.0
    %3067 = vmatpush2.msra.mxu0 0.0
    %3068 = vmatprep.subr.mxu0 0.0
    %3069 = vmatpush2.msra.mxu0 0.0
    %3070 = vmatprep.subr.mxu0 0.0
    %3071 = vmatpush2.msra.mxu0 0.0
    %3072 = vmatprep.subr.mxu0 0.0
    %3073 = vmatpush2.msra.mxu0 0.0
    %3074 = vmatprep.subr.mxu0 0.0
    %3075 = vmatpush2.msra.mxu0 0.0
    %3076 = vmatprep.subr.mxu0 0.0
    %3077 = vmatpush2.msra.mxu0 0.0
    %3078 = vmatprep.subr.mxu0 0.0
    %3079 = vmatpush2.msra.mxu0 0.0
    %3080 = vmatprep.subr.mxu0 0.0
    %3081 = vmatpush2.msra.mxu0 0.0
    %3082 = vmatprep.subr.mxu0 0.0
    %3083 = vmatpush2.msra.mxu0 0.0
    %3084 = vmatprep.mubr.f32.mxu0 0.0
    %3085 = vmatmul.mubr.f32.gmra.mxu0 %v2833
    %v3086 = vpop.f32.mrf.mxu0
    %v3087 = vadd.f32 0.0, %v3086
    %v3088 = vpop.f32.mrf.mxu0
    %v3089 = vadd.f32 0.0, %v3088
    %3090 = vdwg.mxu0
    %3091 = vmatprep.subr.mxu0 %v806
    %3092 = vmatpush1.msra.mxu0 %v805
    %3093 = vmatprep.subr.mxu0 %v802
    %3094 = vmatpush1.msra.mxu0 %v801
    %3095 = vmatprep.subr.mxu0 %v798
    %3096 = vmatpush1.msra.mxu0 %v797
    %3097 = vmatprep.subr.mxu0 %v794
    %3098 = vmatpush1.msra.mxu0 %v793
    %3099 = vmatprep.subr.mxu0 %v790
    %3100 = vmatpush1.msra.mxu0 %v789
    %3101 = vmatprep.subr.mxu0 %v786
    %3102 = vmatpush1.msra.mxu0 %v785
    %3103 = vmatprep.subr.mxu0 %v782
    %3104 = vmatpush1.msra.mxu0 %v781
    %3105 = vmatprep.subr.mxu0 %v778
    %3106 = vmatpush1.msra.mxu0 %v777
    %3107 = vmatprep.subr.mxu0 %v774
    %3108 = vmatpush1.msra.mxu0 %v773
    %3109 = vmatprep.subr.mxu0 %v770
    %3110 = vmatpush1.msra.mxu0 %v769
    %3111 = vmatprep.subr.mxu0 %v766
    %3112 = vmatpush1.msra.mxu0 %v765
    %3113 = vmatprep.subr.mxu0 %v762
    %3114 = vmatpush1.msra.mxu0 %v761
    %3115 = vmatprep.subr.mxu0 %v758
    %3116 = vmatpush1.msra.mxu0 %v757
    %3117 = vmatprep.subr.mxu0 %v754
    %3118 = vmatpush1.msra.mxu0 %v753
    %3119 = vmatprep.subr.mxu0 %v750
    %3120 = vmatpush1.msra.mxu0 %v749
    %3121 = vmatprep.subr.mxu0 %v746
    %3122 = vmatpush1.msra.mxu0 %v745
    %3123 = vmatprep.subr.mxu0 0.0
    %3124 = vmatpush2.msra.mxu0 0.0
    %3125 = vmatprep.subr.mxu0 0.0
    %3126 = vmatpush2.msra.mxu0 0.0
    %3127 = vmatprep.subr.mxu0 0.0
    %3128 = vmatpush2.msra.mxu0 0.0
    %3129 = vmatprep.subr.mxu0 0.0
    %3130 = vmatpush2.msra.mxu0 0.0
    %3131 = vmatprep.subr.mxu0 0.0
    %3132 = vmatpush2.msra.mxu0 0.0
    %3133 = vmatprep.subr.mxu0 0.0
    %3134 = vmatpush2.msra.mxu0 0.0
    %3135 = vmatprep.subr.mxu0 0.0
    %3136 = vmatpush2.msra.mxu0 0.0
    %3137 = vmatprep.subr.mxu0 0.0
    %3138 = vmatpush2.msra.mxu0 0.0
    %3139 = vmatprep.subr.mxu0 0.0
    %3140 = vmatpush2.msra.mxu0 0.0
    %3141 = vmatprep.subr.mxu0 0.0
    %3142 = vmatpush2.msra.mxu0 0.0
    %3143 = vmatprep.subr.mxu0 0.0
    %3144 = vmatpush2.msra.mxu0 0.0
    %3145 = vmatprep.subr.mxu0 0.0
    %3146 = vmatpush2.msra.mxu0 0.0
    %3147 = vmatprep.subr.mxu0 0.0
    %3148 = vmatpush2.msra.mxu0 0.0
    %3149 = vmatprep.subr.mxu0 0.0
    %3150 = vmatpush2.msra.mxu0 0.0
    %3151 = vmatprep.subr.mxu0 0.0
    %3152 = vmatpush2.msra.mxu0 0.0
    %3153 = vmatprep.subr.mxu0 0.0
    %3154 = vmatpush2.msra.mxu0 0.0
    %3155 = vmatprep.mubr.f32.mxu0 0.0
    %3156 = vmatmul.mubr.f32.gmra.mxu0 %v2833
    %v3157 = vpop.f32.mrf.mxu0
    %v3158 = vadd.f32 0.0, %v3157
    %v3159 = vpop.f32.mrf.mxu0
    %v3160 = vadd.f32 0.0, %v3159
    %3161 = vdwg.mxu0
    %v3162 = vadd.f32 %v3016, %v3087
    %v3163 = vadd.f32 %v3017, %v3089
    %v3164 = vadd.f32 %v3018, %v3158
    %v3165 = vadd.f32 %v3019, %v3160
    %v3166 = vxor.u32 %v3162, 2147483648
    %v3167 = vmul.f32 %v3166, 1.442695
    %v3168 = vpow.pop %v3167
    %v3169 = vadd.f32 %v3168, 1.0
    %v3170 = vrcp.pop %v3169
    %v3171 = vmul.f32 1.0, %v3170
    %v3172 = vxor.u32 %v3163, 2147483648
    %v3173 = vmul.f32 %v3172, 1.442695
    %v3174 = vpow.pop %v3173
    %v3175 = vadd.f32 %v3174, 1.0
    %v3176 = vrcp.pop %v3175
    %v3177 = vmul.f32 1.0, %v3176
    %v3178 = vtanh.pop %v3164
    %v3179 = vxor.u32 %v3165, 2147483648
    %v3180 = vmul.f32 %v3179, 1.442695
    %v3181 = vpow.pop %v3180
    %v3182 = vadd.f32 %v3181, 1.0
    %v3183 = vrcp.pop %v3182
    %v3184 = vmul.f32 1.0, %v3183
    %v3185 = vmul.f32 %v3177, %v2831
    %v3186 = vmul.f32 %v3171, %v3178
    %v3187 = vadd.f32 %v3185, %v3186
    %v3188 = vtanh.pop %v3187
    %v3189 = vmul.f32 %v3184, %v3188
    %s3190 = scalar_lea.vmem [#allocation4], 48
    %3191 = vst [vmem:[%s3190] sm:$0xff] %v3189
    %s3192 = smul.addr %s1228, 8
    %s3193 = scalar_lea.vmem [#allocation3], %s3192
    %v3194 = vld [vmem:[%s3193] sm:$0xff]
    %v3195 = vld [vmem:[%s3193 + $0x8] sm:$0xff]
    %v3196 = vld [vmem:[%s3193 + $0x10] sm:$0xff]
    %v3197 = vld [vmem:[%s3193 + $0x18] sm:$0xff]
    %3198 = vmatprep.subr.mxu0 %v868
    %3199 = vmatpush1.msra.mxu0 %v867
    %3200 = vmatprep.subr.mxu0 %v864
    %3201 = vmatpush1.msra.mxu0 %v863
    %3202 = vmatprep.subr.mxu0 %v860
    %3203 = vmatpush1.msra.mxu0 %v859
    %3204 = vmatprep.subr.mxu0 %v856
    %3205 = vmatpush1.msra.mxu0 %v855
    %3206 = vmatprep.subr.mxu0 %v852
    %3207 = vmatpush1.msra.mxu0 %v851
    %3208 = vmatprep.subr.mxu0 %v848
    %3209 = vmatpush1.msra.mxu0 %v847
    %3210 = vmatprep.subr.mxu0 %v844
    %3211 = vmatpush1.msra.mxu0 %v843
    %3212 = vmatprep.subr.mxu0 %v840
    %3213 = vmatpush1.msra.mxu0 %v839
    %3214 = vmatprep.subr.mxu0 %v836
    %3215 = vmatpush1.msra.mxu0 %v835
    %3216 = vmatprep.subr.mxu0 %v832
    %3217 = vmatpush1.msra.mxu0 %v831
    %3218 = vmatprep.subr.mxu0 %v828
    %3219 = vmatpush1.msra.mxu0 %v827
    %3220 = vmatprep.subr.mxu0 %v824
    %3221 = vmatpush1.msra.mxu0 %v823
    %3222 = vmatprep.subr.mxu0 %v820
    %3223 = vmatpush1.msra.mxu0 %v819
    %3224 = vmatprep.subr.mxu0 %v816
    %3225 = vmatpush1.msra.mxu0 %v815
    %3226 = vmatprep.subr.mxu0 %v812
    %3227 = vmatpush1.msra.mxu0 %v811
    %3228 = vmatprep.subr.mxu0 %v808
    %3229 = vmatpush1.msra.mxu0 %v807
    %3230 = vmatprep.subr.mxu0 0.0
    %3231 = vmatpush2.msra.mxu0 0.0
    %3232 = vmatprep.subr.mxu0 0.0
    %3233 = vmatpush2.msra.mxu0 0.0
    %3234 = vmatprep.subr.mxu0 0.0
    %3235 = vmatpush2.msra.mxu0 0.0
    %3236 = vmatprep.subr.mxu0 0.0
    %3237 = vmatpush2.msra.mxu0 0.0
    %3238 = vmatprep.subr.mxu0 0.0
    %3239 = vmatpush2.msra.mxu0 0.0
    %3240 = vmatprep.subr.mxu0 0.0
    %3241 = vmatpush2.msra.mxu0 0.0
    %3242 = vmatprep.subr.mxu0 0.0
    %3243 = vmatpush2.msra.mxu0 0.0
    %3244 = vmatprep.subr.mxu0 0.0
    %3245 = vmatpush2.msra.mxu0 0.0
    %3246 = vmatprep.subr.mxu0 0.0
    %3247 = vmatpush2.msra.mxu0 0.0
    %3248 = vmatprep.subr.mxu0 0.0
    %3249 = vmatpush2.msra.mxu0 0.0
    %3250 = vmatprep.subr.mxu0 0.0
    %3251 = vmatpush2.msra.mxu0 0.0
    %3252 = vmatprep.subr.mxu0 0.0
    %3253 = vmatpush2.msra.mxu0 0.0
    %3254 = vmatprep.subr.mxu0 0.0
    %3255 = vmatpush2.msra.mxu0 0.0
    %3256 = vmatprep.subr.mxu0 0.0
    %3257 = vmatpush2.msra.mxu0 0.0
    %3258 = vmatprep.subr.mxu0 0.0
    %3259 = vmatpush2.msra.mxu0 0.0
    %3260 = vmatprep.subr.mxu0 0.0
    %3261 = vmatpush2.msra.mxu0 0.0
    %3262 = vmatprep.mubr.f32.mxu0 0.0
    %3263 = vmatmul.mubr.f32.gmra.mxu0 %v3011
    %v3264 = vpop.f32.mrf.mxu0
    %v3265 = vadd.f32 0.0, %v3264
    %v3266 = vpop.f32.mrf.mxu0
    %v3267 = vadd.f32 0.0, %v3266
    %3268 = vdwg.mxu0
    %3269 = vmatprep.subr.mxu0 %v870
    %3270 = vmatpush1.msra.mxu0 %v869
    %3271 = vmatprep.subr.mxu0 %v866
    %3272 = vmatpush1.msra.mxu0 %v865
    %3273 = vmatprep.subr.mxu0 %v862
    %3274 = vmatpush1.msra.mxu0 %v861
    %3275 = vmatprep.subr.mxu0 %v858
    %3276 = vmatpush1.msra.mxu0 %v857
    %3277 = vmatprep.subr.mxu0 %v854
    %3278 = vmatpush1.msra.mxu0 %v853
    %3279 = vmatprep.subr.mxu0 %v850
    %3280 = vmatpush1.msra.mxu0 %v849
    %3281 = vmatprep.subr.mxu0 %v846
    %3282 = vmatpush1.msra.mxu0 %v845
    %3283 = vmatprep.subr.mxu0 %v842
    %3284 = vmatpush1.msra.mxu0 %v841
    %3285 = vmatprep.subr.mxu0 %v838
    %3286 = vmatpush1.msra.mxu0 %v837
    %3287 = vmatprep.subr.mxu0 %v834
    %3288 = vmatpush1.msra.mxu0 %v833
    %3289 = vmatprep.subr.mxu0 %v830
    %3290 = vmatpush1.msra.mxu0 %v829
    %3291 = vmatprep.subr.mxu0 %v826
    %3292 = vmatpush1.msra.mxu0 %v825
    %3293 = vmatprep.subr.mxu0 %v822
    %3294 = vmatpush1.msra.mxu0 %v821
    %3295 = vmatprep.subr.mxu0 %v818
    %3296 = vmatpush1.msra.mxu0 %v817
    %3297 = vmatprep.subr.mxu0 %v814
    %3298 = vmatpush1.msra.mxu0 %v813
    %3299 = vmatprep.subr.mxu0 %v810
    %3300 = vmatpush1.msra.mxu0 %v809
    %3301 = vmatprep.subr.mxu0 0.0
    %3302 = vmatpush2.msra.mxu0 0.0
    %3303 = vmatprep.subr.mxu0 0.0
    %3304 = vmatpush2.msra.mxu0 0.0
    %3305 = vmatprep.subr.mxu0 0.0
    %3306 = vmatpush2.msra.mxu0 0.0
    %3307 = vmatprep.subr.mxu0 0.0
    %3308 = vmatpush2.msra.mxu0 0.0
    %3309 = vmatprep.subr.mxu0 0.0
    %3310 = vmatpush2.msra.mxu0 0.0
    %3311 = vmatprep.subr.mxu0 0.0
    %3312 = vmatpush2.msra.mxu0 0.0
    %3313 = vmatprep.subr.mxu0 0.0
    %3314 = vmatpush2.msra.mxu0 0.0
    %3315 = vmatprep.subr.mxu0 0.0
    %3316 = vmatpush2.msra.mxu0 0.0
    %3317 = vmatprep.subr.mxu0 0.0
    %3318 = vmatpush2.msra.mxu0 0.0
    %3319 = vmatprep.subr.mxu0 0.0
    %3320 = vmatpush2.msra.mxu0 0.0
    %3321 = vmatprep.subr.mxu0 0.0
    %3322 = vmatpush2.msra.mxu0 0.0
    %3323 = vmatprep.subr.mxu0 0.0
    %3324 = vmatpush2.msra.mxu0 0.0
    %3325 = vmatprep.subr.mxu0 0.0
    %3326 = vmatpush2.msra.mxu0 0.0
    %3327 = vmatprep.subr.mxu0 0.0
    %3328 = vmatpush2.msra.mxu0 0.0
    %3329 = vmatprep.subr.mxu0 0.0
    %3330 = vmatpush2.msra.mxu0 0.0
    %3331 = vmatprep.subr.mxu0 0.0
    %3332 = vmatpush2.msra.mxu0 0.0
    %3333 = vmatprep.mubr.f32.mxu0 0.0
    %3334 = vmatmul.mubr.f32.gmra.mxu0 %v3011
    %v3335 = vpop.f32.mrf.mxu0
    %v3336 = vadd.f32 0.0, %v3335
    %v3337 = vpop.f32.mrf.mxu0
    %v3338 = vadd.f32 0.0, %v3337
    %3339 = vdwg.mxu0
    %v3340 = vadd.f32 %v3194, %v3265
    %v3341 = vadd.f32 %v3195, %v3267
    %v3342 = vadd.f32 %v3196, %v3336
    %v3343 = vadd.f32 %v3197, %v3338
    %v3344 = vxor.u32 %v3340, 2147483648
    %v3345 = vmul.f32 %v3344, 1.442695
    %v3346 = vpow.pop %v3345
    %v3347 = vadd.f32 %v3346, 1.0
    %v3348 = vrcp.pop %v3347
    %v3349 = vmul.f32 1.0, %v3348
    %v3350 = vxor.u32 %v3341, 2147483648
    %v3351 = vmul.f32 %v3350, 1.442695
    %v3352 = vpow.pop %v3351
    %v3353 = vadd.f32 %v3352, 1.0
    %v3354 = vrcp.pop %v3353
    %v3355 = vmul.f32 1.0, %v3354
    %v3356 = vtanh.pop %v3342
    %v3357 = vxor.u32 %v3343, 2147483648
    %v3358 = vmul.f32 %v3357, 1.442695
    %v3359 = vpow.pop %v3358
    %v3360 = vadd.f32 %v3359, 1.0
    %v3361 = vrcp.pop %v3360
    %v3362 = vmul.f32 1.0, %v3361
    %v3363 = vmul.f32 %v3355, %v3009
    %v3364 = vmul.f32 %v3349, %v3356
    %v3365 = vadd.f32 %v3363, %v3364
    %v3366 = vtanh.pop %v3365
    %v3367 = vmul.f32 %v3362, %v3366
    %s3368 = scalar_lea.vmem [#allocation5], 8
    %3369 = vst [vmem:[%s3368] sm:$0xff] %v3367
    %s3370 = smul.addr %s1049, 8
    %s3371 = scalar_lea.vmem [#allocation2], %s3370
    %v3372 = vld [vmem:[%s3371] sm:$0xff]
    %v3373 = vld [vmem:[%s3371 + $0x8] sm:$0xff]
    %v3374 = vld [vmem:[%s3371 + $0x10] sm:$0xff]
    %v3375 = vld [vmem:[%s3371 + $0x18] sm:$0xff]
    %3376 = vmatprep.subr.mxu0 %v804
    %3377 = vmatpush1.msra.mxu0 %v803
    %3378 = vmatprep.subr.mxu0 %v800
    %3379 = vmatpush1.msra.mxu0 %v799
    %3380 = vmatprep.subr.mxu0 %v796
    %3381 = vmatpush1.msra.mxu0 %v795
    %3382 = vmatprep.subr.mxu0 %v792
    %3383 = vmatpush1.msra.mxu0 %v791
    %3384 = vmatprep.subr.mxu0 %v788
    %3385 = vmatpush1.msra.mxu0 %v787
    %3386 = vmatprep.subr.mxu0 %v784
    %3387 = vmatpush1.msra.mxu0 %v783
    %3388 = vmatprep.subr.mxu0 %v780
    %3389 = vmatpush1.msra.mxu0 %v779
    %3390 = vmatprep.subr.mxu0 %v776
    %3391 = vmatpush1.msra.mxu0 %v775
    %3392 = vmatprep.subr.mxu0 %v772
    %3393 = vmatpush1.msra.mxu0 %v771
    %3394 = vmatprep.subr.mxu0 %v768
    %3395 = vmatpush1.msra.mxu0 %v767
    %3396 = vmatprep.subr.mxu0 %v764
    %3397 = vmatpush1.msra.mxu0 %v763
    %3398 = vmatprep.subr.mxu0 %v760
    %3399 = vmatpush1.msra.mxu0 %v759
    %3400 = vmatprep.subr.mxu0 %v756
    %3401 = vmatpush1.msra.mxu0 %v755
    %3402 = vmatprep.subr.mxu0 %v752
    %3403 = vmatpush1.msra.mxu0 %v751
    %3404 = vmatprep.subr.mxu0 %v748
    %3405 = vmatpush1.msra.mxu0 %v747
    %3406 = vmatprep.subr.mxu0 %v744
    %3407 = vmatpush1.msra.mxu0 %v743
    %3408 = vmatprep.subr.mxu0 0.0
    %3409 = vmatpush2.msra.mxu0 0.0
    %3410 = vmatprep.subr.mxu0 0.0
    %3411 = vmatpush2.msra.mxu0 0.0
    %3412 = vmatprep.subr.mxu0 0.0
    %3413 = vmatpush2.msra.mxu0 0.0
    %3414 = vmatprep.subr.mxu0 0.0
    %3415 = vmatpush2.msra.mxu0 0.0
    %3416 = vmatprep.subr.mxu0 0.0
    %3417 = vmatpush2.msra.mxu0 0.0
    %3418 = vmatprep.subr.mxu0 0.0
    %3419 = vmatpush2.msra.mxu0 0.0
    %3420 = vmatprep.subr.mxu0 0.0
    %3421 = vmatpush2.msra.mxu0 0.0
    %3422 = vmatprep.subr.mxu0 0.0
    %3423 = vmatpush2.msra.mxu0 0.0
    %3424 = vmatprep.subr.mxu0 0.0
    %3425 = vmatpush2.msra.mxu0 0.0
    %3426 = vmatprep.subr.mxu0 0.0
    %3427 = vmatpush2.msra.mxu0 0.0
    %3428 = vmatprep.subr.mxu0 0.0
    %3429 = vmatpush2.msra.mxu0 0.0
    %3430 = vmatprep.subr.mxu0 0.0
    %3431 = vmatpush2.msra.mxu0 0.0
    %3432 = vmatprep.subr.mxu0 0.0
    %3433 = vmatpush2.msra.mxu0 0.0
    %3434 = vmatprep.subr.mxu0 0.0
    %3435 = vmatpush2.msra.mxu0 0.0
    %3436 = vmatprep.subr.mxu0 0.0
    %3437 = vmatpush2.msra.mxu0 0.0
    %3438 = vmatprep.subr.mxu0 0.0
    %3439 = vmatpush2.msra.mxu0 0.0
    %3440 = vmatprep.mubr.f32.mxu0 0.0
    %3441 = vmatmul.mubr.f32.gmra.mxu0 %v3189
    %v3442 = vpop.f32.mrf.mxu0
    %v3443 = vadd.f32 0.0, %v3442
    %v3444 = vpop.f32.mrf.mxu0
    %v3445 = vadd.f32 0.0, %v3444
    %3446 = vdwg.mxu0
    %3447 = vmatprep.subr.mxu0 %v806
    %3448 = vmatpush1.msra.mxu0 %v805
    %3449 = vmatprep.subr.mxu0 %v802
    %3450 = vmatpush1.msra.mxu0 %v801
    %3451 = vmatprep.subr.mxu0 %v798
    %3452 = vmatpush1.msra.mxu0 %v797
    %3453 = vmatprep.subr.mxu0 %v794
    %3454 = vmatpush1.msra.mxu0 %v793
    %3455 = vmatprep.subr.mxu0 %v790
    %3456 = vmatpush1.msra.mxu0 %v789
    %3457 = vmatprep.subr.mxu0 %v786
    %3458 = vmatpush1.msra.mxu0 %v785
    %3459 = vmatprep.subr.mxu0 %v782
    %3460 = vmatpush1.msra.mxu0 %v781
    %3461 = vmatprep.subr.mxu0 %v778
    %3462 = vmatpush1.msra.mxu0 %v777
    %3463 = vmatprep.subr.mxu0 %v774
    %3464 = vmatpush1.msra.mxu0 %v773
    %3465 = vmatprep.subr.mxu0 %v770
    %3466 = vmatpush1.msra.mxu0 %v769
    %3467 = vmatprep.subr.mxu0 %v766
    %3468 = vmatpush1.msra.mxu0 %v765
    %3469 = vmatprep.subr.mxu0 %v762
    %3470 = vmatpush1.msra.mxu0 %v761
    %3471 = vmatprep.subr.mxu0 %v758
    %3472 = vmatpush1.msra.mxu0 %v757
    %3473 = vmatprep.subr.mxu0 %v754
    %3474 = vmatpush1.msra.mxu0 %v753
    %3475 = vmatprep.subr.mxu0 %v750
    %3476 = vmatpush1.msra.mxu0 %v749
    %3477 = vmatprep.subr.mxu0 %v746
    %3478 = vmatpush1.msra.mxu0 %v745
    %3479 = vmatprep.subr.mxu0 0.0
    %3480 = vmatpush2.msra.mxu0 0.0
    %3481 = vmatprep.subr.mxu0 0.0
    %3482 = vmatpush2.msra.mxu0 0.0
    %3483 = vmatprep.subr.mxu0 0.0
    %3484 = vmatpush2.msra.mxu0 0.0
    %3485 = vmatprep.subr.mxu0 0.0
    %3486 = vmatpush2.msra.mxu0 0.0
    %3487 = vmatprep.subr.mxu0 0.0
    %3488 = vmatpush2.msra.mxu0 0.0
    %3489 = vmatprep.subr.mxu0 0.0
    %3490 = vmatpush2.msra.mxu0 0.0
    %3491 = vmatprep.subr.mxu0 0.0
    %3492 = vmatpush2.msra.mxu0 0.0
    %3493 = vmatprep.subr.mxu0 0.0
    %3494 = vmatpush2.msra.mxu0 0.0
    %3495 = vmatprep.subr.mxu0 0.0
    %3496 = vmatpush2.msra.mxu0 0.0
    %3497 = vmatprep.subr.mxu0 0.0
    %3498 = vmatpush2.msra.mxu0 0.0
    %3499 = vmatprep.subr.mxu0 0.0
    %3500 = vmatpush2.msra.mxu0 0.0
    %3501 = vmatprep.subr.mxu0 0.0
    %3502 = vmatpush2.msra.mxu0 0.0
    %3503 = vmatprep.subr.mxu0 0.0
    %3504 = vmatpush2.msra.mxu0 0.0
    %3505 = vmatprep.subr.mxu0 0.0
    %3506 = vmatpush2.msra.mxu0 0.0
    %3507 = vmatprep.subr.mxu0 0.0
    %3508 = vmatpush2.msra.mxu0 0.0
    %3509 = vmatprep.subr.mxu0 0.0
    %3510 = vmatpush2.msra.mxu0 0.0
    %3511 = vmatprep.mubr.f32.mxu0 0.0
    %3512 = vmatmul.mubr.f32.gmra.mxu0 %v3189
    %v3513 = vpop.f32.mrf.mxu0
    %v3514 = vadd.f32 0.0, %v3513
    %v3515 = vpop.f32.mrf.mxu0
    %v3516 = vadd.f32 0.0, %v3515
    %3517 = vdwg.mxu0
    %v3518 = vadd.f32 %v3372, %v3443
    %v3519 = vadd.f32 %v3373, %v3445
    %v3520 = vadd.f32 %v3374, %v3514
    %v3521 = vadd.f32 %v3375, %v3516
    %v3522 = vxor.u32 %v3518, 2147483648
    %v3523 = vmul.f32 %v3522, 1.442695
    %v3524 = vpow.pop %v3523
    %v3525 = vadd.f32 %v3524, 1.0
    %v3526 = vrcp.pop %v3525
    %v3527 = vmul.f32 1.0, %v3526
    %v3528 = vxor.u32 %v3519, 2147483648
    %v3529 = vmul.f32 %v3528, 1.442695
    %v3530 = vpow.pop %v3529
    %v3531 = vadd.f32 %v3530, 1.0
    %v3532 = vrcp.pop %v3531
    %v3533 = vmul.f32 1.0, %v3532
    %v3534 = vtanh.pop %v3520
    %v3535 = vxor.u32 %v3521, 2147483648
    %v3536 = vmul.f32 %v3535, 1.442695
    %v3537 = vpow.pop %v3536
    %v3538 = vadd.f32 %v3537, 1.0
    %v3539 = vrcp.pop %v3538
    %v3540 = vmul.f32 1.0, %v3539
    %v3541 = vmul.f32 %v3533, %v3187
    %v3542 = vmul.f32 %v3527, %v3534
    %v3543 = vadd.f32 %v3541, %v3542
    %v3544 = vtanh.pop %v3543
    %v3545 = vmul.f32 %v3540, %v3544
    %s3546 = scalar_lea.vmem [#allocation4], 56
    %3547 = vst [vmem:[%s3546] sm:$0xff] %v3545
    %s3548 = smul.addr %s871, 8
    %s3549 = scalar_lea.vmem [#allocation3], %s3548
    %v3550 = vld [vmem:[%s3549] sm:$0xff]
    %v3551 = vld [vmem:[%s3549 + $0x8] sm:$0xff]
    %v3552 = vld [vmem:[%s3549 + $0x10] sm:$0xff]
    %v3553 = vld [vmem:[%s3549 + $0x18] sm:$0xff]
    %3554 = vmatprep.subr.mxu0 %v868
    %3555 = vmatpush1.msra.mxu0 %v867
    %3556 = vmatprep.subr.mxu0 %v864
    %3557 = vmatpush1.msra.mxu0 %v863
    %3558 = vmatprep.subr.mxu0 %v860
    %3559 = vmatpush1.msra.mxu0 %v859
    %3560 = vmatprep.subr.mxu0 %v856
    %3561 = vmatpush1.msra.mxu0 %v855
    %3562 = vmatprep.subr.mxu0 %v852
    %3563 = vmatpush1.msra.mxu0 %v851
    %3564 = vmatprep.subr.mxu0 %v848
    %3565 = vmatpush1.msra.mxu0 %v847
    %3566 = vmatprep.subr.mxu0 %v844
    %3567 = vmatpush1.msra.mxu0 %v843
    %3568 = vmatprep.subr.mxu0 %v840
    %3569 = vmatpush1.msra.mxu0 %v839
    %3570 = vmatprep.subr.mxu0 %v836
    %3571 = vmatpush1.msra.mxu0 %v835
    %3572 = vmatprep.subr.mxu0 %v832
    %3573 = vmatpush1.msra.mxu0 %v831
    %3574 = vmatprep.subr.mxu0 %v828
    %3575 = vmatpush1.msra.mxu0 %v827
    %3576 = vmatprep.subr.mxu0 %v824
    %3577 = vmatpush1.msra.mxu0 %v823
    %3578 = vmatprep.subr.mxu0 %v820
    %3579 = vmatpush1.msra.mxu0 %v819
    %3580 = vmatprep.subr.mxu0 %v816
    %3581 = vmatpush1.msra.mxu0 %v815
    %3582 = vmatprep.subr.mxu0 %v812
    %3583 = vmatpush1.msra.mxu0 %v811
    %3584 = vmatprep.subr.mxu0 %v808
    %3585 = vmatpush1.msra.mxu0 %v807
    %3586 = vmatprep.subr.mxu0 0.0
    %3587 = vmatpush2.msra.mxu0 0.0
    %3588 = vmatprep.subr.mxu0 0.0
    %3589 = vmatpush2.msra.mxu0 0.0
    %3590 = vmatprep.subr.mxu0 0.0
    %3591 = vmatpush2.msra.mxu0 0.0
    %3592 = vmatprep.subr.mxu0 0.0
    %3593 = vmatpush2.msra.mxu0 0.0
    %3594 = vmatprep.subr.mxu0 0.0
    %3595 = vmatpush2.msra.mxu0 0.0
    %3596 = vmatprep.subr.mxu0 0.0
    %3597 = vmatpush2.msra.mxu0 0.0
    %3598 = vmatprep.subr.mxu0 0.0
    %3599 = vmatpush2.msra.mxu0 0.0
    %3600 = vmatprep.subr.mxu0 0.0
    %3601 = vmatpush2.msra.mxu0 0.0
    %3602 = vmatprep.subr.mxu0 0.0
    %3603 = vmatpush2.msra.mxu0 0.0
    %3604 = vmatprep.subr.mxu0 0.0
    %3605 = vmatpush2.msra.mxu0 0.0
    %3606 = vmatprep.subr.mxu0 0.0
    %3607 = vmatpush2.msra.mxu0 0.0
    %3608 = vmatprep.subr.mxu0 0.0
    %3609 = vmatpush2.msra.mxu0 0.0
    %3610 = vmatprep.subr.mxu0 0.0
    %3611 = vmatpush2.msra.mxu0 0.0
    %3612 = vmatprep.subr.mxu0 0.0
    %3613 = vmatpush2.msra.mxu0 0.0
    %3614 = vmatprep.subr.mxu0 0.0
    %3615 = vmatpush2.msra.mxu0 0.0
    %3616 = vmatprep.subr.mxu0 0.0
    %3617 = vmatpush2.msra.mxu0 0.0
    %3618 = vmatprep.mubr.f32.mxu0 0.0
    %3619 = vmatmul.mubr.f32.gmra.mxu0 %v3367
    %v3620 = vpop.f32.mrf.mxu0
    %v3621 = vadd.f32 0.0, %v3620
    %v3622 = vpop.f32.mrf.mxu0
    %v3623 = vadd.f32 0.0, %v3622
    %3624 = vdwg.mxu0
    %3625 = vmatprep.subr.mxu0 %v870
    %3626 = vmatpush1.msra.mxu0 %v869
    %3627 = vmatprep.subr.mxu0 %v866
    %3628 = vmatpush1.msra.mxu0 %v865
    %3629 = vmatprep.subr.mxu0 %v862
    %3630 = vmatpush1.msra.mxu0 %v861
    %3631 = vmatprep.subr.mxu0 %v858
    %3632 = vmatpush1.msra.mxu0 %v857
    %3633 = vmatprep.subr.mxu0 %v854
    %3634 = vmatpush1.msra.mxu0 %v853
    %3635 = vmatprep.subr.mxu0 %v850
    %3636 = vmatpush1.msra.mxu0 %v849
    %3637 = vmatprep.subr.mxu0 %v846
    %3638 = vmatpush1.msra.mxu0 %v845
    %3639 = vmatprep.subr.mxu0 %v842
    %3640 = vmatpush1.msra.mxu0 %v841
    %3641 = vmatprep.subr.mxu0 %v838
    %3642 = vmatpush1.msra.mxu0 %v837
    %3643 = vmatprep.subr.mxu0 %v834
    %3644 = vmatpush1.msra.mxu0 %v833
    %3645 = vmatprep.subr.mxu0 %v830
    %3646 = vmatpush1.msra.mxu0 %v829
    %3647 = vmatprep.subr.mxu0 %v826
    %3648 = vmatpush1.msra.mxu0 %v825
    %3649 = vmatprep.subr.mxu0 %v822
    %3650 = vmatpush1.msra.mxu0 %v821
    %3651 = vmatprep.subr.mxu0 %v818
    %3652 = vmatpush1.msra.mxu0 %v817
    %3653 = vmatprep.subr.mxu0 %v814
    %3654 = vmatpush1.msra.mxu0 %v813
    %3655 = vmatprep.subr.mxu0 %v810
    %3656 = vmatpush1.msra.mxu0 %v809
    %3657 = vmatprep.subr.mxu0 0.0
    %3658 = vmatpush2.msra.mxu0 0.0
    %3659 = vmatprep.subr.mxu0 0.0
    %3660 = vmatpush2.msra.mxu0 0.0
    %3661 = vmatprep.subr.mxu0 0.0
    %3662 = vmatpush2.msra.mxu0 0.0
    %3663 = vmatprep.subr.mxu0 0.0
    %3664 = vmatpush2.msra.mxu0 0.0
    %3665 = vmatprep.subr.mxu0 0.0
    %3666 = vmatpush2.msra.mxu0 0.0
    %3667 = vmatprep.subr.mxu0 0.0
    %3668 = vmatpush2.msra.mxu0 0.0
    %3669 = vmatprep.subr.mxu0 0.0
    %3670 = vmatpush2.msra.mxu0 0.0
    %3671 = vmatprep.subr.mxu0 0.0
    %3672 = vmatpush2.msra.mxu0 0.0
    %3673 = vmatprep.subr.mxu0 0.0
    %3674 = vmatpush2.msra.mxu0 0.0
    %3675 = vmatprep.subr.mxu0 0.0
    %3676 = vmatpush2.msra.mxu0 0.0
    %3677 = vmatprep.subr.mxu0 0.0
    %3678 = vmatpush2.msra.mxu0 0.0
    %3679 = vmatprep.subr.mxu0 0.0
    %3680 = vmatpush2.msra.mxu0 0.0
    %3681 = vmatprep.subr.mxu0 0.0
    %3682 = vmatpush2.msra.mxu0 0.0
    %3683 = vmatprep.subr.mxu0 0.0
    %3684 = vmatpush2.msra.mxu0 0.0
    %3685 = vmatprep.subr.mxu0 0.0
    %3686 = vmatpush2.msra.mxu0 0.0
    %3687 = vmatprep.subr.mxu0 0.0
    %3688 = vmatpush2.msra.mxu0 0.0
    %3689 = vmatprep.mubr.f32.mxu0 0.0
    %3690 = vmatmul.mubr.f32.gmra.mxu0 %v3367
    %v3691 = vpop.f32.mrf.mxu0
    %v3692 = vadd.f32 0.0, %v3691
    %v3693 = vpop.f32.mrf.mxu0
    %v3694 = vadd.f32 0.0, %v3693
    %3695 = vdwg.mxu0
    %v3696 = vadd.f32 %v3550, %v3621
    %v3697 = vadd.f32 %v3551, %v3623
    %v3698 = vadd.f32 %v3552, %v3692
    %v3699 = vadd.f32 %v3553, %v3694
    %v3700 = vxor.u32 %v3696, 2147483648
    %v3701 = vmul.f32 %v3700, 1.442695
    %v3702 = vpow.pop %v3701
    %v3703 = vadd.f32 %v3702, 1.0
    %v3704 = vrcp.pop %v3703
    %v3705 = vmul.f32 1.0, %v3704
    %v3706 = vxor.u32 %v3697, 2147483648
    %v3707 = vmul.f32 %v3706, 1.442695
    %v3708 = vpow.pop %v3707
    %v3709 = vadd.f32 %v3708, 1.0
    %v3710 = vrcp.pop %v3709
    %v3711 = vmul.f32 1.0, %v3710
    %v3712 = vtanh.pop %v3698
    %v3713 = vxor.u32 %v3699, 2147483648
    %v3714 = vmul.f32 %v3713, 1.442695
    %v3715 = vpow.pop %v3714
    %v3716 = vadd.f32 %v3715, 1.0
    %v3717 = vrcp.pop %v3716
    %v3718 = vmul.f32 1.0, %v3717
    %v3719 = vmul.f32 %v3711, %v3365
    %v3720 = vmul.f32 %v3705, %v3712
    %v3721 = vadd.f32 %v3719, %v3720
    %v3722 = vtanh.pop %v3721
    %v3723 = vmul.f32 %v3718, %v3722
    %3724 = vst [vmem:[#allocation5] sm:$0xff] %v3723
    %v3725 = vld [vmem:[#allocation4] sm:$0xff]
    %v3726 = vld [vmem:[#allocation4 + $0x8] sm:$0xff]
    %v3727 = vld [vmem:[#allocation4 + $0x10] sm:$0xff]
    %v3728 = vld [vmem:[#allocation4 + $0x18] sm:$0xff]
    %v3729 = vld [vmem:[#allocation4 + $0x20] sm:$0xff]
    %v3730 = vld [vmem:[#allocation4 + $0x28] sm:$0xff]
    %v3731 = vld [vmem:[#allocation4 + $0x30] sm:$0xff]
    %v3732 = vld [vmem:[#allocation4 + $0x38] sm:$0xff]
    %v3733 = vld [vmem:[#allocation14] sm:$0xff]
    %v3734 = vld [vmem:[#allocation14 + $0x8] sm:$0xff]
    %v3735 = vld [vmem:[#allocation14 + $0x10] sm:$0xff]
    %v3736 = vld [vmem:[#allocation14 + $0x18] sm:$0xff]
    %v3737 = vld [vmem:[#allocation14 + $0x20] sm:$0xff]
    %v3738 = vld [vmem:[#allocation14 + $0x28] sm:$0xff]
    %v3739 = vld [vmem:[#allocation14 + $0x30] sm:$0xff]
    %v3740 = vld [vmem:[#allocation14 + $0x38] sm:$0xff]
    %v3741 = vld [vmem:[#allocation14 + $0x40] sm:$0xff]
    %v3742 = vld [vmem:[#allocation14 + $0x48] sm:$0xff]
    %v3743 = vld [vmem:[#allocation14 + $0x50] sm:$0xff]
    %v3744 = vld [vmem:[#allocation14 + $0x58] sm:$0xff]
    %v3745 = vld [vmem:[#allocation14 + $0x60] sm:$0xff]
    %v3746 = vld [vmem:[#allocation14 + $0x68] sm:$0xff]
    %v3747 = vld [vmem:[#allocation14 + $0x70] sm:$0xff]
    %v3748 = vld [vmem:[#allocation14 + $0x78] sm:$0xff]
    %v3749 = vld [vmem:[#allocation5] sm:$0xff]
    %v3750 = vld [vmem:[#allocation5 + $0x8] sm:$0xff]
    %v3751 = vld [vmem:[#allocation5 + $0x10] sm:$0xff]
    %v3752 = vld [vmem:[#allocation5 + $0x18] sm:$0xff]
    %v3753 = vld [vmem:[#allocation5 + $0x20] sm:$0xff]
    %v3754 = vld [vmem:[#allocation5 + $0x28] sm:$0xff]
    %v3755 = vld [vmem:[#allocation5 + $0x30] sm:$0xff]
    %v3756 = vld [vmem:[#allocation5 + $0x38] sm:$0xff]
    %v3757 = vld [vmem:[#allocation15] sm:$0xff]
    %v3758 = vld [vmem:[#allocation15 + $0x8] sm:$0xff]
    %v3759 = vld [vmem:[#allocation15 + $0x10] sm:$0xff]
    %v3760 = vld [vmem:[#allocation15 + $0x18] sm:$0xff]
    %v3761 = vld [vmem:[#allocation15 + $0x20] sm:$0xff]
    %v3762 = vld [vmem:[#allocation15 + $0x28] sm:$0xff]
    %v3763 = vld [vmem:[#allocation15 + $0x30] sm:$0xff]
    %v3764 = vld [vmem:[#allocation15 + $0x38] sm:$0xff]
    %v3765 = vld [vmem:[#allocation15 + $0x40] sm:$0xff]
    %v3766 = vld [vmem:[#allocation15 + $0x48] sm:$0xff]
    %v3767 = vld [vmem:[#allocation15 + $0x50] sm:$0xff]
    %v3768 = vld [vmem:[#allocation15 + $0x58] sm:$0xff]
    %v3769 = vld [vmem:[#allocation15 + $0x60] sm:$0xff]
    %v3770 = vld [vmem:[#allocation15 + $0x68] sm:$0xff]
    %v3771 = vld [vmem:[#allocation15 + $0x70] sm:$0xff]
    %v3772 = vld [vmem:[#allocation15 + $0x78] sm:$0xff]
    %3773 = vmatprep.subr.mxu0 0.0
    %3774 = vmatpush1.msra.mxu0 %v3772
    %3775 = vmatprep.subr.mxu0 0.0
    %3776 = vmatpush1.msra.mxu0 %v3771
    %3777 = vmatprep.subr.mxu0 0.0
    %3778 = vmatpush1.msra.mxu0 %v3770
    %3779 = vmatprep.subr.mxu0 0.0
    %3780 = vmatpush1.msra.mxu0 %v3769
    %3781 = vmatprep.subr.mxu0 0.0
    %3782 = vmatpush1.msra.mxu0 %v3768
    %3783 = vmatprep.subr.mxu0 0.0
    %3784 = vmatpush1.msra.mxu0 %v3767
    %3785 = vmatprep.subr.mxu0 0.0
    %3786 = vmatpush1.msra.mxu0 %v3766
    %3787 = vmatprep.subr.mxu0 0.0
    %3788 = vmatpush1.msra.mxu0 %v3765
    %3789 = vmatprep.subr.mxu0 0.0
    %3790 = vmatpush1.msra.mxu0 %v3764
    %3791 = vmatprep.subr.mxu0 0.0
    %3792 = vmatpush1.msra.mxu0 %v3763
    %3793 = vmatprep.subr.mxu0 0.0
    %3794 = vmatpush1.msra.mxu0 %v3762
    %3795 = vmatprep.subr.mxu0 0.0
    %3796 = vmatpush1.msra.mxu0 %v3761
    %3797 = vmatprep.subr.mxu0 0.0
    %3798 = vmatpush1.msra.mxu0 %v3760
    %3799 = vmatprep.subr.mxu0 0.0
    %3800 = vmatpush1.msra.mxu0 %v3759
    %3801 = vmatprep.subr.mxu0 0.0
    %3802 = vmatpush1.msra.mxu0 %v3758
    %3803 = vmatprep.subr.mxu0 0.0
    %3804 = vmatpush1.msra.mxu0 %v3757
    %3805 = vmatprep.subr.mxu0 0.0
    %3806 = vmatpush2.msra.mxu0 0.0
    %3807 = vmatprep.subr.mxu0 0.0
    %3808 = vmatpush2.msra.mxu0 0.0
    %3809 = vmatprep.subr.mxu0 0.0
    %3810 = vmatpush2.msra.mxu0 0.0
    %3811 = vmatprep.subr.mxu0 0.0
    %3812 = vmatpush2.msra.mxu0 0.0
    %3813 = vmatprep.subr.mxu0 0.0
    %3814 = vmatpush2.msra.mxu0 0.0
    %3815 = vmatprep.subr.mxu0 0.0
    %3816 = vmatpush2.msra.mxu0 0.0
    %3817 = vmatprep.subr.mxu0 0.0
    %3818 = vmatpush2.msra.mxu0 0.0
    %3819 = vmatprep.subr.mxu0 0.0
    %3820 = vmatpush2.msra.mxu0 0.0
    %3821 = vmatprep.subr.mxu0 0.0
    %3822 = vmatpush2.msra.mxu0 0.0
    %3823 = vmatprep.subr.mxu0 0.0
    %3824 = vmatpush2.msra.mxu0 0.0
    %3825 = vmatprep.subr.mxu0 0.0
    %3826 = vmatpush2.msra.mxu0 0.0
    %3827 = vmatprep.subr.mxu0 0.0
    %3828 = vmatpush2.msra.mxu0 0.0
    %3829 = vmatprep.subr.mxu0 0.0
    %3830 = vmatpush2.msra.mxu0 0.0
    %3831 = vmatprep.subr.mxu0 0.0
    %3832 = vmatpush2.msra.mxu0 0.0
    %3833 = vmatprep.subr.mxu0 0.0
    %3834 = vmatpush2.msra.mxu0 0.0
    %3835 = vmatprep.subr.mxu0 0.0
    %3836 = vmatpush2.msra.mxu0 0.0
    %3837 = vmatprep.mubr.f32.mxu0 0.0
    %3838 = vmatmul.mubr.f32.gmra.mxu0 %v3749
    %v3839 = vpop.f32.mrf.mxu0
    %v3840 = vadd.f32 0.0, %v3839
    %v3841 = vpop.f32.mrf.mxu0
    %3842 = vmatprep.mubr.f32.mxu0 0.0
    %3843 = vmatmul.mubr.f32.gmra.mxu0 %v3750
    %v3844 = vpop.f32.mrf.mxu0
    %v3845 = vadd.f32 0.0, %v3844
    %v3846 = vpop.f32.mrf.mxu0
    %3847 = vmatprep.mubr.f32.mxu0 0.0
    %3848 = vmatmul.mubr.f32.gmra.mxu0 %v3751
    %v3849 = vpop.f32.mrf.mxu0
    %v3850 = vadd.f32 0.0, %v3849
    %v3851 = vpop.f32.mrf.mxu0
    %3852 = vmatprep.mubr.f32.mxu0 0.0
    %3853 = vmatmul.mubr.f32.gmra.mxu0 %v3752
    %v3854 = vpop.f32.mrf.mxu0
    %v3855 = vadd.f32 0.0, %v3854
    %v3856 = vpop.f32.mrf.mxu0
    %3857 = vmatprep.mubr.f32.mxu0 0.0
    %3858 = vmatmul.mubr.f32.gmra.mxu0 %v3753
    %v3859 = vpop.f32.mrf.mxu0
    %v3860 = vadd.f32 0.0, %v3859
    %v3861 = vpop.f32.mrf.mxu0
    %3862 = vmatprep.mubr.f32.mxu0 0.0
    %3863 = vmatmul.mubr.f32.gmra.mxu0 %v3754
    %v3864 = vpop.f32.mrf.mxu0
    %v3865 = vadd.f32 0.0, %v3864
    %v3866 = vpop.f32.mrf.mxu0
    %3867 = vmatprep.mubr.f32.mxu0 0.0
    %3868 = vmatmul.mubr.f32.gmra.mxu0 %v3755
    %v3869 = vpop.f32.mrf.mxu0
    %v3870 = vadd.f32 0.0, %v3869
    %v3871 = vpop.f32.mrf.mxu0
    %3872 = vmatprep.mubr.f32.mxu0 0.0
    %3873 = vmatmul.mubr.f32.gmra.mxu0 %v3756
    %v3874 = vpop.f32.mrf.mxu0
    %v3875 = vadd.f32 0.0, %v3874
    %v3876 = vpop.f32.mrf.mxu0
    %3877 = vdwg.mxu0
    %3878 = vmatprep.subr.mxu0 0.0
    %3879 = vmatpush1.msra.mxu0 %v3748
    %3880 = vmatprep.subr.mxu0 0.0
    %3881 = vmatpush1.msra.mxu0 %v3747
    %3882 = vmatprep.subr.mxu0 0.0
    %3883 = vmatpush1.msra.mxu0 %v3746
    %3884 = vmatprep.subr.mxu0 0.0
    %3885 = vmatpush1.msra.mxu0 %v3745
    %3886 = vmatprep.subr.mxu0 0.0
    %3887 = vmatpush1.msra.mxu0 %v3744
    %3888 = vmatprep.subr.mxu0 0.0
    %3889 = vmatpush1.msra.mxu0 %v3743
    %3890 = vmatprep.subr.mxu0 0.0
    %3891 = vmatpush1.msra.mxu0 %v3742
    %3892 = vmatprep.subr.mxu0 0.0
    %3893 = vmatpush1.msra.mxu0 %v3741
    %3894 = vmatprep.subr.mxu0 0.0
    %3895 = vmatpush1.msra.mxu0 %v3740
    %3896 = vmatprep.subr.mxu0 0.0
    %3897 = vmatpush1.msra.mxu0 %v3739
    %3898 = vmatprep.subr.mxu0 0.0
    %3899 = vmatpush1.msra.mxu0 %v3738
    %3900 = vmatprep.subr.mxu0 0.0
    %3901 = vmatpush1.msra.mxu0 %v3737
    %3902 = vmatprep.subr.mxu0 0.0
    %3903 = vmatpush1.msra.mxu0 %v3736
    %3904 = vmatprep.subr.mxu0 0.0
    %3905 = vmatpush1.msra.mxu0 %v3735
    %3906 = vmatprep.subr.mxu0 0.0
    %3907 = vmatpush1.msra.mxu0 %v3734
    %3908 = vmatprep.subr.mxu0 0.0
    %3909 = vmatpush1.msra.mxu0 %v3733
    %3910 = vmatprep.subr.mxu0 0.0
    %3911 = vmatpush2.msra.mxu0 0.0
    %3912 = vmatprep.subr.mxu0 0.0
    %3913 = vmatpush2.msra.mxu0 0.0
    %3914 = vmatprep.subr.mxu0 0.0
    %3915 = vmatpush2.msra.mxu0 0.0
    %3916 = vmatprep.subr.mxu0 0.0
    %3917 = vmatpush2.msra.mxu0 0.0
    %3918 = vmatprep.subr.mxu0 0.0
    %3919 = vmatpush2.msra.mxu0 0.0
    %3920 = vmatprep.subr.mxu0 0.0
    %3921 = vmatpush2.msra.mxu0 0.0
    %3922 = vmatprep.subr.mxu0 0.0
    %3923 = vmatpush2.msra.mxu0 0.0
    %3924 = vmatprep.subr.mxu0 0.0
    %3925 = vmatpush2.msra.mxu0 0.0
    %3926 = vmatprep.subr.mxu0 0.0
    %3927 = vmatpush2.msra.mxu0 0.0
    %3928 = vmatprep.subr.mxu0 0.0
    %3929 = vmatpush2.msra.mxu0 0.0
    %3930 = vmatprep.subr.mxu0 0.0
    %3931 = vmatpush2.msra.mxu0 0.0
    %3932 = vmatprep.subr.mxu0 0.0
    %3933 = vmatpush2.msra.mxu0 0.0
    %3934 = vmatprep.subr.mxu0 0.0
    %3935 = vmatpush2.msra.mxu0 0.0
    %3936 = vmatprep.subr.mxu0 0.0
    %3937 = vmatpush2.msra.mxu0 0.0
    %3938 = vmatprep.subr.mxu0 0.0
    %3939 = vmatpush2.msra.mxu0 0.0
    %3940 = vmatprep.subr.mxu0 0.0
    %3941 = vmatpush2.msra.mxu0 0.0
    %3942 = vmatprep.mubr.f32.mxu0 0.0
    %3943 = vmatmul.mubr.f32.gmra.mxu0 %v3725
    %v3944 = vpop.f32.mrf.mxu0
    %v3945 = vadd.f32 %v3840, %v3944
    %v3946 = vpop.f32.mrf.mxu0
    %3947 = vmatprep.mubr.f32.mxu0 0.0
    %3948 = vmatmul.mubr.f32.gmra.mxu0 %v3726
    %v3949 = vpop.f32.mrf.mxu0
    %v3950 = vadd.f32 %v3845, %v3949
    %v3951 = vpop.f32.mrf.mxu0
    %3952 = vmatprep.mubr.f32.mxu0 0.0
    %3953 = vmatmul.mubr.f32.gmra.mxu0 %v3727
    %v3954 = vpop.f32.mrf.mxu0
    %v3955 = vadd.f32 %v3850, %v3954
    %v3956 = vpop.f32.mrf.mxu0
    %3957 = vmatprep.mubr.f32.mxu0 0.0
    %3958 = vmatmul.mubr.f32.gmra.mxu0 %v3728
    %v3959 = vpop.f32.mrf.mxu0
    %v3960 = vadd.f32 %v3855, %v3959
    %v3961 = vpop.f32.mrf.mxu0
    %3962 = vmatprep.mubr.f32.mxu0 0.0
    %3963 = vmatmul.mubr.f32.gmra.mxu0 %v3729
    %v3964 = vpop.f32.mrf.mxu0
    %v3965 = vadd.f32 %v3860, %v3964
    %v3966 = vpop.f32.mrf.mxu0
    %3967 = vmatprep.mubr.f32.mxu0 0.0
    %3968 = vmatmul.mubr.f32.gmra.mxu0 %v3730
    %v3969 = vpop.f32.mrf.mxu0
    %v3970 = vadd.f32 %v3865, %v3969
    %v3971 = vpop.f32.mrf.mxu0
    %3972 = vmatprep.mubr.f32.mxu0 0.0
    %3973 = vmatmul.mubr.f32.gmra.mxu0 %v3731
    %v3974 = vpop.f32.mrf.mxu0
    %v3975 = vadd.f32 %v3870, %v3974
    %v3976 = vpop.f32.mrf.mxu0
    %3977 = vmatprep.mubr.f32.mxu0 0.0
    %3978 = vmatmul.mubr.f32.gmra.mxu0 %v3732
    %v3979 = vpop.f32.mrf.mxu0
    %v3980 = vadd.f32 %v3875, %v3979
    %v3981 = vpop.f32.mrf.mxu0
    %3982 = vdwg.mxu0
    %v3983 = vld [vmem:[%s9] sm:$0x1]
    %v3985 = vlaneseq
    %v3986 = vshrl.u32 %v3985, 7
    %v3987 = vsub.s32 0, %v3986
    %v3988 = vrot.slane %v3983, %v3987
    %v3990 = vadd.f32 %v3945, %v3988
    %v3991 = vadd.f32 %v3950, %v3988
    %v3992 = vadd.f32 %v3955, %v3988
    %v3993 = vadd.f32 %v3960, %v3988
    %v3994 = vadd.f32 %v3965, %v3988
    %v3995 = vadd.f32 %v3970, %v3988
    %v3996 = vadd.f32 %v3975, %v3988
    %v3997 = vadd.f32 %v3980, %v3988
    %3998 = vst [vmem:[#allocation17] sm:$0xff] %v3990
    %3999 = vst [vmem:[#allocation17 + $0x8] sm:$0xff] %v3991
    %4000 = vst [vmem:[#allocation17 + $0x10] sm:$0xff] %v3992
    %4001 = vst [vmem:[#allocation17 + $0x18] sm:$0xff] %v3993
    %4002 = vst [vmem:[#allocation17 + $0x20] sm:$0xff] %v3994
    %4003 = vst [vmem:[#allocation17 + $0x28] sm:$0xff] %v3995
    %4004 = vst [vmem:[#allocation17 + $0x30] sm:$0xff] %v3996
    %4005 = vst [vmem:[#allocation17 + $0x38] sm:$0xff] %v3997
    // Predicated region
    $region66: #{tpu_custom_call.1} parent=1 // pred_check
      _
    $region67: #{tpu_custom_call.1} parent=1 // pred_check_branch
      %4007 = sbr.rel (0) target = $region69
    $region68: #{tpu_custom_call.1} parent=1 // pred_region
      %s4009 = ssub.s32 1024, 1024
      %4010 = vsyncadd [#allocation8], %s4009
      %s4011 = sshll.u32 [#allocation17], 4
      %s4012 = int_to_ptr.vmem [resolvable:$true] %s4011
      %4017 = dma.vmem_to_hbm [thread:$0]  %s4012, 1024, %s10, [#allocation8], 128, 128, 8
    $region69: #{tpu_custom_call.1} parent=1 // pred_fallthru
      _
    // Predicated region
    $region70: #{tpu_custom_call.1} parent=1 // pred_check
      _
    $region71: #{tpu_custom_call.1} parent=1 // pred_check_branch
      %4019 = sbr.rel (0) target = $region73
    $region72: #{tpu_custom_call.1} parent=1 // pred_region
      %4020 = dma.done [#allocation8], 1024
    $region73: #{tpu_custom_call.1} parent=1 // pred_fallthru
      _
    %4021 = vsyncpa [#allocation7], 1
    %4022 = vsyncpa [#allocation10], 1
    %4023 = vsyncpa [#allocation13], 1
    %4024 = vsyncpa [#allocation16], 1
    %4025 = vsyncpa [#allocation8], 1

</llo_original>
